<compile_context>
chip_gen: v5e
topology: v5e:2x2
jax: 0.10.0
libtpu: 0.0.40
codegen_flags: <defaults>
</compile_context>

<pallas_src>
import math

import jax
import jax.numpy as jnp
from jax.experimental import pallas as pl
from jax.experimental.pallas import tpu as pltpu

# ----------------------- small synthetic ViT config -------------------------
B = 2            # batch
C = 3            # input channels (ViT expects RGB)
IMG = 16         # image size
P = 8            # patch size
NP = (IMG // P) ** 2      # 4 patches
CPP = C * P * P  # flattened patch length
D = 64           # hidden_dim
H = 4            # attention heads
HD = D // H      # head dim
MLP = 128        # mlp dim
LAYERS = 2       # encoder layers
CLASSES = 2      # head classes
HEAD_PAD = 128   # lane-dense padded head width (>= CLASSES)
S = NP + 1       # seq length (class token + patches)
EPS = 1e-6       # LayerNorm eps (torchvision ViT)


# ------------------------------ kernel helpers -------------------------------
def _layernorm(x, g, b):
    mu = jnp.mean(x, axis=-1, keepdims=True)
    var = jnp.mean(jnp.square(x - mu), axis=-1, keepdims=True)
    return (x - mu) * jax.lax.rsqrt(var + EPS) * g + b


def _softmax_approx(s):
    # row softmax; approximate reciprocal runs on the EUP slot (nearly free).
    # Not bit-identical to exact softmax; fine for inference.
    s = s - jnp.max(s, axis=-1, keepdims=True)
    e = jnp.exp(s)
    return e * pl.reciprocal(jnp.sum(e, axis=-1, keepdims=True), approx=True)


# ------------------------------- fused kernel --------------------------------
def vit_fused_kernel(
    xp_ref, pw_ref, tokb_ref,
    ln1g_ref, ln1b_ref, wqkv_ref, bqkv_ref, wo_ref, bo_ref,
    ln2g_ref, ln2b_ref, w1_ref, b1_ref, w2_ref, b2_ref,
    lng_ref, lnb_ref, hw_ref, hb_ref,
    probs_ref, emb_ref,
    x_sc,
):
    # ---- patch embedding + class token + positional embedding (fused) ----
    # tokb row 0 = cls + pos[0]; rows 1.. = pos[i] + conv bias, so
    #   x == cat([cls, patches @ W + b]) + pos   exactly.
    x_sc[...] = tokb_ref[...]
    x_sc[1:, :] += jnp.dot(xp_ref[0], pw_ref[...],
                           preferred_element_type=jnp.float32)       # (NP, D)
    x = x_sc[...]                                                    # (S, D)

    # NOTE: matmuls stay f32 at this toy size; cast operands to bf16 (keep f32
    # accumulation) before scaling to real ViT-B shapes.
    for l in range(LAYERS):                                          # unrolled
        # ---- LayerNorm 1 + head-batched multi-head self-attention ----
        xn = _layernorm(x, ln1g_ref[l], ln1b_ref[l])
        # q/k/v directly in (3H, S, HD) layout: one batched matmul against the
        # head-split projection weights (1/sqrt(HD) already folded into Q).
        xb = jnp.broadcast_to(xn, (3 * H, S, D))
        qkv = jnp.einsum("hsd,hde->hse", xb, wqkv_ref[l],
                         preferred_element_type=jnp.float32) + bqkv_ref[l]
        q, k, v = qkv[:H], qkv[H:2 * H], qkv[2 * H:]                 # (H, S, HD)
        s = jnp.einsum("hqd,hkd->hqk", q, k,
                       preferred_element_type=jnp.float32)           # (H, S, S)
        p = _softmax_approx(s)
        ctx = jnp.einsum("hqk,hkd->hqd", p, v,
                         preferred_element_type=jnp.float32)         # (H, S, HD)
        attn = jnp.einsum("hqd,hde->hqe", ctx, wo_ref[l],
                          preferred_element_type=jnp.float32)        # (H, S, D)
        x = x + jnp.sum(attn, axis=0) + bo_ref[l]                    # residual 1

        # ---- LayerNorm 2 + MLP ----
        xn2 = _layernorm(x, ln2g_ref[l], ln2b_ref[l])
        h1 = (jnp.dot(xn2, w1_ref[l], preferred_element_type=jnp.float32)
              + b1_ref[l])
        # TODO(synk): torchvision MLPBlock uses exact (erf) GELU; the tanh
        # approximation keeps Mosaic lowering simple.
        h1 = jax.nn.gelu(h1, approximate=True)
        h2 = (jnp.dot(h1, w2_ref[l], preferred_element_type=jnp.float32)
              + b2_ref[l])
        x = x + h2                                                   # residual 2

    # ---- final encoder LayerNorm (class token only; LN is per-token) ----
    emb = _layernorm(x[0:1, :], lng_ref[...], lnb_ref[...])          # (1, D)
    emb_ref[0] = emb

    # ---- classifier head: Linear + Softmax(dim=1), lane-dense (128 wide) ----
    # Padded columns have weight 0 / bias -1e30, so their probabilities are
    # exactly 0 and the softmax over the real CLASSES columns is unchanged
    # (exact division kept for the user-facing probabilities).
    logits = (jnp.dot(emb, hw_ref[...], preferred_element_type=jnp.float32)
              + hb_ref[...])                                          # (1, 128)
    logits = logits - jnp.max(logits, axis=-1, keepdims=True)
    e = jnp.exp(logits)
    probs_ref[0] = e / jnp.sum(e, axis=-1, keepdims=True)


# ------------------------------ pallas wrapper --------------------------------
# Probe once whether this Pallas exposes per-BlockSpec pipeline_mode; if so,
# single-buffer the grid-invariant weights (their index_map never changes, so
# the default 2-deep pipeline buffer is pure VMEM waste).
try:
    pl.BlockSpec((8, 128), lambda i: (0, 0), pipeline_mode=pl.Buffered(1))
    _WEIGHT_PIPELINE_KW = {"pipeline_mode": pl.Buffered(1)}
except Exception:  # pragma: no cover - pipeline_mode kwarg not available
    _WEIGHT_PIPELINE_KW = {}


def _wspec(shape):
    """BlockSpec for a grid-invariant (weight) input."""
    index_map = lambda *_: (0,) * len(shape)
    if _WEIGHT_PIPELINE_KW:
        return pl.BlockSpec(shape, index_map, **_WEIGHT_PIPELINE_KW)
    return pl.BlockSpec(shape, index_map)


def vit_fused(xp, p):
    n = xp.shape[0]
    return pl.pallas_call(
        vit_fused_kernel,
        out_shape=(jax.ShapeDtypeStruct((n, 1, HEAD_PAD), jnp.float32),
                   jax.ShapeDtypeStruct((n, 1, D), jnp.float32)),
        grid=(n,),
        in_specs=[
            pl.BlockSpec((1, NP, CPP), lambda b: (b, 0, 0)),     # patches
            _wspec((CPP, D)),                                    # patch proj W
            _wspec((S, D)),                                      # cls/pos/conv-bias
            _wspec((LAYERS, 1, D)), _wspec((LAYERS, 1, D)),      # ln1 g/b
            _wspec((LAYERS, 3 * H, D, HD)),                      # qkv W (head split)
            _wspec((LAYERS, 3 * H, 1, HD)),                      # qkv b (head split)
            _wspec((LAYERS, H, HD, D)),                          # out-proj W (head split)
            _wspec((LAYERS, 1, D)),                              # out-proj b
            _wspec((LAYERS, 1, D)), _wspec((LAYERS, 1, D)),      # ln2 g/b
            _wspec((LAYERS, D, MLP)), _wspec((LAYERS, 1, MLP)),  # mlp fc1
            _wspec((LAYERS, MLP, D)), _wspec((LAYERS, 1, D)),    # mlp fc2
            _wspec((1, D)), _wspec((1, D)),                      # final LN g/b
            _wspec((D, HEAD_PAD)), _wspec((1, HEAD_PAD)),        # padded head
        ],
        out_specs=(pl.BlockSpec((1, 1, HEAD_PAD), lambda b: (b, 0, 0)),
                   pl.BlockSpec((1, 1, D), lambda b: (b, 0, 0))),
        scratch_shapes=[pltpu.VMEM((S, D), jnp.float32)],
        compiler_params=pltpu.CompilerParams(
            dimension_semantics=("parallel",)),
    )(xp, p["patch_w"], p["tok_bias"],
      p["ln1_g"], p["ln1_b"], p["wqkv"], p["bqkv"], p["wo"], p["bo"],
      p["ln2_g"], p["ln2_b"], p["w1"], p["b1"], p["w2"], p["b2"],
      p["ln_g"], p["ln_b"], p["head_w"], p["head_b"])


def vit_embeddings_forward(x_nchw, kparams, only_embeddings=False):
    n = x_nchw.shape[0]
    # _process_input: patchify NCHW -> (n, NP, C*P*P) flattened in (C, P, P)
    # order so patches @ patch_w is exactly Conv2d(kernel=stride=patch).
    xp = x_nchw.reshape(n, C, IMG // P, P, IMG // P, P)
    xp = xp.transpose(0, 2, 4, 1, 3, 5).reshape(n, NP, CPP)
    probs_pad, embds = vit_fused(xp, kparams)
    embds = embds[:, 0, :]                                    # (n, D)
    if only_embeddings:
        return embds
    probs = probs_pad[:, 0, :CLASSES]                         # (n, CLASSES)
    return probs, embds


# ------------------------- deterministic parameters --------------------------
def init_params(key):
    """Raw parameters in the PyTorch module's natural layout."""
    ks = jax.random.split(key, 16)

    def nrm(k, shape, scale=0.02):
        return scale * jax.random.normal(k, shape, dtype=jnp.float32)

    return {
        "patch_w": nrm(ks[0], (CPP, D)),   # conv weight (D,C,P,P) flattened^T
        "patch_b": nrm(ks[1], (1, D)),
        "cls": nrm(ks[2], (1, 1, D)),
        "pos": nrm(ks[3], (1, S, D)),
        "ln_g": jnp.ones((1, D), jnp.float32),   # final encoder LayerNorm
        "ln_b": jnp.zeros((1, D), jnp.float32),
        "head_w": nrm(ks[4], (D, CLASSES)),
        "head_b": jnp.zeros((1, CLASSES), jnp.float32),
        "ln1_g": jnp.ones((LAYERS, 1, D), jnp.float32),
        "ln1_b": jnp.zeros((LAYERS, 1, D), jnp.float32),
        "wqkv": nrm(ks[5], (LAYERS, D, 3 * D)),
        "bqkv": jnp.zeros((LAYERS, 1, 3 * D), jnp.float32),
        "wo": nrm(ks[6], (LAYERS, D, D)),
        "bo": jnp.zeros((LAYERS, 1, D), jnp.float32),
        "ln2_g": jnp.ones((LAYERS, 1, D), jnp.float32),
        "ln2_b": jnp.zeros((LAYERS, 1, D), jnp.float32),
        "w1": nrm(ks[7], (LAYERS, D, MLP)),
        "b1": jnp.zeros((LAYERS, 1, MLP), jnp.float32),
        "w2": nrm(ks[8], (LAYERS, MLP, D)),
        "b2": jnp.zeros((LAYERS, 1, D), jnp.float32),
    }


def prepare_params(p):
    """One-time re-layout of the raw parameters into the fused-kernel layout.

    Done ONCE outside the forward path (no per-call preprocessing): folds the
    1/sqrt(HD) attention scale into the Q projection, splits qkv / out-proj
    weights per head, folds cls + positional embedding + conv bias into one
    (S, D) token bias, and pads the classifier head to a lane-dense width
    (padded columns: weight 0, bias -1e30 -> softmax unchanged).
    """
    scale = 1.0 / math.sqrt(HD)
    wqkv = p["wqkv"].at[:, :, :D].multiply(scale)             # fold scale into Q
    bqkv = p["bqkv"].at[:, :, :D].multiply(scale)
    wqkv_r = wqkv.reshape(LAYERS, D, 3 * H, HD).transpose(0, 2, 1, 3)
    bqkv_r = bqkv.reshape(LAYERS, 3 * H, HD)[:, :, None, :]
    wo_r = p["wo"].reshape(LAYERS, H, HD, D)

    pos = p["pos"][0]                                         # (S, D)
    tokb = pos + p["patch_b"]                                 # rows 1..NP
    tokb = tokb.at[0].set(pos[0] + p["cls"][0, 0])            # row 0

    head_w = jnp.zeros((D, HEAD_PAD), jnp.float32).at[:, :CLASSES].set(p["head_w"])
    head_b = jnp.full((1, HEAD_PAD), -1e30, jnp.float32).at[:, :CLASSES].set(p["head_b"])

    return {
        "patch_w": p["patch_w"], "tok_bias": tokb,
        "ln1_g": p["ln1_g"], "ln1_b": p["ln1_b"],
        "wqkv": wqkv_r, "bqkv": bqkv_r, "wo": wo_r, "bo": p["bo"],
        "ln2_g": p["ln2_g"], "ln2_b": p["ln2_b"],
        "w1": p["w1"], "b1": p["b1"], "w2": p["w2"], "b2": p["b2"],
        "ln_g": p["ln_g"], "ln_b": p["ln_b"],
        "head_w": head_w, "head_b": head_b,
    }


if __name__ == "__main__":
    key = jax.random.PRNGKey(0)
    k_x, k_p = jax.random.split(key)
    x = jax.random.normal(k_x, (B, C, IMG, IMG), dtype=jnp.float32)
    kparams = prepare_params(init_params(k_p))    # one-time, outside the fwd

    fwd = jax.jit(vit_embeddings_forward)
    probs, embds = jax.block_until_ready(fwd(x, kparams))

    assert probs.shape == (B, CLASSES)
    assert embds.shape == (B, D)
    assert bool(jnp.all(jnp.isfinite(probs))) and bool(jnp.all(jnp.isfinite(embds)))
    # head softmax rows sum to 1 (padded classes contribute exactly 0)
    assert bool(jnp.allclose(jnp.sum(probs, axis=1), 1.0, atol=1e-5))
    print("KERNEL_OK")
</pallas_src>

<mosaic_0001>
module attributes {stable_mosaic.version = 11 : i64} {
  func.func @vit_fused_kernel(%arg0: i32, %arg1: memref<1x4x192xf32, #tpu.memory_space<vmem>>, %arg2: memref<192x64xf32, #tpu.memory_space<vmem>>, %arg3: memref<5x64xf32, #tpu.memory_space<vmem>>, %arg4: memref<2x1x64xf32, #tpu.memory_space<vmem>>, %arg5: memref<2x1x64xf32, #tpu.memory_space<vmem>>, %arg6: memref<2x12x64x16xf32, #tpu.memory_space<vmem>>, %arg7: memref<2x12x1x16xf32, #tpu.memory_space<vmem>>, %arg8: memref<2x4x16x64xf32, #tpu.memory_space<vmem>>, %arg9: memref<2x1x64xf32, #tpu.memory_space<vmem>>, %arg10: memref<2x1x64xf32, #tpu.memory_space<vmem>>, %arg11: memref<2x1x64xf32, #tpu.memory_space<vmem>>, %arg12: memref<2x64x128xf32, #tpu.memory_space<vmem>>, %arg13: memref<2x1x128xf32, #tpu.memory_space<vmem>>, %arg14: memref<2x128x64xf32, #tpu.memory_space<vmem>>, %arg15: memref<2x1x64xf32, #tpu.memory_space<vmem>>, %arg16: memref<1x64xf32, #tpu.memory_space<vmem>>, %arg17: memref<1x64xf32, #tpu.memory_space<vmem>>, %arg18: memref<64x128xf32, #tpu.memory_space<vmem>>, %arg19: memref<1x128xf32, #tpu.memory_space<vmem>>, %arg20: memref<1x1x128xf32, #tpu.memory_space<vmem>>, %arg21: memref<1x1x64xf32, #tpu.memory_space<vmem>>, %arg22: memref<5x64xf32, #tpu.memory_space<vmem>>) attributes {dimension_semantics = [#tpu.dimension_semantics<parallel>], iteration_bounds = array<i64: 2>, scalar_prefetch = 0 : i64, scratch_operands = 1 : i64, tpu.core_type = #tpu.core_type<tc>, window_params = [{transform_indices = @transform_0, window_bounds = array<i64: 1, 4, 192>}, {pipeline_mode = #tpu.pipeline_mode<synchronous>, transform_indices = @transform_1, window_bounds = array<i64: 192, 64>}, {pipeline_mode = #tpu.pipeline_mode<synchronous>, transform_indices = @transform_2, window_bounds = array<i64: 5, 64>}, {pipeline_mode = #tpu.pipeline_mode<synchronous>, transform_indices = @transform_3, window_bounds = array<i64: 2, 1, 64>}, {pipeline_mode = #tpu.pipeline_mode<synchronous>, transform_indices = @transform_4, window_bounds = array<i64: 2, 1, 64>}, {pipeline_mode = #tpu.pipeline_mode<synchronous>, transform_indices = @transform_5, window_bounds = array<i64: 2, 12, 64, 16>}, {pipeline_mode = #tpu.pipeline_mode<synchronous>, transform_indices = @transform_6, window_bounds = array<i64: 2, 12, 1, 16>}, {pipeline_mode = #tpu.pipeline_mode<synchronous>, transform_indices = @transform_7, window_bounds = array<i64: 2, 4, 16, 64>}, {pipeline_mode = #tpu.pipeline_mode<synchronous>, transform_indices = @transform_8, window_bounds = array<i64: 2, 1, 64>}, {pipeline_mode = #tpu.pipeline_mode<synchronous>, transform_indices = @transform_9, window_bounds = array<i64: 2, 1, 64>}, {pipeline_mode = #tpu.pipeline_mode<synchronous>, transform_indices = @transform_10, window_bounds = array<i64: 2, 1, 64>}, {pipeline_mode = #tpu.pipeline_mode<synchronous>, transform_indices = @transform_11, window_bounds = array<i64: 2, 64, 128>}, {pipeline_mode = #tpu.pipeline_mode<synchronous>, transform_indices = @transform_12, window_bounds = array<i64: 2, 1, 128>}, {pipeline_mode = #tpu.pipeline_mode<synchronous>, transform_indices = @transform_13, window_bounds = array<i64: 2, 128, 64>}, {pipeline_mode = #tpu.pipeline_mode<synchronous>, transform_indices = @transform_14, window_bounds = array<i64: 2, 1, 64>}, {pipeline_mode = #tpu.pipeline_mode<synchronous>, transform_indices = @transform_15, window_bounds = array<i64: 1, 64>}, {pipeline_mode = #tpu.pipeline_mode<synchronous>, transform_indices = @transform_16, window_bounds = array<i64: 1, 64>}, {pipeline_mode = #tpu.pipeline_mode<synchronous>, transform_indices = @transform_17, window_bounds = array<i64: 64, 128>}, {pipeline_mode = #tpu.pipeline_mode<synchronous>, transform_indices = @transform_18, window_bounds = array<i64: 1, 128>}, {transform_indices = @transform_19, window_bounds = array<i64: 1, 1, 128>}, {transform_indices = @transform_20, window_bounds = array<i64: 1, 1, 64>}]} {
    %c0 = arith.constant 0 : index
    %c0_0 = arith.constant 0 : index
    %0 = vector.load %arg3[%c0, %c0_0] : memref<5x64xf32, #tpu.memory_space<vmem>>, vector<5x64xf32>
    %c0_1 = arith.constant 0 : index
    %c0_2 = arith.constant 0 : index
    %1 = vector.load %arg22[%c0_1, %c0_2] : memref<5x64xf32, #tpu.memory_space<vmem>>, vector<5x64xf32>
    tpu.vector_store %arg22[%c0_1, %c0_2], %0 {strides = array<i32>} : memref<5x64xf32, #tpu.memory_space<vmem>>, vector<5x64xf32>,
    %c1 = arith.constant 1 : index
    %c0_3 = arith.constant 0 : index
    %2 = vector.load %arg22[%c1, %c0_3] : memref<5x64xf32, #tpu.memory_space<vmem>>, vector<4x64xf32>
    %c0_4 = arith.constant 0 : index
    %c0_5 = arith.constant 0 : index
    %c0_6 = arith.constant 0 : index
    %3 = vector.load %arg1[%c0_4, %c0_5, %c0_6] : memref<1x4x192xf32, #tpu.memory_space<vmem>>, vector<1x4x192xf32>
    %4 = vector.shape_cast %3 : vector<1x4x192xf32> to vector<4x192xf32>
    %c0_7 = arith.constant 0 : index
    %c0_8 = arith.constant 0 : index
    %5 = vector.load %arg2[%c0_7, %c0_8] : memref<192x64xf32, #tpu.memory_space<vmem>>, vector<192x64xf32>
    %cst = arith.constant dense<0.000000e+00> : vector<4x64xf32>
    %6 = tpu.matmul %4, %5, %cst {dimension_numbers = #tpu.dot_dimension_numbers<[1], [0], [0], [1], [0, 0, 1, 1], [], []>} : vector<4x192xf32>, vector<192x64xf32>, vector<4x64xf32> -> vector<4x64xf32>
    %7 = arith.addf %2, %6 : vector<4x64xf32>
    %c1_9 = arith.constant 1 : index
    %c0_10 = arith.constant 0 : index
    %8 = vector.load %arg22[%c1_9, %c0_10] : memref<5x64xf32, #tpu.memory_space<vmem>>, vector<4x64xf32>
    tpu.vector_store %arg22[%c1_9, %c0_10], %7 {strides = array<i32>} : memref<5x64xf32, #tpu.memory_space<vmem>>, vector<4x64xf32>,
    %c0_11 = arith.constant 0 : index
    %c0_12 = arith.constant 0 : index
    %9 = vector.load %arg22[%c0_11, %c0_12] : memref<5x64xf32, #tpu.memory_space<vmem>>, vector<5x64xf32>
    %c0_13 = arith.constant 0 : index
    %c0_14 = arith.constant 0 : index
    %c0_15 = arith.constant 0 : index
    %10 = vector.load %arg4[%c0_13, %c0_14, %c0_15] : memref<2x1x64xf32, #tpu.memory_space<vmem>>, vector<1x1x64xf32>
    %11 = vector.shape_cast %10 : vector<1x1x64xf32> to vector<1x64xf32>
    %c0_16 = arith.constant 0 : index
    %c0_17 = arith.constant 0 : index
    %c0_18 = arith.constant 0 : index
    %12 = vector.load %arg5[%c0_16, %c0_17, %c0_18] : memref<2x1x64xf32, #tpu.memory_space<vmem>>, vector<1x1x64xf32>
    %13 = vector.shape_cast %12 : vector<1x1x64xf32> to vector<1x64xf32>
    %cst_19 = arith.constant dense<0.000000e+00> : vector<5xf32>
    %14 = vector.multi_reduction <add>, %9, %cst_19 [1] : vector<5x64xf32> to vector<5xf32>
    %15 = vector.shape_cast %14 : vector<5xf32> to vector<5x1xf32>
    %cst_20 = arith.constant 6.400000e+01 : f32
    %16 = vector.broadcast %cst_20 : f32 to vector<5x1xf32>
    %17 = arith.divf %15, %16 : vector<5x1xf32>
    %18 = vector.broadcast %17 : vector<5x1xf32> to vector<5x64xf32>
    %19 = arith.subf %9, %18 : vector<5x64xf32>
    %20 = arith.mulf %19, %19 : vector<5x64xf32>
    %cst_21 = arith.constant dense<0.000000e+00> : vector<5xf32>
    %21 = vector.multi_reduction <add>, %20, %cst_21 [1] : vector<5x64xf32> to vector<5xf32>
    %22 = vector.shape_cast %21 : vector<5xf32> to vector<5x1xf32>
    %cst_22 = arith.constant 6.400000e+01 : f32
    %23 = vector.broadcast %cst_22 : f32 to vector<5x1xf32>
    %24 = arith.divf %22, %23 : vector<5x1xf32>
    %25 = vector.broadcast %17 : vector<5x1xf32> to vector<5x64xf32>
    %26 = arith.subf %9, %25 : vector<5x64xf32>
    %cst_23 = arith.constant 9.99999997E-7 : f32
    %27 = vector.broadcast %cst_23 : f32 to vector<5x1xf32>
    %28 = arith.addf %24, %27 : vector<5x1xf32>
    %29 = math.rsqrt %28 : vector<5x1xf32>
    %30 = vector.broadcast %29 : vector<5x1xf32> to vector<5x64xf32>
    %31 = arith.mulf %26, %30 : vector<5x64xf32>
    %32 = vector.broadcast %11 : vector<1x64xf32> to vector<5x64xf32>
    %33 = arith.mulf %31, %32 : vector<5x64xf32>
    %34 = vector.broadcast %13 : vector<1x64xf32> to vector<5x64xf32>
    %35 = arith.addf %33, %34 : vector<5x64xf32>
    %36 = vector.shape_cast %35 : vector<5x64xf32> to vector<1x5x64xf32>
    %37 = vector.broadcast %36 : vector<1x5x64xf32> to vector<12x5x64xf32>
    %c0_24 = arith.constant 0 : index
    %c0_25 = arith.constant 0 : index
    %c0_26 = arith.constant 0 : index
    %c0_27 = arith.constant 0 : index
    %38 = vector.load %arg6[%c0_24, %c0_25, %c0_26, %c0_27] : memref<2x12x64x16xf32, #tpu.memory_space<vmem>>, vector<1x12x64x16xf32>
    %39 = vector.shape_cast %38 : vector<1x12x64x16xf32> to vector<12x64x16xf32>
    "tpu.trace_start"() <{level = 10 : i32, message = "hsd,hde->hse"}> : () -> ()
    %cst_28 = arith.constant dense<0.000000e+00> : vector<12x5x16xf32>
    %40 = tpu.matmul %37, %39, %cst_28 {dimension_numbers = #tpu.dot_dimension_numbers<[2], [1], [1], [2], [0, 0, 0, 1, 1, 2], [0], [0]>} : vector<12x5x64xf32>, vector<12x64x16xf32>, vector<12x5x16xf32> -> vector<12x5x16xf32>
    "tpu.trace_stop"() : () -> ()
    %c0_29 = arith.constant 0 : index
    %c0_30 = arith.constant 0 : index
    %c0_31 = arith.constant 0 : index
    %c0_32 = arith.constant 0 : index
    %41 = vector.load %arg7[%c0_29, %c0_30, %c0_31, %c0_32] : memref<2x12x1x16xf32, #tpu.memory_space<vmem>>, vector<1x12x1x16xf32>
    %42 = vector.shape_cast %41 : vector<1x12x1x16xf32> to vector<12x1x16xf32>
    %43 = vector.broadcast %42 : vector<12x1x16xf32> to vector<12x5x16xf32>
    %44 = arith.addf %40, %43 : vector<12x5x16xf32>
    %45 = vector.extract_strided_slice %44 {offsets = [0, 0, 0], sizes = [4, 5, 16], strides = [1, 1, 1]} : vector<12x5x16xf32> to vector<4x5x16xf32>
    %46 = vector.extract_strided_slice %44 {offsets = [4, 0, 0], sizes = [4, 5, 16], strides = [1, 1, 1]} : vector<12x5x16xf32> to vector<4x5x16xf32>
    %47 = vector.extract_strided_slice %44 {offsets = [8, 0, 0], sizes = [4, 5, 16], strides = [1, 1, 1]} : vector<12x5x16xf32> to vector<4x5x16xf32>
    "tpu.trace_start"() <{level = 10 : i32, message = "hqd,hkd->hqk"}> : () -> ()
    %cst_33 = arith.constant dense<0.000000e+00> : vector<4x5x5xf32>
    %48 = tpu.matmul %45, %46, %cst_33 {dimension_numbers = #tpu.dot_dimension_numbers<[2], [2], [1], [1], [0, 0, 0, 1, 1, 1], [0], [0]>} : vector<4x5x16xf32>, vector<4x5x16xf32>, vector<4x5x5xf32> -> vector<4x5x5xf32>
    "tpu.trace_stop"() : () -> ()
    %cst_34 = arith.constant dense<0xFF800000> : vector<4x5xf32>
    %49 = vector.multi_reduction <maximumf>, %48, %cst_34 [2] : vector<4x5x5xf32> to vector<4x5xf32>
    %50 = vector.shape_cast %49 : vector<4x5xf32> to vector<4x5x1xf32>
    %51 = vector.broadcast %50 : vector<4x5x1xf32> to vector<4x5x5xf32>
    %52 = arith.subf %48, %51 : vector<4x5x5xf32>
    %53 = math.exp %52 : vector<4x5x5xf32>
    %cst_35 = arith.constant dense<0.000000e+00> : vector<4x5xf32>
    %54 = vector.multi_reduction <add>, %53, %cst_35 [2] : vector<4x5x5xf32> to vector<4x5xf32>
    %55 = vector.shape_cast %54 : vector<4x5xf32> to vector<4x5x1xf32>
    %56 = tpu.reciprocal %55 {approx = true} : vector<4x5x1xf32> -> vector<4x5x1xf32>
    %57 = vector.broadcast %56 : vector<4x5x1xf32> to vector<4x5x5xf32>
    %58 = arith.mulf %53, %57 : vector<4x5x5xf32>
    "tpu.trace_start"() <{level = 10 : i32, message = "hqk,hkd->hqd"}> : () -> ()
    %cst_36 = arith.constant dense<0.000000e+00> : vector<4x5x16xf32>
    %59 = tpu.matmul %58, %47, %cst_36 {dimension_numbers = #tpu.dot_dimension_numbers<[2], [1], [1], [2], [0, 0, 0, 1, 1, 2], [0], [0]>} : vector<4x5x5xf32>, vector<4x5x16xf32>, vector<4x5x16xf32> -> vector<4x5x16xf32>
    "tpu.trace_stop"() : () -> ()
    %c0_37 = arith.constant 0 : index
    %c0_38 = arith.constant 0 : index
    %c0_39 = arith.constant 0 : index
    %c0_40 = arith.constant 0 : index
    %60 = vector.load %arg8[%c0_37, %c0_38, %c0_39, %c0_40] : memref<2x4x16x64xf32, #tpu.memory_space<vmem>>, vector<1x4x16x64xf32>
    %61 = vector.shape_cast %60 : vector<1x4x16x64xf32> to vector<4x16x64xf32>
    "tpu.trace_start"() <{level = 10 : i32, message = "hqd,hde->hqe"}> : () -> ()
    %cst_41 = arith.constant dense<0.000000e+00> : vector<4x5x64xf32>
    %62 = tpu.matmul %59, %61, %cst_41 {dimension_numbers = #tpu.dot_dimension_numbers<[2], [1], [1], [2], [0, 0, 0, 1, 1, 2], [0], [0]>} : vector<4x5x16xf32>, vector<4x16x64xf32>, vector<4x5x64xf32> -> vector<4x5x64xf32>
    "tpu.trace_stop"() : () -> ()
    %cst_42 = arith.constant dense<0.000000e+00> : vector<5x64xf32>
    %63 = vector.multi_reduction <add>, %62, %cst_42 [0] : vector<4x5x64xf32> to vector<5x64xf32>
    %64 = arith.addf %9, %63 : vector<5x64xf32>
    %c0_43 = arith.constant 0 : index
    %c0_44 = arith.constant 0 : index
    %c0_45 = arith.constant 0 : index
    %65 = vector.load %arg9[%c0_43, %c0_44, %c0_45] : memref<2x1x64xf32, #tpu.memory_space<vmem>>, vector<1x1x64xf32>
    %66 = vector.shape_cast %65 : vector<1x1x64xf32> to vector<1x64xf32>
    %67 = vector.broadcast %66 : vector<1x64xf32> to vector<5x64xf32>
    %68 = arith.addf %64, %67 : vector<5x64xf32>
    %c0_46 = arith.constant 0 : index
    %c0_47 = arith.constant 0 : index
    %c0_48 = arith.constant 0 : index
    %69 = vector.load %arg10[%c0_46, %c0_47, %c0_48] : memref<2x1x64xf32, #tpu.memory_space<vmem>>, vector<1x1x64xf32>
    %70 = vector.shape_cast %69 : vector<1x1x64xf32> to vector<1x64xf32>
    %c0_49 = arith.constant 0 : index
    %c0_50 = arith.constant 0 : index
    %c0_51 = arith.constant 0 : index
    %71 = vector.load %arg11[%c0_49, %c0_50, %c0_51] : memref<2x1x64xf32, #tpu.memory_space<vmem>>, vector<1x1x64xf32>
    %72 = vector.shape_cast %71 : vector<1x1x64xf32> to vector<1x64xf32>
    %cst_52 = arith.constant dense<0.000000e+00> : vector<5xf32>
    %73 = vector.multi_reduction <add>, %68, %cst_52 [1] : vector<5x64xf32> to vector<5xf32>
    %74 = vector.shape_cast %73 : vector<5xf32> to vector<5x1xf32>
    %cst_53 = arith.constant 6.400000e+01 : f32
    %75 = vector.broadcast %cst_53 : f32 to vector<5x1xf32>
    %76 = arith.divf %74, %75 : vector<5x1xf32>
    %77 = vector.broadcast %76 : vector<5x1xf32> to vector<5x64xf32>
    %78 = arith.subf %68, %77 : vector<5x64xf32>
    %79 = arith.mulf %78, %78 : vector<5x64xf32>
    %cst_54 = arith.constant dense<0.000000e+00> : vector<5xf32>
    %80 = vector.multi_reduction <add>, %79, %cst_54 [1] : vector<5x64xf32> to vector<5xf32>
    %81 = vector.shape_cast %80 : vector<5xf32> to vector<5x1xf32>
    %cst_55 = arith.constant 6.400000e+01 : f32
    %82 = vector.broadcast %cst_55 : f32 to vector<5x1xf32>
    %83 = arith.divf %81, %82 : vector<5x1xf32>
    %84 = vector.broadcast %76 : vector<5x1xf32> to vector<5x64xf32>
    %85 = arith.subf %68, %84 : vector<5x64xf32>
    %cst_56 = arith.constant 9.99999997E-7 : f32
    %86 = vector.broadcast %cst_56 : f32 to vector<5x1xf32>
    %87 = arith.addf %83, %86 : vector<5x1xf32>
    %88 = math.rsqrt %87 : vector<5x1xf32>
    %89 = vector.broadcast %88 : vector<5x1xf32> to vector<5x64xf32>
    %90 = arith.mulf %85, %89 : vector<5x64xf32>
    %91 = vector.broadcast %70 : vector<1x64xf32> to vector<5x64xf32>
    %92 = arith.mulf %90, %91 : vector<5x64xf32>
    %93 = vector.broadcast %72 : vector<1x64xf32> to vector<5x64xf32>
    %94 = arith.addf %92, %93 : vector<5x64xf32>
    %c0_57 = arith.constant 0 : index
    %c0_58 = arith.constant 0 : index
    %c0_59 = arith.constant 0 : index
    %95 = vector.load %arg12[%c0_57, %c0_58, %c0_59] : memref<2x64x128xf32, #tpu.memory_space<vmem>>, vector<1x64x128xf32>
    %96 = vector.shape_cast %95 : vector<1x64x128xf32> to vector<64x128xf32>
    %cst_60 = arith.constant dense<0.000000e+00> : vector<5x128xf32>
    %97 = tpu.matmul %94, %96, %cst_60 {dimension_numbers = #tpu.dot_dimension_numbers<[1], [0], [0], [1], [0, 0, 1, 1], [], []>} : vector<5x64xf32>, vector<64x128xf32>, vector<5x128xf32> -> vector<5x128xf32>
    %c0_61 = arith.constant 0 : index
    %c0_62 = arith.constant 0 : index
    %c0_63 = arith.constant 0 : index
    %98 = vector.load %arg13[%c0_61, %c0_62, %c0_63] : memref<2x1x128xf32, #tpu.memory_space<vmem>>, vector<1x1x128xf32>
    %99 = vector.shape_cast %98 : vector<1x1x128xf32> to vector<1x128xf32>
    %100 = vector.broadcast %99 : vector<1x128xf32> to vector<5x128xf32>
    %101 = arith.addf %97, %100 : vector<5x128xf32>
    %102 = arith.mulf %101, %101 : vector<5x128xf32>
    %103 = arith.mulf %101, %102 : vector<5x128xf32>
    %cst_64 = arith.constant 4.471500e-02 : f32
    %104 = vector.broadcast %cst_64 : f32 to vector<5x128xf32>
    %105 = arith.mulf %104, %103 : vector<5x128xf32>
    %106 = arith.addf %101, %105 : vector<5x128xf32>
    %cst_65 = arith.constant 0.797884583 : f32
    %107 = vector.broadcast %cst_65 : f32 to vector<5x128xf32>
    %108 = arith.mulf %107, %106 : vector<5x128xf32>
    %109 = math.tanh %108 : vector<5x128xf32>
    %cst_66 = arith.constant 1.000000e+00 : f32
    %110 = vector.broadcast %cst_66 : f32 to vector<5x128xf32>
    %111 = arith.addf %110, %109 : vector<5x128xf32>
    %cst_67 = arith.constant 5.000000e-01 : f32
    %112 = vector.broadcast %cst_67 : f32 to vector<5x128xf32>
    %113 = arith.mulf %112, %111 : vector<5x128xf32>
    %114 = arith.mulf %101, %113 : vector<5x128xf32>
    %c0_68 = arith.constant 0 : index
    %c0_69 = arith.constant 0 : index
    %c0_70 = arith.constant 0 : index
    %115 = vector.load %arg14[%c0_68, %c0_69, %c0_70] : memref<2x128x64xf32, #tpu.memory_space<vmem>>, vector<1x128x64xf32>
    %116 = vector.shape_cast %115 : vector<1x128x64xf32> to vector<128x64xf32>
    %cst_71 = arith.constant dense<0.000000e+00> : vector<5x64xf32>
    %117 = tpu.matmul %114, %116, %cst_71 {dimension_numbers = #tpu.dot_dimension_numbers<[1], [0], [0], [1], [0, 0, 1, 1], [], []>} : vector<5x128xf32>, vector<128x64xf32>, vector<5x64xf32> -> vector<5x64xf32>
    %c0_72 = arith.constant 0 : index
    %c0_73 = arith.constant 0 : index
    %c0_74 = arith.constant 0 : index
    %118 = vector.load %arg15[%c0_72, %c0_73, %c0_74] : memref<2x1x64xf32, #tpu.memory_space<vmem>>, vector<1x1x64xf32>
    %119 = vector.shape_cast %118 : vector<1x1x64xf32> to vector<1x64xf32>
    %120 = vector.broadcast %119 : vector<1x64xf32> to vector<5x64xf32>
    %121 = arith.addf %117, %120 : vector<5x64xf32>
    %122 = arith.addf %68, %121 : vector<5x64xf32>
    %c1_75 = arith.constant 1 : index
    %c0_76 = arith.constant 0 : index
    %c0_77 = arith.constant 0 : index
    %123 = vector.load %arg4[%c1_75, %c0_76, %c0_77] : memref<2x1x64xf32, #tpu.memory_space<vmem>>, vector<1x1x64xf32>
    %124 = vector.shape_cast %123 : vector<1x1x64xf32> to vector<1x64xf32>
    %c1_78 = arith.constant 1 : index
    %c0_79 = arith.constant 0 : index
    %c0_80 = arith.constant 0 : index
    %125 = vector.load %arg5[%c1_78, %c0_79, %c0_80] : memref<2x1x64xf32, #tpu.memory_space<vmem>>, vector<1x1x64xf32>
    %126 = vector.shape_cast %125 : vector<1x1x64xf32> to vector<1x64xf32>
    %cst_81 = arith.constant dense<0.000000e+00> : vector<5xf32>
    %127 = vector.multi_reduction <add>, %122, %cst_81 [1] : vector<5x64xf32> to vector<5xf32>
    %128 = vector.shape_cast %127 : vector<5xf32> to vector<5x1xf32>
    %cst_82 = arith.constant 6.400000e+01 : f32
    %129 = vector.broadcast %cst_82 : f32 to vector<5x1xf32>
    %130 = arith.divf %128, %129 : vector<5x1xf32>
    %131 = vector.broadcast %130 : vector<5x1xf32> to vector<5x64xf32>
    %132 = arith.subf %122, %131 : vector<5x64xf32>
    %133 = arith.mulf %132, %132 : vector<5x64xf32>
    %cst_83 = arith.constant dense<0.000000e+00> : vector<5xf32>
    %134 = vector.multi_reduction <add>, %133, %cst_83 [1] : vector<5x64xf32> to vector<5xf32>
    %135 = vector.shape_cast %134 : vector<5xf32> to vector<5x1xf32>
    %cst_84 = arith.constant 6.400000e+01 : f32
    %136 = vector.broadcast %cst_84 : f32 to vector<5x1xf32>
    %137 = arith.divf %135, %136 : vector<5x1xf32>
    %138 = vector.broadcast %130 : vector<5x1xf32> to vector<5x64xf32>
    %139 = arith.subf %122, %138 : vector<5x64xf32>
    %cst_85 = arith.constant 9.99999997E-7 : f32
    %140 = vector.broadcast %cst_85 : f32 to vector<5x1xf32>
    %141 = arith.addf %137, %140 : vector<5x1xf32>
    %142 = math.rsqrt %141 : vector<5x1xf32>
    %143 = vector.broadcast %142 : vector<5x1xf32> to vector<5x64xf32>
    %144 = arith.mulf %139, %143 : vector<5x64xf32>
    %145 = vector.broadcast %124 : vector<1x64xf32> to vector<5x64xf32>
    %146 = arith.mulf %144, %145 : vector<5x64xf32>
    %147 = vector.broadcast %126 : vector<1x64xf32> to vector<5x64xf32>
    %148 = arith.addf %146, %147 : vector<5x64xf32>
    %149 = vector.shape_cast %148 : vector<5x64xf32> to vector<1x5x64xf32>
    %150 = vector.broadcast %149 : vector<1x5x64xf32> to vector<12x5x64xf32>
    %c1_86 = arith.constant 1 : index
    %c0_87 = arith.constant 0 : index
    %c0_88 = arith.constant 0 : index
    %c0_89 = arith.constant 0 : index
    %151 = vector.load %arg6[%c1_86, %c0_87, %c0_88, %c0_89] : memref<2x12x64x16xf32, #tpu.memory_space<vmem>>, vector<1x12x64x16xf32>
    %152 = vector.shape_cast %151 : vector<1x12x64x16xf32> to vector<12x64x16xf32>
    "tpu.trace_start"() <{level = 10 : i32, message = "hsd,hde->hse"}> : () -> ()
    %cst_90 = arith.constant dense<0.000000e+00> : vector<12x5x16xf32>
    %153 = tpu.matmul %150, %152, %cst_90 {dimension_numbers = #tpu.dot_dimension_numbers<[2], [1], [1], [2], [0, 0, 0, 1, 1, 2], [0], [0]>} : vector<12x5x64xf32>, vector<12x64x16xf32>, vector<12x5x16xf32> -> vector<12x5x16xf32>
    "tpu.trace_stop"() : () -> ()
    %c1_91 = arith.constant 1 : index
    %c0_92 = arith.constant 0 : index
    %c0_93 = arith.constant 0 : index
    %c0_94 = arith.constant 0 : index
    %154 = vector.load %arg7[%c1_91, %c0_92, %c0_93, %c0_94] : memref<2x12x1x16xf32, #tpu.memory_space<vmem>>, vector<1x12x1x16xf32>
    %155 = vector.shape_cast %154 : vector<1x12x1x16xf32> to vector<12x1x16xf32>
    %156 = vector.broadcast %155 : vector<12x1x16xf32> to vector<12x5x16xf32>
    %157 = arith.addf %153, %156 : vector<12x5x16xf32>
    %158 = vector.extract_strided_slice %157 {offsets = [0, 0, 0], sizes = [4, 5, 16], strides = [1, 1, 1]} : vector<12x5x16xf32> to vector<4x5x16xf32>
    %159 = vector.extract_strided_slice %157 {offsets = [4, 0, 0], sizes = [4, 5, 16], strides = [1, 1, 1]} : vector<12x5x16xf32> to vector<4x5x16xf32>
    %160 = vector.extract_strided_slice %157 {offsets = [8, 0, 0], sizes = [4, 5, 16], strides = [1, 1, 1]} : vector<12x5x16xf32> to vector<4x5x16xf32>
    "tpu.trace_start"() <{level = 10 : i32, message = "hqd,hkd->hqk"}> : () -> ()
    %cst_95 = arith.constant dense<0.000000e+00> : vector<4x5x5xf32>
    %161 = tpu.matmul %158, %159, %cst_95 {dimension_numbers = #tpu.dot_dimension_numbers<[2], [2], [1], [1], [0, 0, 0, 1, 1, 1], [0], [0]>} : vector<4x5x16xf32>, vector<4x5x16xf32>, vector<4x5x5xf32> -> vector<4x5x5xf32>
    "tpu.trace_stop"() : () -> ()
    %cst_96 = arith.constant dense<0xFF800000> : vector<4x5xf32>
    %162 = vector.multi_reduction <maximumf>, %161, %cst_96 [2] : vector<4x5x5xf32> to vector<4x5xf32>
    %163 = vector.shape_cast %162 : vector<4x5xf32> to vector<4x5x1xf32>
    %164 = vector.broadcast %163 : vector<4x5x1xf32> to vector<4x5x5xf32>
    %165 = arith.subf %161, %164 : vector<4x5x5xf32>
    %166 = math.exp %165 : vector<4x5x5xf32>
    %cst_97 = arith.constant dense<0.000000e+00> : vector<4x5xf32>
    %167 = vector.multi_reduction <add>, %166, %cst_97 [2] : vector<4x5x5xf32> to vector<4x5xf32>
    %168 = vector.shape_cast %167 : vector<4x5xf32> to vector<4x5x1xf32>
    %169 = tpu.reciprocal %168 {approx = true} : vector<4x5x1xf32> -> vector<4x5x1xf32>
    %170 = vector.broadcast %169 : vector<4x5x1xf32> to vector<4x5x5xf32>
    %171 = arith.mulf %166, %170 : vector<4x5x5xf32>
    "tpu.trace_start"() <{level = 10 : i32, message = "hqk,hkd->hqd"}> : () -> ()
    %cst_98 = arith.constant dense<0.000000e+00> : vector<4x5x16xf32>
    %172 = tpu.matmul %171, %160, %cst_98 {dimension_numbers = #tpu.dot_dimension_numbers<[2], [1], [1], [2], [0, 0, 0, 1, 1, 2], [0], [0]>} : vector<4x5x5xf32>, vector<4x5x16xf32>, vector<4x5x16xf32> -> vector<4x5x16xf32>
    "tpu.trace_stop"() : () -> ()
    %c1_99 = arith.constant 1 : index
    %c0_100 = arith.constant 0 : index
    %c0_101 = arith.constant 0 : index
    %c0_102 = arith.constant 0 : index
    %173 = vector.load %arg8[%c1_99, %c0_100, %c0_101, %c0_102] : memref<2x4x16x64xf32, #tpu.memory_space<vmem>>, vector<1x4x16x64xf32>
    %174 = vector.shape_cast %173 : vector<1x4x16x64xf32> to vector<4x16x64xf32>
    "tpu.trace_start"() <{level = 10 : i32, message = "hqd,hde->hqe"}> : () -> ()
    %cst_103 = arith.constant dense<0.000000e+00> : vector<4x5x64xf32>
    %175 = tpu.matmul %172, %174, %cst_103 {dimension_numbers = #tpu.dot_dimension_numbers<[2], [1], [1], [2], [0, 0, 0, 1, 1, 2], [0], [0]>} : vector<4x5x16xf32>, vector<4x16x64xf32>, vector<4x5x64xf32> -> vector<4x5x64xf32>
    "tpu.trace_stop"() : () -> ()
    %cst_104 = arith.constant dense<0.000000e+00> : vector<5x64xf32>
    %176 = vector.multi_reduction <add>, %175, %cst_104 [0] : vector<4x5x64xf32> to vector<5x64xf32>
    %177 = arith.addf %122, %176 : vector<5x64xf32>
    %c1_105 = arith.constant 1 : index
    %c0_106 = arith.constant 0 : index
    %c0_107 = arith.constant 0 : index
    %178 = vector.load %arg9[%c1_105, %c0_106, %c0_107] : memref<2x1x64xf32, #tpu.memory_space<vmem>>, vector<1x1x64xf32>
    %179 = vector.shape_cast %178 : vector<1x1x64xf32> to vector<1x64xf32>
    %180 = vector.broadcast %179 : vector<1x64xf32> to vector<5x64xf32>
    %181 = arith.addf %177, %180 : vector<5x64xf32>
    %c1_108 = arith.constant 1 : index
    %c0_109 = arith.constant 0 : index
    %c0_110 = arith.constant 0 : index
    %182 = vector.load %arg10[%c1_108, %c0_109, %c0_110] : memref<2x1x64xf32, #tpu.memory_space<vmem>>, vector<1x1x64xf32>
    %183 = vector.shape_cast %182 : vector<1x1x64xf32> to vector<1x64xf32>
    %c1_111 = arith.constant 1 : index
    %c0_112 = arith.constant 0 : index
    %c0_113 = arith.constant 0 : index
    %184 = vector.load %arg11[%c1_111, %c0_112, %c0_113] : memref<2x1x64xf32, #tpu.memory_space<vmem>>, vector<1x1x64xf32>
    %185 = vector.shape_cast %184 : vector<1x1x64xf32> to vector<1x64xf32>
    %cst_114 = arith.constant dense<0.000000e+00> : vector<5xf32>
    %186 = vector.multi_reduction <add>, %181, %cst_114 [1] : vector<5x64xf32> to vector<5xf32>
    %187 = vector.shape_cast %186 : vector<5xf32> to vector<5x1xf32>
    %cst_115 = arith.constant 6.400000e+01 : f32
    %188 = vector.broadcast %cst_115 : f32 to vector<5x1xf32>
    %189 = arith.divf %187, %188 : vector<5x1xf32>
    %190 = vector.broadcast %189 : vector<5x1xf32> to vector<5x64xf32>
    %191 = arith.subf %181, %190 : vector<5x64xf32>
    %192 = arith.mulf %191, %191 : vector<5x64xf32>
    %cst_116 = arith.constant dense<0.000000e+00> : vector<5xf32>
    %193 = vector.multi_reduction <add>, %192, %cst_116 [1] : vector<5x64xf32> to vector<5xf32>
    %194 = vector.shape_cast %193 : vector<5xf32> to vector<5x1xf32>
    %cst_117 = arith.constant 6.400000e+01 : f32
    %195 = vector.broadcast %cst_117 : f32 to vector<5x1xf32>
    %196 = arith.divf %194, %195 : vector<5x1xf32>
    %197 = vector.broadcast %189 : vector<5x1xf32> to vector<5x64xf32>
    %198 = arith.subf %181, %197 : vector<5x64xf32>
    %cst_118 = arith.constant 9.99999997E-7 : f32
    %199 = vector.broadcast %cst_118 : f32 to vector<5x1xf32>
    %200 = arith.addf %196, %199 : vector<5x1xf32>
    %201 = math.rsqrt %200 : vector<5x1xf32>
    %202 = vector.broadcast %201 : vector<5x1xf32> to vector<5x64xf32>
    %203 = arith.mulf %198, %202 : vector<5x64xf32>
    %204 = vector.broadcast %183 : vector<1x64xf32> to vector<5x64xf32>
    %205 = arith.mulf %203, %204 : vector<5x64xf32>
    %206 = vector.broadcast %185 : vector<1x64xf32> to vector<5x64xf32>
    %207 = arith.addf %205, %206 : vector<5x64xf32>
    %c1_119 = arith.constant 1 : index
    %c0_120 = arith.constant 0 : index
    %c0_121 = arith.constant 0 : index
    %208 = vector.load %arg12[%c1_119, %c0_120, %c0_121] : memref<2x64x128xf32, #tpu.memory_space<vmem>>, vector<1x64x128xf32>
    %209 = vector.shape_cast %208 : vector<1x64x128xf32> to vector<64x128xf32>
    %cst_122 = arith.constant dense<0.000000e+00> : vector<5x128xf32>
    %210 = tpu.matmul %207, %209, %cst_122 {dimension_numbers = #tpu.dot_dimension_numbers<[1], [0], [0], [1], [0, 0, 1, 1], [], []>} : vector<5x64xf32>, vector<64x128xf32>, vector<5x128xf32> -> vector<5x128xf32>
    %c1_123 = arith.constant 1 : index
    %c0_124 = arith.constant 0 : index
    %c0_125 = arith.constant 0 : index
    %211 = vector.load %arg13[%c1_123, %c0_124, %c0_125] : memref<2x1x128xf32, #tpu.memory_space<vmem>>, vector<1x1x128xf32>
    %212 = vector.shape_cast %211 : vector<1x1x128xf32> to vector<1x128xf32>
    %213 = vector.broadcast %212 : vector<1x128xf32> to vector<5x128xf32>
    %214 = arith.addf %210, %213 : vector<5x128xf32>
    %215 = arith.mulf %214, %214 : vector<5x128xf32>
    %216 = arith.mulf %214, %215 : vector<5x128xf32>
    %cst_126 = arith.constant 4.471500e-02 : f32
    %217 = vector.broadcast %cst_126 : f32 to vector<5x128xf32>
    %218 = arith.mulf %217, %216 : vector<5x128xf32>
    %219 = arith.addf %214, %218 : vector<5x128xf32>
    %cst_127 = arith.constant 0.797884583 : f32
    %220 = vector.broadcast %cst_127 : f32 to vector<5x128xf32>
    %221 = arith.mulf %220, %219 : vector<5x128xf32>
    %222 = math.tanh %221 : vector<5x128xf32>
    %cst_128 = arith.constant 1.000000e+00 : f32
    %223 = vector.broadcast %cst_128 : f32 to vector<5x128xf32>
    %224 = arith.addf %223, %222 : vector<5x128xf32>
    %cst_129 = arith.constant 5.000000e-01 : f32
    %225 = vector.broadcast %cst_129 : f32 to vector<5x128xf32>
    %226 = arith.mulf %225, %224 : vector<5x128xf32>
    %227 = arith.mulf %214, %226 : vector<5x128xf32>
    %c1_130 = arith.constant 1 : index
    %c0_131 = arith.constant 0 : index
    %c0_132 = arith.constant 0 : index
    %228 = vector.load %arg14[%c1_130, %c0_131, %c0_132] : memref<2x128x64xf32, #tpu.memory_space<vmem>>, vector<1x128x64xf32>
    %229 = vector.shape_cast %228 : vector<1x128x64xf32> to vector<128x64xf32>
    %cst_133 = arith.constant dense<0.000000e+00> : vector<5x64xf32>
    %230 = tpu.matmul %227, %229, %cst_133 {dimension_numbers = #tpu.dot_dimension_numbers<[1], [0], [0], [1], [0, 0, 1, 1], [], []>} : vector<5x128xf32>, vector<128x64xf32>, vector<5x64xf32> -> vector<5x64xf32>
    %c1_134 = arith.constant 1 : index
    %c0_135 = arith.constant 0 : index
    %c0_136 = arith.constant 0 : index
    %231 = vector.load %arg15[%c1_134, %c0_135, %c0_136] : memref<2x1x64xf32, #tpu.memory_space<vmem>>, vector<1x1x64xf32>
    %232 = vector.shape_cast %231 : vector<1x1x64xf32> to vector<1x64xf32>
    %233 = vector.broadcast %232 : vector<1x64xf32> to vector<5x64xf32>
    %234 = arith.addf %230, %233 : vector<5x64xf32>
    %235 = arith.addf %181, %234 : vector<5x64xf32>
    %236 = vector.extract_strided_slice %235 {offsets = [0, 0], sizes = [1, 64], strides = [1, 1]} : vector<5x64xf32> to vector<1x64xf32>
    %c0_137 = arith.constant 0 : index
    %c0_138 = arith.constant 0 : index
    %237 = vector.load %arg16[%c0_137, %c0_138] : memref<1x64xf32, #tpu.memory_space<vmem>>, vector<1x64xf32>
    %c0_139 = arith.constant 0 : index
    %c0_140 = arith.constant 0 : index
    %238 = vector.load %arg17[%c0_139, %c0_140] : memref<1x64xf32, #tpu.memory_space<vmem>>, vector<1x64xf32>
    %cst_141 = arith.constant dense<0.000000e+00> : vector<1xf32>
    %239 = vector.multi_reduction <add>, %236, %cst_141 [1] : vector<1x64xf32> to vector<1xf32>
    %240 = vector.shape_cast %239 : vector<1xf32> to vector<1x1xf32>
    %cst_142 = arith.constant 6.400000e+01 : f32
    %241 = vector.broadcast %cst_142 : f32 to vector<1x1xf32>
    %242 = arith.divf %240, %241 : vector<1x1xf32>
    %243 = vector.broadcast %242 : vector<1x1xf32> to vector<1x64xf32>
    %244 = arith.subf %236, %243 : vector<1x64xf32>
    %245 = arith.mulf %244, %244 : vector<1x64xf32>
    %cst_143 = arith.constant dense<0.000000e+00> : vector<1xf32>
    %246 = vector.multi_reduction <add>, %245, %cst_143 [1] : vector<1x64xf32> to vector<1xf32>
    %247 = vector.shape_cast %246 : vector<1xf32> to vector<1x1xf32>
    %cst_144 = arith.constant 6.400000e+01 : f32
    %248 = vector.broadcast %cst_144 : f32 to vector<1x1xf32>
    %249 = arith.divf %247, %248 : vector<1x1xf32>
    %250 = vector.broadcast %242 : vector<1x1xf32> to vector<1x64xf32>
    %251 = arith.subf %236, %250 : vector<1x64xf32>
    %cst_145 = arith.constant 9.99999997E-7 : f32
    %252 = vector.broadcast %cst_145 : f32 to vector<1x1xf32>
    %253 = arith.addf %249, %252 : vector<1x1xf32>
    %254 = math.rsqrt %253 : vector<1x1xf32>
    %255 = vector.broadcast %254 : vector<1x1xf32> to vector<1x64xf32>
    %256 = arith.mulf %251, %255 : vector<1x64xf32>
    %257 = arith.mulf %256, %237 : vector<1x64xf32>
    %258 = arith.addf %257, %238 : vector<1x64xf32>
    %c0_146 = arith.constant 0 : index
    %c0_147 = arith.constant 0 : index
    %c0_148 = arith.constant 0 : index
    %259 = vector.load %arg21[%c0_146, %c0_147, %c0_148] : memref<1x1x64xf32, #tpu.memory_space<vmem>>, vector<1x1x64xf32>
    %260 = vector.shape_cast %259 : vector<1x1x64xf32> to vector<1x64xf32>
    %261 = vector.shape_cast %258 : vector<1x64xf32> to vector<1x1x64xf32>
    tpu.vector_store %arg21[%c0_146, %c0_147, %c0_148], %261 {strides = array<i32>} : memref<1x1x64xf32, #tpu.memory_space<vmem>>, vector<1x1x64xf32>,
    %c0_149 = arith.constant 0 : index
    %c0_150 = arith.constant 0 : index
    %262 = vector.load %arg18[%c0_149, %c0_150] : memref<64x128xf32, #tpu.memory_space<vmem>>, vector<64x128xf32>
    %cst_151 = arith.constant dense<0.000000e+00> : vector<1x128xf32>
    %263 = tpu.matmul %258, %262, %cst_151 {dimension_numbers = #tpu.dot_dimension_numbers<[1], [0], [0], [1], [0, 0, 1, 1], [], []>} : vector<1x64xf32>, vector<64x128xf32>, vector<1x128xf32> -> vector<1x128xf32>
    %c0_152 = arith.constant 0 : index
    %c0_153 = arith.constant 0 : index
    %264 = vector.load %arg19[%c0_152, %c0_153] : memref<1x128xf32, #tpu.memory_space<vmem>>, vector<1x128xf32>
    %265 = arith.addf %263, %264 : vector<1x128xf32>
    %cst_154 = arith.constant dense<0xFF800000> : vector<1xf32>
    %266 = vector.multi_reduction <maximumf>, %265, %cst_154 [1] : vector<1x128xf32> to vector<1xf32>
    %267 = vector.shape_cast %266 : vector<1xf32> to vector<1x1xf32>
    %268 = vector.broadcast %267 : vector<1x1xf32> to vector<1x128xf32>
    %269 = arith.subf %265, %268 : vector<1x128xf32>
    %270 = math.exp %269 : vector<1x128xf32>
    %cst_155 = arith.constant dense<0.000000e+00> : vector<1xf32>
    %271 = vector.multi_reduction <add>, %270, %cst_155 [1] : vector<1x128xf32> to vector<1xf32>
    %272 = vector.shape_cast %271 : vector<1xf32> to vector<1x1xf32>
    %273 = vector.broadcast %272 : vector<1x1xf32> to vector<1x128xf32>
    %274 = arith.divf %270, %273 : vector<1x128xf32>
    %c0_156 = arith.constant 0 : index
    %c0_157 = arith.constant 0 : index
    %c0_158 = arith.constant 0 : index
    %275 = vector.load %arg20[%c0_156, %c0_157, %c0_158] : memref<1x1x128xf32, #tpu.memory_space<vmem>>, vector<1x1x128xf32>
    %276 = vector.shape_cast %275 : vector<1x1x128xf32> to vector<1x128xf32>
    %277 = vector.shape_cast %274 : vector<1x128xf32> to vector<1x1x128xf32>
    tpu.vector_store %arg20[%c0_156, %c0_157, %c0_158], %277 {strides = array<i32>} : memref<1x1x128xf32, #tpu.memory_space<vmem>>, vector<1x1x128xf32>,
    return
  }
  func.func @transform_0(%arg0: i32) -> (i32, i32, i32) {
    %c0_i32 = arith.constant 0 : i32
    %c0_i32_0 = arith.constant 0 : i32
    %c0_i32_1 = arith.constant 0 : i32
    return %arg0, %c0_i32, %c0_i32_0 : i32, i32, i32
  }
  func.func @transform_1(%arg0: i32) -> (i32, i32) {
    %c0_i32 = arith.constant 0 : i32
    %c0_i32_0 = arith.constant 0 : i32
    %c0_i32_1 = arith.constant 0 : i32
    return %c0_i32, %c0_i32_0 : i32, i32
  }
  func.func @transform_2(%arg0: i32) -> (i32, i32) {
    %c0_i32 = arith.constant 0 : i32
    %c0_i32_0 = arith.constant 0 : i32
    %c0_i32_1 = arith.constant 0 : i32
    return %c0_i32, %c0_i32_0 : i32, i32
  }
  func.func @transform_3(%arg0: i32) -> (i32, i32, i32) {
    %c0_i32 = arith.constant 0 : i32
    %c0_i32_0 = arith.constant 0 : i32
    %c0_i32_1 = arith.constant 0 : i32
    %c0_i32_2 = arith.constant 0 : i32
    return %c0_i32, %c0_i32_0, %c0_i32_1 : i32, i32, i32
  }
  func.func @transform_4(%arg0: i32) -> (i32, i32, i32) {
    %c0_i32 = arith.constant 0 : i32
    %c0_i32_0 = arith.constant 0 : i32
    %c0_i32_1 = arith.constant 0 : i32
    %c0_i32_2 = arith.constant 0 : i32
    return %c0_i32, %c0_i32_0, %c0_i32_1 : i32, i32, i32
  }
  func.func @transform_5(%arg0: i32) -> (i32, i32, i32, i32) {
    %c0_i32 = arith.constant 0 : i32
    %c0_i32_0 = arith.constant 0 : i32
    %c0_i32_1 = arith.constant 0 : i32
    %c0_i32_2 = arith.constant 0 : i32
    %c0_i32_3 = arith.constant 0 : i32
    return %c0_i32, %c0_i32_0, %c0_i32_1, %c0_i32_2 : i32, i32, i32, i32
  }
  func.func @transform_6(%arg0: i32) -> (i32, i32, i32, i32) {
    %c0_i32 = arith.constant 0 : i32
    %c0_i32_0 = arith.constant 0 : i32
    %c0_i32_1 = arith.constant 0 : i32
    %c0_i32_2 = arith.constant 0 : i32
    %c0_i32_3 = arith.constant 0 : i32
    return %c0_i32, %c0_i32_0, %c0_i32_1, %c0_i32_2 : i32, i32, i32, i32
  }
  func.func @transform_7(%arg0: i32) -> (i32, i32, i32, i32) {
    %c0_i32 = arith.constant 0 : i32
    %c0_i32_0 = arith.constant 0 : i32
    %c0_i32_1 = arith.constant 0 : i32
    %c0_i32_2 = arith.constant 0 : i32
    %c0_i32_3 = arith.constant 0 : i32
    return %c0_i32, %c0_i32_0, %c0_i32_1, %c0_i32_2 : i32, i32, i32, i32
  }
  func.func @transform_8(%arg0: i32) -> (i32, i32, i32) {
    %c0_i32 = arith.constant 0 : i32
    %c0_i32_0 = arith.constant 0 : i32
    %c0_i32_1 = arith.constant 0 : i32
    %c0_i32_2 = arith.constant 0 : i32
    return %c0_i32, %c0_i32_0, %c0_i32_1 : i32, i32, i32
  }
  func.func @transform_9(%arg0: i32) -> (i32, i32, i32) {
    %c0_i32 = arith.constant 0 : i32
    %c0_i32_0 = arith.constant 0 : i32
    %c0_i32_1 = arith.constant 0 : i32
    %c0_i32_2 = arith.constant 0 : i32
    return %c0_i32, %c0_i32_0, %c0_i32_1 : i32, i32, i32
  }
  func.func @transform_10(%arg0: i32) -> (i32, i32, i32) {
    %c0_i32 = arith.constant 0 : i32
    %c0_i32_0 = arith.constant 0 : i32
    %c0_i32_1 = arith.constant 0 : i32
    %c0_i32_2 = arith.constant 0 : i32
    return %c0_i32, %c0_i32_0, %c0_i32_1 : i32, i32, i32
  }
  func.func @transform_11(%arg0: i32) -> (i32, i32, i32) {
    %c0_i32 = arith.constant 0 : i32
    %c0_i32_0 = arith.constant 0 : i32
    %c0_i32_1 = arith.constant 0 : i32
    %c0_i32_2 = arith.constant 0 : i32
    return %c0_i32, %c0_i32_0, %c0_i32_1 : i32, i32, i32
  }
  func.func @transform_12(%arg0: i32) -> (i32, i32, i32) {
    %c0_i32 = arith.constant 0 : i32
    %c0_i32_0 = arith.constant 0 : i32
    %c0_i32_1 = arith.constant 0 : i32
    %c0_i32_2 = arith.constant 0 : i32
    return %c0_i32, %c0_i32_0, %c0_i32_1 : i32, i32, i32
  }
  func.func @transform_13(%arg0: i32) -> (i32, i32, i32) {
    %c0_i32 = arith.constant 0 : i32
    %c0_i32_0 = arith.constant 0 : i32
    %c0_i32_1 = arith.constant 0 : i32
    %c0_i32_2 = arith.constant 0 : i32
    return %c0_i32, %c0_i32_0, %c0_i32_1 : i32, i32, i32
  }
  func.func @transform_14(%arg0: i32) -> (i32, i32, i32) {
    %c0_i32 = arith.constant 0 : i32
    %c0_i32_0 = arith.constant 0 : i32
    %c0_i32_1 = arith.constant 0 : i32
    %c0_i32_2 = arith.constant 0 : i32
    return %c0_i32, %c0_i32_0, %c0_i32_1 : i32, i32, i32
  }
  func.func @transform_15(%arg0: i32) -> (i32, i32) {
    %c0_i32 = arith.constant 0 : i32
    %c0_i32_0 = arith.constant 0 : i32
    %c0_i32_1 = arith.constant 0 : i32
    return %c0_i32, %c0_i32_0 : i32, i32
  }
  func.func @transform_16(%arg0: i32) -> (i32, i32) {
    %c0_i32 = arith.constant 0 : i32
    %c0_i32_0 = arith.constant 0 : i32
    %c0_i32_1 = arith.constant 0 : i32
    return %c0_i32, %c0_i32_0 : i32, i32
  }
  func.func @transform_17(%arg0: i32) -> (i32, i32) {
    %c0_i32 = arith.constant 0 : i32
    %c0_i32_0 = arith.constant 0 : i32
    %c0_i32_1 = arith.constant 0 : i32
    return %c0_i32, %c0_i32_0 : i32, i32
  }
  func.func @transform_18(%arg0: i32) -> (i32, i32) {
    %c0_i32 = arith.constant 0 : i32
    %c0_i32_0 = arith.constant 0 : i32
    %c0_i32_1 = arith.constant 0 : i32
    return %c0_i32, %c0_i32_0 : i32, i32
  }
  func.func @transform_19(%arg0: i32) -> (i32, i32, i32) {
    %c0_i32 = arith.constant 0 : i32
    %c0_i32_0 = arith.constant 0 : i32
    %c0_i32_1 = arith.constant 0 : i32
    return %arg0, %c0_i32, %c0_i32_0 : i32, i32, i32
  }
  func.func @transform_20(%arg0: i32) -> (i32, i32, i32) {
    %c0_i32 = arith.constant 0 : i32
    %c0_i32_0 = arith.constant 0 : i32
    %c0_i32_1 = arith.constant 0 : i32
    return %arg0, %c0_i32, %c0_i32_0 : i32, i32, i32
  }
}

</mosaic_0001>

<llo_original>
// kernel: vit_embeddings_forward.1
$region0: #{vit_embeddings_forward.1}
  #allocation0 [shape = 'u32[]', space=smem, size = 0x4, offset = 0x4, fixed_abs, tag = 'smem constant byte address 0x4 - core index']
  #allocation1 [shape = 'u32[72,128]{1,0:T(1,128)}', space=vmem, size = 0x9000, scoped, tag = 'internal scratch']
  #allocation2 [shape = 'f32[5,64]{1,0:T(8,128)}', space=vmem, size = 0x1000, scoped, tag = 'scratch operand']
  %s0 = inlined_call_operand.vmem [shape: f32[2,4,192], index: 0, kind: input, shape index: {}]
  %s1 = inlined_call_operand.vmem [shape: f32[192,64], index: 1, kind: input, shape index: {}]
  %s2 = inlined_call_operand.vmem [shape: f32[5,64], index: 2, kind: input, shape index: {}]
  %s3 = inlined_call_operand.vmem [shape: f32[2,1,64], index: 3, kind: input, shape index: {}]
  %s4 = inlined_call_operand.vmem [shape: f32[2,1,64], index: 4, kind: input, shape index: {}]
  %s5 = inlined_call_operand.vmem [shape: f32[2,12,64,16], index: 5, kind: input, shape index: {}]
  %s6 = inlined_call_operand.vmem [shape: f32[2,12,1,16], index: 6, kind: input, shape index: {}]
  %s7 = inlined_call_operand.vmem [shape: f32[2,4,16,64], index: 7, kind: input, shape index: {}]
  %s8 = inlined_call_operand.vmem [shape: f32[2,1,64], index: 8, kind: input, shape index: {}]
  %s9 = inlined_call_operand.vmem [shape: f32[2,1,64], index: 9, kind: input, shape index: {}]
  %s10 = inlined_call_operand.vmem [shape: f32[2,1,64], index: 10, kind: input, shape index: {}]
  %s11 = inlined_call_operand.vmem [shape: f32[2,64,128], index: 11, kind: input, shape index: {}]
  %s12 = inlined_call_operand.vmem [shape: f32[2,1,128], index: 12, kind: input, shape index: {}]
  %s13 = inlined_call_operand.vmem [shape: f32[2,128,64], index: 13, kind: input, shape index: {}]
  %s14 = inlined_call_operand.vmem [shape: f32[2,1,64], index: 14, kind: input, shape index: {}]
  %s15 = inlined_call_operand.vmem [shape: f32[1,64], index: 15, kind: input, shape index: {}]
  %s16 = inlined_call_operand.vmem [shape: f32[1,64], index: 16, kind: input, shape index: {}]
  %s17 = inlined_call_operand.vmem [shape: f32[64,128], index: 17, kind: input, shape index: {}]
  %s18 = inlined_call_operand.vmem [shape: f32[1,128], index: 18, kind: input, shape index: {}]
  %s19 = inlined_call_operand.hbm [shape: f32[2,1,128], index: 19, kind: output, shape index: {0}]
  %s20 = inlined_call_operand.hbm [shape: f32[2,1,64], index: 20, kind: output, shape index: {1}]
  %21 = xla_tuple %s19, %s20
  %s22 = sld [smem:[#allocation0]]
  $region117: #{vit_embeddings_forward.1} parent=0
    _
  %s24 = ssub.s32 1, %s22
  %s25 = scalar_select 0, %s24, %s22
  $region1: #{vit_embeddings_forward.1} parent=0
    #allocation3 [shape = 'u8[1024]{0}', space=vmem, size = 0x400, scoped, tag = 'output window, operand 0']
    #allocation4 [shape = 's32[2]{0}', space=sflag, size = 0x8, scoped, tag = 'scoped memory for vit_embeddings_forward.1']
    #allocation5 [shape = 'u8[1024]{0}', space=vmem, size = 0x400, scoped, tag = 'output window, operand 1']
    #allocation6 [shape = 's32[2]{0}', space=sflag, size = 0x8, scoped, tag = 'scoped memory for vit_embeddings_forward.1']
    %26 = vsyncpa [#allocation4], 0
    %s27 = scalar_lea.sflag [#allocation4], 1
    %28 = vsyncpa %s27, 0
    %29 = vsyncpa [#allocation6], 0
    %s30 = scalar_lea.sflag [#allocation6], 1
    %31 = vsyncpa %s30, 0
    loop: start=0, step=1, limit=4
    $region2: #{vit_embeddings_forward.1} parent=1 // loop_pre_header
      _
    $region3: #{vit_embeddings_forward.1} parent=1 // loop_header
      %s33 = sphi 0, %s37
      %p34 = scmp.ge.s32.totalorder %s33, 4
      %s43 = sphi 0, %s45
      %s46 = sphi 0, %s43
      %s47 = sphi 0, %s46
      %s63 = sphi 0, %s47
      %s67 = sphi 0, %s67
      %s69 = sphi 0, %s67
      %s70 = sphi 0, %s69
      %s84 = sphi 0, %s70
      %s88 = sphi 0, %s88
      %s90 = sphi 0, %s88
      %s91 = sphi 0, %s90
      %s105 = sphi 0, %s91
      %s109 = sphi 0, %s109
      %s111 = sphi 0, %s109
      %s112 = sphi 0, %s111
      %s126 = sphi 0, %s112
      %s130 = sphi 0, %s130
      %s132 = sphi 0, %s130
      %s133 = sphi 0, %s132
      %s147 = sphi 0, %s133
      %s151 = sphi 0, %s151
      %s153 = sphi 0, %s151
      %s154 = sphi 0, %s153
      %s168 = sphi 0, %s154
      %s172 = sphi 0, %s172
      %s174 = sphi 0, %s172
      %s175 = sphi 0, %s174
      %s189 = sphi 0, %s175
      %s193 = sphi 0, %s193
      %s195 = sphi 0, %s193
      %s196 = sphi 0, %s195
      %s210 = sphi 0, %s196
      %s214 = sphi 0, %s214
      %s216 = sphi 0, %s214
      %s217 = sphi 0, %s216
      %s231 = sphi 0, %s217
      %s235 = sphi 0, %s235
      %s237 = sphi 0, %s235
      %s238 = sphi 0, %s237
      %s252 = sphi 0, %s238
      %s256 = sphi 0, %s256
      %s258 = sphi 0, %s256
      %s259 = sphi 0, %s258
      %s273 = sphi 0, %s259
      %s277 = sphi 0, %s277
      %s279 = sphi 0, %s277
      %s280 = sphi 0, %s279
      %s294 = sphi 0, %s280
      %s298 = sphi 0, %s298
      %s300 = sphi 0, %s298
      %s301 = sphi 0, %s300
      %s315 = sphi 0, %s301
      %s319 = sphi 0, %s319
      %s321 = sphi 0, %s319
      %s322 = sphi 0, %s321
      %s336 = sphi 0, %s322
      %s340 = sphi 0, %s340
      %s342 = sphi 0, %s340
      %s343 = sphi 0, %s342
      %s357 = sphi 0, %s343
      %s361 = sphi 0, %s361
      %s363 = sphi 0, %s361
      %s364 = sphi 0, %s363
      %s378 = sphi 0, %s364
      %s382 = sphi 0, %s382
      %s384 = sphi 0, %s382
      %s385 = sphi 0, %s384
      %s399 = sphi 0, %s385
      %s403 = sphi 0, %s403
      %s405 = sphi 0, %s403
      %s406 = sphi 0, %s405
      %s420 = sphi 0, %s406
      %s424 = sphi 0, %s424
      %s426 = sphi 0, %s424
      %s427 = sphi 0, %s426
      %s441 = sphi 0, %s427
      %s447 = sphi 0, %s449
      %s450 = sphi 0, %s447
      %s451 = sphi 0, %s450
      %s467 = sphi 0, %s451
      %s473 = sphi 0, %s475
      %s476 = sphi 0, %s473
      %s477 = sphi 0, %s476
      %s493 = sphi 0, %s477
    $region4: #{vit_embeddings_forward.1} parent=1 // loop_header_branch
      %36 = sbr.rel (%p34) target = $region8
    $region5: #{vit_embeddings_forward.1} parent=1 // loop_body
      %s38 = ssub.s32 %s33, 1
      %s39 = ssub.s32 %s33, 2
      %s40 = sadd.s32 %s33, 1
      %s41 = ssub.s32 %s33, %s40
      %p42 = scmp.eq.s32.totalorder %s41, 0
      %s44 = sadd.s32 %s43, 1
      %s45 = scalar_select %p42, %s43, %s44
      %p48 = pneg %p42
      %p49 = scmp.eq.s32.totalorder %s33, 1
      %p50 = por %p48, %p49
      %p51 = scmp.ne.s32.totalorder %s43, %s46
      %p52 = scmp.eq.s32.totalorder %s33, 0
      %p53 = por %p51, %p52
      %p54 = scmp.ne.s32.totalorder %s43, %s46
      %p55 = scmp.eq.s32.totalorder %s38, 1
      %p56 = por %p54, %p55
      %p57 = scmp.ne.s32.totalorder %s46, %s47
      %p58 = scmp.eq.s32.totalorder %s38, 0
      %p59 = por %p57, %p58
      %p60 = scmp.ne.s32.totalorder %s46, %s47
      %p61 = scmp.eq.s32.totalorder %s39, 1
      %p62 = por %p60, %p61
      %p64 = scmp.ne.s32.totalorder %s47, %s63
      %p65 = scmp.eq.s32.totalorder %s39, 0
      %p66 = por %p64, %p65
      %s68 = sadd.s32 %s67, 1
      %p71 = scmp.eq.s32.totalorder %s33, 1
      %p72 = scmp.ne.s32.totalorder %s67, %s69
      %p73 = scmp.eq.s32.totalorder %s33, 0
      %p74 = por %p72, %p73
      %p75 = scmp.ne.s32.totalorder %s67, %s69
      %p76 = scmp.eq.s32.totalorder %s38, 1
      %p77 = por %p75, %p76
      %p78 = scmp.ne.s32.totalorder %s69, %s70
      %p79 = scmp.eq.s32.totalorder %s38, 0
      %p80 = por %p78, %p79
      %p81 = scmp.ne.s32.totalorder %s69, %s70
      %p82 = scmp.eq.s32.totalorder %s39, 1
      %p83 = por %p81, %p82
      %p85 = scmp.ne.s32.totalorder %s70, %s84
      %p86 = scmp.eq.s32.totalorder %s39, 0
      %p87 = por %p85, %p86
      %s89 = sadd.s32 %s88, 1
      %p92 = scmp.eq.s32.totalorder %s33, 1
      %p93 = scmp.ne.s32.totalorder %s88, %s90
      %p94 = scmp.eq.s32.totalorder %s33, 0
      %p95 = por %p93, %p94
      %p96 = scmp.ne.s32.totalorder %s88, %s90
      %p97 = scmp.eq.s32.totalorder %s38, 1
      %p98 = por %p96, %p97
      %p99 = scmp.ne.s32.totalorder %s90, %s91
      %p100 = scmp.eq.s32.totalorder %s38, 0
      %p101 = por %p99, %p100
      %p102 = scmp.ne.s32.totalorder %s90, %s91
      %p103 = scmp.eq.s32.totalorder %s39, 1
      %p104 = por %p102, %p103
      %p106 = scmp.ne.s32.totalorder %s91, %s105
      %p107 = scmp.eq.s32.totalorder %s39, 0
      %p108 = por %p106, %p107
      %s110 = sadd.s32 %s109, 1
      %p113 = scmp.eq.s32.totalorder %s33, 1
      %p114 = scmp.ne.s32.totalorder %s109, %s111
      %p115 = scmp.eq.s32.totalorder %s33, 0
      %p116 = por %p114, %p115
      %p117 = scmp.ne.s32.totalorder %s109, %s111
      %p118 = scmp.eq.s32.totalorder %s38, 1
      %p119 = por %p117, %p118
      %p120 = scmp.ne.s32.totalorder %s111, %s112
      %p121 = scmp.eq.s32.totalorder %s38, 0
      %p122 = por %p120, %p121
      %p123 = scmp.ne.s32.totalorder %s111, %s112
      %p124 = scmp.eq.s32.totalorder %s39, 1
      %p125 = por %p123, %p124
      %p127 = scmp.ne.s32.totalorder %s112, %s126
      %p128 = scmp.eq.s32.totalorder %s39, 0
      %p129 = por %p127, %p128
      %s131 = sadd.s32 %s130, 1
      %p134 = scmp.eq.s32.totalorder %s33, 1
      %p135 = scmp.ne.s32.totalorder %s130, %s132
      %p136 = scmp.eq.s32.totalorder %s33, 0
      %p137 = por %p135, %p136
      %p138 = scmp.ne.s32.totalorder %s130, %s132
      %p139 = scmp.eq.s32.totalorder %s38, 1
      %p140 = por %p138, %p139
      %p141 = scmp.ne.s32.totalorder %s132, %s133
      %p142 = scmp.eq.s32.totalorder %s38, 0
      %p143 = por %p141, %p142
      %p144 = scmp.ne.s32.totalorder %s132, %s133
      %p145 = scmp.eq.s32.totalorder %s39, 1
      %p146 = por %p144, %p145
      %p148 = scmp.ne.s32.totalorder %s133, %s147
      %p149 = scmp.eq.s32.totalorder %s39, 0
      %p150 = por %p148, %p149
      %s152 = sadd.s32 %s151, 1
      %p155 = scmp.eq.s32.totalorder %s33, 1
      %p156 = scmp.ne.s32.totalorder %s151, %s153
      %p157 = scmp.eq.s32.totalorder %s33, 0
      %p158 = por %p156, %p157
      %p159 = scmp.ne.s32.totalorder %s151, %s153
      %p160 = scmp.eq.s32.totalorder %s38, 1
      %p161 = por %p159, %p160
      %p162 = scmp.ne.s32.totalorder %s153, %s154
      %p163 = scmp.eq.s32.totalorder %s38, 0
      %p164 = por %p162, %p163
      %p165 = scmp.ne.s32.totalorder %s153, %s154
      %p166 = scmp.eq.s32.totalorder %s39, 1
      %p167 = por %p165, %p166
      %p169 = scmp.ne.s32.totalorder %s154, %s168
      %p170 = scmp.eq.s32.totalorder %s39, 0
      %p171 = por %p169, %p170
      %s173 = sadd.s32 %s172, 1
      %p176 = scmp.eq.s32.totalorder %s33, 1
      %p177 = scmp.ne.s32.totalorder %s172, %s174
      %p178 = scmp.eq.s32.totalorder %s33, 0
      %p179 = por %p177, %p178
      %p180 = scmp.ne.s32.totalorder %s172, %s174
      %p181 = scmp.eq.s32.totalorder %s38, 1
      %p182 = por %p180, %p181
      %p183 = scmp.ne.s32.totalorder %s174, %s175
      %p184 = scmp.eq.s32.totalorder %s38, 0
      %p185 = por %p183, %p184
      %p186 = scmp.ne.s32.totalorder %s174, %s175
      %p187 = scmp.eq.s32.totalorder %s39, 1
      %p188 = por %p186, %p187
      %p190 = scmp.ne.s32.totalorder %s175, %s189
      %p191 = scmp.eq.s32.totalorder %s39, 0
      %p192 = por %p190, %p191
      %s194 = sadd.s32 %s193, 1
      %p197 = scmp.eq.s32.totalorder %s33, 1
      %p198 = scmp.ne.s32.totalorder %s193, %s195
      %p199 = scmp.eq.s32.totalorder %s33, 0
      %p200 = por %p198, %p199
      %p201 = scmp.ne.s32.totalorder %s193, %s195
      %p202 = scmp.eq.s32.totalorder %s38, 1
      %p203 = por %p201, %p202
      %p204 = scmp.ne.s32.totalorder %s195, %s196
      %p205 = scmp.eq.s32.totalorder %s38, 0
      %p206 = por %p204, %p205
      %p207 = scmp.ne.s32.totalorder %s195, %s196
      %p208 = scmp.eq.s32.totalorder %s39, 1
      %p209 = por %p207, %p208
      %p211 = scmp.ne.s32.totalorder %s196, %s210
      %p212 = scmp.eq.s32.totalorder %s39, 0
      %p213 = por %p211, %p212
      %s215 = sadd.s32 %s214, 1
      %p218 = scmp.eq.s32.totalorder %s33, 1
      %p219 = scmp.ne.s32.totalorder %s214, %s216
      %p220 = scmp.eq.s32.totalorder %s33, 0
      %p221 = por %p219, %p220
      %p222 = scmp.ne.s32.totalorder %s214, %s216
      %p223 = scmp.eq.s32.totalorder %s38, 1
      %p224 = por %p222, %p223
      %p225 = scmp.ne.s32.totalorder %s216, %s217
      %p226 = scmp.eq.s32.totalorder %s38, 0
      %p227 = por %p225, %p226
      %p228 = scmp.ne.s32.totalorder %s216, %s217
      %p229 = scmp.eq.s32.totalorder %s39, 1
      %p230 = por %p228, %p229
      %p232 = scmp.ne.s32.totalorder %s217, %s231
      %p233 = scmp.eq.s32.totalorder %s39, 0
      %p234 = por %p232, %p233
      %s236 = sadd.s32 %s235, 1
      %p239 = scmp.eq.s32.totalorder %s33, 1
      %p240 = scmp.ne.s32.totalorder %s235, %s237
      %p241 = scmp.eq.s32.totalorder %s33, 0
      %p242 = por %p240, %p241
      %p243 = scmp.ne.s32.totalorder %s235, %s237
      %p244 = scmp.eq.s32.totalorder %s38, 1
      %p245 = por %p243, %p244
      %p246 = scmp.ne.s32.totalorder %s237, %s238
      %p247 = scmp.eq.s32.totalorder %s38, 0
      %p248 = por %p246, %p247
      %p249 = scmp.ne.s32.totalorder %s237, %s238
      %p250 = scmp.eq.s32.totalorder %s39, 1
      %p251 = por %p249, %p250
      %p253 = scmp.ne.s32.totalorder %s238, %s252
      %p254 = scmp.eq.s32.totalorder %s39, 0
      %p255 = por %p253, %p254
      %s257 = sadd.s32 %s256, 1
      %p260 = scmp.eq.s32.totalorder %s33, 1
      %p261 = scmp.ne.s32.totalorder %s256, %s258
      %p262 = scmp.eq.s32.totalorder %s33, 0
      %p263 = por %p261, %p262
      %p264 = scmp.ne.s32.totalorder %s256, %s258
      %p265 = scmp.eq.s32.totalorder %s38, 1
      %p266 = por %p264, %p265
      %p267 = scmp.ne.s32.totalorder %s258, %s259
      %p268 = scmp.eq.s32.totalorder %s38, 0
      %p269 = por %p267, %p268
      %p270 = scmp.ne.s32.totalorder %s258, %s259
      %p271 = scmp.eq.s32.totalorder %s39, 1
      %p272 = por %p270, %p271
      %p274 = scmp.ne.s32.totalorder %s259, %s273
      %p275 = scmp.eq.s32.totalorder %s39, 0
      %p276 = por %p274, %p275
      %s278 = sadd.s32 %s277, 1
      %p281 = scmp.eq.s32.totalorder %s33, 1
      %p282 = scmp.ne.s32.totalorder %s277, %s279
      %p283 = scmp.eq.s32.totalorder %s33, 0
      %p284 = por %p282, %p283
      %p285 = scmp.ne.s32.totalorder %s277, %s279
      %p286 = scmp.eq.s32.totalorder %s38, 1
      %p287 = por %p285, %p286
      %p288 = scmp.ne.s32.totalorder %s279, %s280
      %p289 = scmp.eq.s32.totalorder %s38, 0
      %p290 = por %p288, %p289
      %p291 = scmp.ne.s32.totalorder %s279, %s280
      %p292 = scmp.eq.s32.totalorder %s39, 1
      %p293 = por %p291, %p292
      %p295 = scmp.ne.s32.totalorder %s280, %s294
      %p296 = scmp.eq.s32.totalorder %s39, 0
      %p297 = por %p295, %p296
      %s299 = sadd.s32 %s298, 1
      %p302 = scmp.eq.s32.totalorder %s33, 1
      %p303 = scmp.ne.s32.totalorder %s298, %s300
      %p304 = scmp.eq.s32.totalorder %s33, 0
      %p305 = por %p303, %p304
      %p306 = scmp.ne.s32.totalorder %s298, %s300
      %p307 = scmp.eq.s32.totalorder %s38, 1
      %p308 = por %p306, %p307
      %p309 = scmp.ne.s32.totalorder %s300, %s301
      %p310 = scmp.eq.s32.totalorder %s38, 0
      %p311 = por %p309, %p310
      %p312 = scmp.ne.s32.totalorder %s300, %s301
      %p313 = scmp.eq.s32.totalorder %s39, 1
      %p314 = por %p312, %p313
      %p316 = scmp.ne.s32.totalorder %s301, %s315
      %p317 = scmp.eq.s32.totalorder %s39, 0
      %p318 = por %p316, %p317
      %s320 = sadd.s32 %s319, 1
      %p323 = scmp.eq.s32.totalorder %s33, 1
      %p324 = scmp.ne.s32.totalorder %s319, %s321
      %p325 = scmp.eq.s32.totalorder %s33, 0
      %p326 = por %p324, %p325
      %p327 = scmp.ne.s32.totalorder %s319, %s321
      %p328 = scmp.eq.s32.totalorder %s38, 1
      %p329 = por %p327, %p328
      %p330 = scmp.ne.s32.totalorder %s321, %s322
      %p331 = scmp.eq.s32.totalorder %s38, 0
      %p332 = por %p330, %p331
      %p333 = scmp.ne.s32.totalorder %s321, %s322
      %p334 = scmp.eq.s32.totalorder %s39, 1
      %p335 = por %p333, %p334
      %p337 = scmp.ne.s32.totalorder %s322, %s336
      %p338 = scmp.eq.s32.totalorder %s39, 0
      %p339 = por %p337, %p338
      %s341 = sadd.s32 %s340, 1
      %p344 = scmp.eq.s32.totalorder %s33, 1
      %p345 = scmp.ne.s32.totalorder %s340, %s342
      %p346 = scmp.eq.s32.totalorder %s33, 0
      %p347 = por %p345, %p346
      %p348 = scmp.ne.s32.totalorder %s340, %s342
      %p349 = scmp.eq.s32.totalorder %s38, 1
      %p350 = por %p348, %p349
      %p351 = scmp.ne.s32.totalorder %s342, %s343
      %p352 = scmp.eq.s32.totalorder %s38, 0
      %p353 = por %p351, %p352
      %p354 = scmp.ne.s32.totalorder %s342, %s343
      %p355 = scmp.eq.s32.totalorder %s39, 1
      %p356 = por %p354, %p355
      %p358 = scmp.ne.s32.totalorder %s343, %s357
      %p359 = scmp.eq.s32.totalorder %s39, 0
      %p360 = por %p358, %p359
      %s362 = sadd.s32 %s361, 1
      %p365 = scmp.eq.s32.totalorder %s33, 1
      %p366 = scmp.ne.s32.totalorder %s361, %s363
      %p367 = scmp.eq.s32.totalorder %s33, 0
      %p368 = por %p366, %p367
      %p369 = scmp.ne.s32.totalorder %s361, %s363
      %p370 = scmp.eq.s32.totalorder %s38, 1
      %p371 = por %p369, %p370
      %p372 = scmp.ne.s32.totalorder %s363, %s364
      %p373 = scmp.eq.s32.totalorder %s38, 0
      %p374 = por %p372, %p373
      %p375 = scmp.ne.s32.totalorder %s363, %s364
      %p376 = scmp.eq.s32.totalorder %s39, 1
      %p377 = por %p375, %p376
      %p379 = scmp.ne.s32.totalorder %s364, %s378
      %p380 = scmp.eq.s32.totalorder %s39, 0
      %p381 = por %p379, %p380
      %s383 = sadd.s32 %s382, 1
      %p386 = scmp.eq.s32.totalorder %s33, 1
      %p387 = scmp.ne.s32.totalorder %s382, %s384
      %p388 = scmp.eq.s32.totalorder %s33, 0
      %p389 = por %p387, %p388
      %p390 = scmp.ne.s32.totalorder %s382, %s384
      %p391 = scmp.eq.s32.totalorder %s38, 1
      %p392 = por %p390, %p391
      %p393 = scmp.ne.s32.totalorder %s384, %s385
      %p394 = scmp.eq.s32.totalorder %s38, 0
      %p395 = por %p393, %p394
      %p396 = scmp.ne.s32.totalorder %s384, %s385
      %p397 = scmp.eq.s32.totalorder %s39, 1
      %p398 = por %p396, %p397
      %p400 = scmp.ne.s32.totalorder %s385, %s399
      %p401 = scmp.eq.s32.totalorder %s39, 0
      %p402 = por %p400, %p401
      %s404 = sadd.s32 %s403, 1
      %p407 = scmp.eq.s32.totalorder %s33, 1
      %p408 = scmp.ne.s32.totalorder %s403, %s405
      %p409 = scmp.eq.s32.totalorder %s33, 0
      %p410 = por %p408, %p409
      %p411 = scmp.ne.s32.totalorder %s403, %s405
      %p412 = scmp.eq.s32.totalorder %s38, 1
      %p413 = por %p411, %p412
      %p414 = scmp.ne.s32.totalorder %s405, %s406
      %p415 = scmp.eq.s32.totalorder %s38, 0
      %p416 = por %p414, %p415
      %p417 = scmp.ne.s32.totalorder %s405, %s406
      %p418 = scmp.eq.s32.totalorder %s39, 1
      %p419 = por %p417, %p418
      %p421 = scmp.ne.s32.totalorder %s406, %s420
      %p422 = scmp.eq.s32.totalorder %s39, 0
      %p423 = por %p421, %p422
      %s425 = sadd.s32 %s424, 1
      %p428 = scmp.eq.s32.totalorder %s33, 1
      %p429 = scmp.ne.s32.totalorder %s424, %s426
      %p430 = scmp.eq.s32.totalorder %s33, 0
      %p431 = por %p429, %p430
      %p432 = scmp.ne.s32.totalorder %s424, %s426
      %p433 = scmp.eq.s32.totalorder %s38, 1
      %p434 = por %p432, %p433
      %p435 = scmp.ne.s32.totalorder %s426, %s427
      %p436 = scmp.eq.s32.totalorder %s38, 0
      %p437 = por %p435, %p436
      %p438 = scmp.ne.s32.totalorder %s426, %s427
      %p439 = scmp.eq.s32.totalorder %s39, 1
      %p440 = por %p438, %p439
      %p442 = scmp.ne.s32.totalorder %s427, %s441
      %p443 = scmp.eq.s32.totalorder %s39, 0
      %p444 = por %p442, %p443
      %s445 = ssub.s32 %s33, %s40
      %p446 = scmp.eq.s32.totalorder %s445, 0
      %s448 = sadd.s32 %s447, 1
      %s449 = scalar_select %p446, %s447, %s448
      %p452 = pneg %p446
      %p453 = scmp.eq.s32.totalorder %s33, 1
      %p454 = por %p452, %p453
      %p455 = scmp.ne.s32.totalorder %s447, %s450
      %p456 = scmp.eq.s32.totalorder %s33, 0
      %p457 = por %p455, %p456
      %p458 = scmp.ne.s32.totalorder %s447, %s450
      %p459 = scmp.eq.s32.totalorder %s38, 1
      %p460 = por %p458, %p459
      %p461 = scmp.ne.s32.totalorder %s450, %s451
      %p462 = scmp.eq.s32.totalorder %s38, 0
      %p463 = por %p461, %p462
      %p464 = scmp.ne.s32.totalorder %s450, %s451
      %p465 = scmp.eq.s32.totalorder %s39, 1
      %p466 = por %p464, %p465
      %p468 = scmp.ne.s32.totalorder %s451, %s467
      %p469 = scmp.eq.s32.totalorder %s39, 0
      %p470 = por %p468, %p469
      %s471 = ssub.s32 %s33, %s40
      %p472 = scmp.eq.s32.totalorder %s471, 0
      %s474 = sadd.s32 %s473, 1
      %s475 = scalar_select %p472, %s473, %s474
      %p478 = pneg %p472
      %p479 = scmp.eq.s32.totalorder %s33, 1
      %p480 = por %p478, %p479
      %p481 = scmp.ne.s32.totalorder %s473, %s476
      %p482 = scmp.eq.s32.totalorder %s33, 0
      %p483 = por %p481, %p482
      %p484 = scmp.ne.s32.totalorder %s473, %s476
      %p485 = scmp.eq.s32.totalorder %s38, 1
      %p486 = por %p484, %p485
      %p487 = scmp.ne.s32.totalorder %s476, %s477
      %p488 = scmp.eq.s32.totalorder %s38, 0
      %p489 = por %p487, %p488
      %p490 = scmp.ne.s32.totalorder %s476, %s477
      %p491 = scmp.eq.s32.totalorder %s39, 1
      %p492 = por %p490, %p491
      %p494 = scmp.ne.s32.totalorder %s477, %s493
      %p495 = scmp.eq.s32.totalorder %s39, 0
      %p496 = por %p494, %p495
      %p497 = scmp.le.s32.totalorder 1, %s33
      %p498 = scmp.lt.s32.totalorder %s33, 3
      %p499 = pnand %p497, %p498
      %p500 = pneg %p499
      // Predicated region
      $region9: #{vit_embeddings_forward.1} parent=5 // pred_check
        _
      $region10: #{vit_embeddings_forward.1} parent=5 // pred_check_branch
        %502 = sbr.rel (%p499) target = $region12
      $region11: #{vit_embeddings_forward.1} parent=5 // pred_region
        %s503 = ssub.s32 %s33, 1
        // Predicated region
        $region13: #{vit_embeddings_forward.1} parent=11 // pred_check
          %p504 = pneg %p80
        $region14: #{vit_embeddings_forward.1} parent=11 // pred_check_branch
          %506 = sbr.rel (%p504) target = $region16
        $region15: #{vit_embeddings_forward.1} parent=11 // pred_region
          _
        $region16: #{vit_embeddings_forward.1} parent=11 // pred_fallthru
          _
        // Predicated region
        $region17: #{vit_embeddings_forward.1} parent=11 // pred_check
          %p507 = pneg %p101
        $region18: #{vit_embeddings_forward.1} parent=11 // pred_check_branch
          %509 = sbr.rel (%p507) target = $region20
        $region19: #{vit_embeddings_forward.1} parent=11 // pred_region
          _
        $region20: #{vit_embeddings_forward.1} parent=11 // pred_fallthru
          _
        // Predicated region
        $region21: #{vit_embeddings_forward.1} parent=11 // pred_check
          %p510 = pneg %p122
        $region22: #{vit_embeddings_forward.1} parent=11 // pred_check_branch
          %512 = sbr.rel (%p510) target = $region24
        $region23: #{vit_embeddings_forward.1} parent=11 // pred_region
          _
        $region24: #{vit_embeddings_forward.1} parent=11 // pred_fallthru
          _
        // Predicated region
        $region25: #{vit_embeddings_forward.1} parent=11 // pred_check
          %p513 = pneg %p143
        $region26: #{vit_embeddings_forward.1} parent=11 // pred_check_branch
          %515 = sbr.rel (%p513) target = $region28
        $region27: #{vit_embeddings_forward.1} parent=11 // pred_region
          _
        $region28: #{vit_embeddings_forward.1} parent=11 // pred_fallthru
          _
        // Predicated region
        $region29: #{vit_embeddings_forward.1} parent=11 // pred_check
          %p516 = pneg %p164
        $region30: #{vit_embeddings_forward.1} parent=11 // pred_check_branch
          %518 = sbr.rel (%p516) target = $region32
        $region31: #{vit_embeddings_forward.1} parent=11 // pred_region
          _
        $region32: #{vit_embeddings_forward.1} parent=11 // pred_fallthru
          _
        // Predicated region
        $region33: #{vit_embeddings_forward.1} parent=11 // pred_check
          %p519 = pneg %p185
        $region34: #{vit_embeddings_forward.1} parent=11 // pred_check_branch
          %521 = sbr.rel (%p519) target = $region36
        $region35: #{vit_embeddings_forward.1} parent=11 // pred_region
          _
        $region36: #{vit_embeddings_forward.1} parent=11 // pred_fallthru
          _
        // Predicated region
        $region37: #{vit_embeddings_forward.1} parent=11 // pred_check
          %p522 = pneg %p206
        $region38: #{vit_embeddings_forward.1} parent=11 // pred_check_branch
          %524 = sbr.rel (%p522) target = $region40
        $region39: #{vit_embeddings_forward.1} parent=11 // pred_region
          _
        $region40: #{vit_embeddings_forward.1} parent=11 // pred_fallthru
          _
        // Predicated region
        $region41: #{vit_embeddings_forward.1} parent=11 // pred_check
          %p525 = pneg %p227
        $region42: #{vit_embeddings_forward.1} parent=11 // pred_check_branch
          %527 = sbr.rel (%p525) target = $region44
        $region43: #{vit_embeddings_forward.1} parent=11 // pred_region
          _
        $region44: #{vit_embeddings_forward.1} parent=11 // pred_fallthru
          _
        // Predicated region
        $region45: #{vit_embeddings_forward.1} parent=11 // pred_check
          %p528 = pneg %p248
        $region46: #{vit_embeddings_forward.1} parent=11 // pred_check_branch
          %530 = sbr.rel (%p528) target = $region48
        $region47: #{vit_embeddings_forward.1} parent=11 // pred_region
          _
        $region48: #{vit_embeddings_forward.1} parent=11 // pred_fallthru
          _
        // Predicated region
        $region49: #{vit_embeddings_forward.1} parent=11 // pred_check
          %p531 = pneg %p269
        $region50: #{vit_embeddings_forward.1} parent=11 // pred_check_branch
          %533 = sbr.rel (%p531) target = $region52
        $region51: #{vit_embeddings_forward.1} parent=11 // pred_region
          _
        $region52: #{vit_embeddings_forward.1} parent=11 // pred_fallthru
          _
        // Predicated region
        $region53: #{vit_embeddings_forward.1} parent=11 // pred_check
          %p534 = pneg %p290
        $region54: #{vit_embeddings_forward.1} parent=11 // pred_check_branch
          %536 = sbr.rel (%p534) target = $region56
        $region55: #{vit_embeddings_forward.1} parent=11 // pred_region
          _
        $region56: #{vit_embeddings_forward.1} parent=11 // pred_fallthru
          _
        // Predicated region
        $region57: #{vit_embeddings_forward.1} parent=11 // pred_check
          %p537 = pneg %p311
        $region58: #{vit_embeddings_forward.1} parent=11 // pred_check_branch
          %539 = sbr.rel (%p537) target = $region60
        $region59: #{vit_embeddings_forward.1} parent=11 // pred_region
          _
        $region60: #{vit_embeddings_forward.1} parent=11 // pred_fallthru
          _
        // Predicated region
        $region61: #{vit_embeddings_forward.1} parent=11 // pred_check
          %p540 = pneg %p332
        $region62: #{vit_embeddings_forward.1} parent=11 // pred_check_branch
          %542 = sbr.rel (%p540) target = $region64
        $region63: #{vit_embeddings_forward.1} parent=11 // pred_region
          _
        $region64: #{vit_embeddings_forward.1} parent=11 // pred_fallthru
          _
        // Predicated region
        $region65: #{vit_embeddings_forward.1} parent=11 // pred_check
          %p543 = pneg %p353
        $region66: #{vit_embeddings_forward.1} parent=11 // pred_check_branch
          %545 = sbr.rel (%p543) target = $region68
        $region67: #{vit_embeddings_forward.1} parent=11 // pred_region
          _
        $region68: #{vit_embeddings_forward.1} parent=11 // pred_fallthru
          _
        // Predicated region
        $region69: #{vit_embeddings_forward.1} parent=11 // pred_check
          %p546 = pneg %p374
        $region70: #{vit_embeddings_forward.1} parent=11 // pred_check_branch
          %548 = sbr.rel (%p546) target = $region72
        $region71: #{vit_embeddings_forward.1} parent=11 // pred_region
          _
        $region72: #{vit_embeddings_forward.1} parent=11 // pred_fallthru
          _
        // Predicated region
        $region73: #{vit_embeddings_forward.1} parent=11 // pred_check
          %p549 = pneg %p395
        $region74: #{vit_embeddings_forward.1} parent=11 // pred_check_branch
          %551 = sbr.rel (%p549) target = $region76
        $region75: #{vit_embeddings_forward.1} parent=11 // pred_region
          _
        $region76: #{vit_embeddings_forward.1} parent=11 // pred_fallthru
          _
        // Predicated region
        $region77: #{vit_embeddings_forward.1} parent=11 // pred_check
          %p552 = pneg %p416
        $region78: #{vit_embeddings_forward.1} parent=11 // pred_check_branch
          %554 = sbr.rel (%p552) target = $region80
        $region79: #{vit_embeddings_forward.1} parent=11 // pred_region
          _
        $region80: #{vit_embeddings_forward.1} parent=11 // pred_fallthru
          _
        // Predicated region
        $region81: #{vit_embeddings_forward.1} parent=11 // pred_check
          %p555 = pneg %p437
        $region82: #{vit_embeddings_forward.1} parent=11 // pred_check_branch
          %557 = sbr.rel (%p555) target = $region84
        $region83: #{vit_embeddings_forward.1} parent=11 // pred_region
          _
        $region84: #{vit_embeddings_forward.1} parent=11 // pred_fallthru
          _
      $region12: #{vit_embeddings_forward.1} parent=5 // pred_fallthru
        _
      %p558 = scmp.lt.s32.totalorder %s33, 2
      // Predicated region
      $region85: #{vit_embeddings_forward.1} parent=5 // pred_check
        %p559 = pneg %p558
      $region86: #{vit_embeddings_forward.1} parent=5 // pred_check_branch
        %561 = sbr.rel (%p559) target = $region88
      $region87: #{vit_embeddings_forward.1} parent=5 // pred_region
        // Predicated region
        $region89: #{vit_embeddings_forward.1} parent=87 // pred_check
          %p562 = pneg %p53
        $region90: #{vit_embeddings_forward.1} parent=87 // pred_check_branch
          %564 = sbr.rel (%p562) target = $region92
        $region91: #{vit_embeddings_forward.1} parent=87 // pred_region
          %p565 = scmp.lt.s32.totalorder %s33, 1
          %s566 = scalar_select %p565, %s33, 1
          %s567 = smul.addr %s566, 2
          %s568 = smul.addr %s567, 4
          %s569 = scalar_lea.vmem %s0, %s568
        $region92: #{vit_embeddings_forward.1} parent=87 // pred_fallthru
          _
      $region88: #{vit_embeddings_forward.1} parent=5 // pred_fallthru
        _
      %p570 = scmp.le.s32.totalorder 1, %s33
      %p571 = scmp.lt.s32.totalorder %s33, 3
      %p572 = pnand %p570, %p571
      %p573 = pneg %p572
      // Predicated region
      $region93: #{vit_embeddings_forward.1} parent=5 // pred_check
        _
      $region94: #{vit_embeddings_forward.1} parent=5 // pred_check_branch
        %575 = sbr.rel (%p572) target = $region96
      $region95: #{vit_embeddings_forward.1} parent=5 // pred_region
        %s576 = ssub.s32 %s33, 1
        %p577 = scmp.lt.s32.totalorder %s38, 1
        %s578 = scalar_select %p577, %s38, 1
        %s579 = smul.addr %s578, 2
        %s580 = smul.addr %s579, 4
        %s581 = scalar_lea.vmem %s0, %s580
        %p582 = pneg %p59
        %p583 = pneg %p56
        %p584 = pneg %p80
        %p585 = pneg %p77
        %p586 = pneg %p101
        %p587 = pneg %p98
        %p588 = pneg %p122
        %p589 = pneg %p119
        %p590 = pneg %p143
        %p591 = pneg %p140
        %p592 = pneg %p164
        %p593 = pneg %p161
        %p594 = pneg %p185
        %p595 = pneg %p182
        %p596 = pneg %p206
        %p597 = pneg %p203
        %p598 = pneg %p227
        %p599 = pneg %p224
        %p600 = pneg %p248
        %p601 = pneg %p245
        %p602 = pneg %p269
        %p603 = pneg %p266
        %p604 = pneg %p290
        %p605 = pneg %p287
        %p606 = pneg %p311
        %p607 = pneg %p308
        %p608 = pneg %p332
        %p609 = pneg %p329
        %p610 = pneg %p353
        %p611 = pneg %p350
        %p612 = pneg %p374
        %p613 = pneg %p371
        %p614 = pneg %p395
        %p615 = pneg %p392
        %p616 = pneg %p416
        %p617 = pneg %p413
        %p618 = pneg %p437
        %p619 = pneg %p434
        %p620 = pneg %p463
        %p621 = pneg %p460
        %s622 = sand.u32 %s450, 1
        %s623 = scalar_lea.sflag [#allocation4], %s622
        %s624 = sand.u32 %s450, 1
        %s625 = scalar_lea.vmem [#allocation3], %s624
        %p626 = pneg %p489
        %p627 = pneg %p486
        %s628 = sand.u32 %s476, 1
        %s629 = scalar_lea.sflag [#allocation6], %s628
        %s630 = sand.u32 %s476, 1
        %s631 = scalar_lea.vmem [#allocation5], %s630
        %p632 = scmp.lt.s32.totalorder %s38, 1
        %s633 = scalar_select %p632, %s38, 1
        %s634 = smul.addr %s633, 2
        %s635 = smul.addr %s634, 4
        %s636 = scalar_lea.vmem %s0, %s635
        %v637 = vld [vmem:[%s2] sm:$0x1f]
        %vm638 = vcmask 520192
        %639 = vst.msk [vmem:[#allocation2] sm:$0x1f] %vm638, %v637
        %v640 = vld [vmem:[#allocation2 + $0x1] sm:$0xf]
        %v641 = vld [vmem:[%s636] sm:$0xff]
        %v642 = vld [vmem:[%s1] sm:$0xff]
        %v643 = vld [vmem:[%s1 + $0x8] sm:$0xff]
        %v644 = vld [vmem:[%s1 + $0x10] sm:$0xff]
        %v645 = vld [vmem:[%s1 + $0x18] sm:$0xff]
        %v646 = vld [vmem:[%s1 + $0x20] sm:$0xff]
        %v647 = vld [vmem:[%s1 + $0x28] sm:$0xff]
        %v648 = vld [vmem:[%s1 + $0x30] sm:$0xff]
        %v649 = vld [vmem:[%s1 + $0x38] sm:$0xff]
        %v650 = vld [vmem:[%s1 + $0x40] sm:$0xff]
        %v651 = vld [vmem:[%s1 + $0x48] sm:$0xff]
        %v652 = vld [vmem:[%s1 + $0x50] sm:$0xff]
        %v653 = vld [vmem:[%s1 + $0x58] sm:$0xff]
        %v654 = vld [vmem:[%s1 + $0x60] sm:$0xff]
        %v655 = vld [vmem:[%s1 + $0x68] sm:$0xff]
        %v656 = vld [vmem:[%s1 + $0x70] sm:$0xff]
        %v657 = vld [vmem:[%s1 + $0x78] sm:$0xff]
        %v658 = vld [vmem:[%s1 + $0x80] sm:$0xff]
        %v659 = vld [vmem:[%s1 + $0x88] sm:$0xff]
        %v660 = vld [vmem:[%s1 + $0x90] sm:$0xff]
        %v661 = vld [vmem:[%s1 + $0x98] sm:$0xff]
        %v662 = vld [vmem:[%s1 + $0xa0] sm:$0xff]
        %v663 = vld [vmem:[%s1 + $0xa8] sm:$0xff]
        %v664 = vld [vmem:[%s1 + $0xb0] sm:$0xff]
        %v665 = vld [vmem:[%s1 + $0xb8] sm:$0xff]
        %667 = vst [vmem:[#allocation1] ss:$2 sm:$0xff] %v641
        %v668 = vld.sshfl [vmem:[#allocation1] sm:$0xff pattern:$0x75316420]
        %v669 = vld.sshfl [vmem:[#allocation1 + $0x8] sm:$0xff pattern:$0x75316420]
        %vm671 = vcmask 523264
        %v672 = vsel %vm671, %v669, 0
        %674 = vmatpush.msra.mxu0 %v657
        %675 = vmatpush.msra.mxu0 %v656
        %676 = vmatpush.msra.mxu0 %v655
        %677 = vmatpush.msra.mxu0 %v654
        %678 = vmatpush.msra.mxu0 %v653
        %679 = vmatpush.msra.mxu0 %v652
        %680 = vmatpush.msra.mxu0 %v651
        %681 = vmatpush.msra.mxu0 %v650
        %682 = vmatpush.msra.mxu0 %v649
        %683 = vmatpush.msra.mxu0 %v648
        %684 = vmatpush.msra.mxu0 %v647
        %685 = vmatpush.msra.mxu0 %v646
        %686 = vmatpush.msra.mxu0 %v645
        %687 = vmatpush.msra.mxu0 %v644
        %688 = vmatpush.msra.mxu0 %v643
        %689 = vmatpush.msra.mxu0 %v642
        %690 = vmatmul.f32.gmra.mxu0 %v668
        %v691 = vpop.f32.mrf.mxu0
        %v692 = vadd.f32 0.0, %v691
        %693 = vdwg.mxu0
        %694 = vmatpush.msra.mxu0 0.0
        %695 = vmatpush.msra.mxu0 0.0
        %696 = vmatpush.msra.mxu0 0.0
        %697 = vmatpush.msra.mxu0 0.0
        %698 = vmatpush.msra.mxu0 0.0
        %699 = vmatpush.msra.mxu0 0.0
        %700 = vmatpush.msra.mxu0 0.0
        %701 = vmatpush.msra.mxu0 0.0
        %702 = vmatpush.msra.mxu0 %v665
        %703 = vmatpush.msra.mxu0 %v664
        %704 = vmatpush.msra.mxu0 %v663
        %705 = vmatpush.msra.mxu0 %v662
        %706 = vmatpush.msra.mxu0 %v661
        %707 = vmatpush.msra.mxu0 %v660
        %708 = vmatpush.msra.mxu0 %v659
        %709 = vmatpush.msra.mxu0 %v658
        %710 = vmatmul.f32.gmra.mxu0 %v672
        %v711 = vpop.f32.mrf.mxu0
        %v712 = vadd.f32 %v692, %v711
        %713 = vdwg.mxu0
        %v714 = vadd.f32 %v640, %v712
        %vm715 = vcmask 519168
        %716 = vst.msk [vmem:[#allocation2 + $0x1] sm:$0xf] %vm715, %v714
        %v717 = vld [vmem:[#allocation2] sm:$0x1f]
        %v718 = vld [vmem:[%s3] sm:$0x1]
        %v719 = vld [vmem:[%s4] sm:$0x1]
        %v720 = vsel %vm638, %v717, 0.0
        %721 = vadd.xlane.f32.xlu0 %v720
        %v722 = vpop.xlane.xlu0 %721
        %v723 = vrcp.pop 64.0
        %v724 = vmul.f32 64.0, %v723
        %v725 = vsub.f32 1.0, %v724
        %v726 = vmul.f32 %v723, %v725
        %v727 = vadd.f32 %v723, %v726
        %vm728 = vweird.f32 %v723
        %v729 = vsel %vm728, %v723, %v727
        %v730 = vmul.f32 %v722, %v729
        %v731 = vsub.f32 %v717, %v730
        %v732 = vmul.f32 %v731, %v731
        %v733 = vsel %vm638, %v732, 0.0
        %734 = vadd.xlane.f32.xlu0 %v733
        %v735 = vpop.xlane.xlu0 %734
        %v736 = vmul.f32 %v735, %v729
        %v737 = vadd.f32 %v736, 1e-06
        %v738 = vrsqrt.pop %v737
        %v739 = vmul.f32 %v738, %v737
        %v740 = vmul.f32 %v739, %v738
        %v741 = vmul.f32 0.5, %v740
        %v742 = vsub.f32 1.5, %v741
        %v743 = vmul.f32 %v738, %v742
        %vm744 = vweird.f32 %v737
        %vm745 = vweird.f32 %v738
        %vm746 = vmor %vm744, %vm745
        %v747 = vsel %vm746, %v738, %v743
        %v748 = vmul.f32 %v731, %v747
        %v750 = vperm.slane %v718, 0
        %v752 = vmul.f32 %v748, %v750
        %v754 = vperm.slane %v719, 0
        %v756 = vadd.f32 %v752, %v754
        %v757 = vld [vmem:[%s5] sm:$0xff]
        %v758 = vld [vmem:[%s5 + $0x8] sm:$0xff]
        %v759 = vld [vmem:[%s5 + $0x10] sm:$0xff]
        %v760 = vld [vmem:[%s5 + $0x18] sm:$0xff]
        %v761 = vld [vmem:[%s5 + $0x20] sm:$0xff]
        %v762 = vld [vmem:[%s5 + $0x28] sm:$0xff]
        %v763 = vld [vmem:[%s5 + $0x30] sm:$0xff]
        %v764 = vld [vmem:[%s5 + $0x38] sm:$0xff]
        %v765 = vld [vmem:[%s5 + $0x40] sm:$0xff]
        %v766 = vld [vmem:[%s5 + $0x48] sm:$0xff]
        %v767 = vld [vmem:[%s5 + $0x50] sm:$0xff]
        %v768 = vld [vmem:[%s5 + $0x58] sm:$0xff]
        %v769 = vld [vmem:[%s5 + $0x60] sm:$0xff]
        %v770 = vld [vmem:[%s5 + $0x68] sm:$0xff]
        %v771 = vld [vmem:[%s5 + $0x70] sm:$0xff]
        %v772 = vld [vmem:[%s5 + $0x78] sm:$0xff]
        %v773 = vld [vmem:[%s5 + $0x80] sm:$0xff]
        %v774 = vld [vmem:[%s5 + $0x88] sm:$0xff]
        %v775 = vld [vmem:[%s5 + $0x90] sm:$0xff]
        %v776 = vld [vmem:[%s5 + $0x98] sm:$0xff]
        %v777 = vld [vmem:[%s5 + $0xa0] sm:$0xff]
        %v778 = vld [vmem:[%s5 + $0xa8] sm:$0xff]
        %v779 = vld [vmem:[%s5 + $0xb0] sm:$0xff]
        %v780 = vld [vmem:[%s5 + $0xb8] sm:$0xff]
        %v781 = vld [vmem:[%s5 + $0xc0] sm:$0xff]
        %v782 = vld [vmem:[%s5 + $0xc8] sm:$0xff]
        %v783 = vld [vmem:[%s5 + $0xd0] sm:$0xff]
        %v784 = vld [vmem:[%s5 + $0xd8] sm:$0xff]
        %v785 = vld [vmem:[%s5 + $0xe0] sm:$0xff]
        %v786 = vld [vmem:[%s5 + $0xe8] sm:$0xff]
        %v787 = vld [vmem:[%s5 + $0xf0] sm:$0xff]
        %v788 = vld [vmem:[%s5 + $0xf8] sm:$0xff]
        %v789 = vld [vmem:[%s5 + $0x100] sm:$0xff]
        %v790 = vld [vmem:[%s5 + $0x108] sm:$0xff]
        %v791 = vld [vmem:[%s5 + $0x110] sm:$0xff]
        %v792 = vld [vmem:[%s5 + $0x118] sm:$0xff]
        %v793 = vld [vmem:[%s5 + $0x120] sm:$0xff]
        %v794 = vld [vmem:[%s5 + $0x128] sm:$0xff]
        %v795 = vld [vmem:[%s5 + $0x130] sm:$0xff]
        %v796 = vld [vmem:[%s5 + $0x138] sm:$0xff]
        %v797 = vld [vmem:[%s5 + $0x140] sm:$0xff]
        %v798 = vld [vmem:[%s5 + $0x148] sm:$0xff]
        %v799 = vld [vmem:[%s5 + $0x150] sm:$0xff]
        %v800 = vld [vmem:[%s5 + $0x158] sm:$0xff]
        %v801 = vld [vmem:[%s5 + $0x160] sm:$0xff]
        %v802 = vld [vmem:[%s5 + $0x168] sm:$0xff]
        %v803 = vld [vmem:[%s5 + $0x170] sm:$0xff]
        %v804 = vld [vmem:[%s5 + $0x178] sm:$0xff]
        %v805 = vld [vmem:[%s5 + $0x180] sm:$0xff]
        %v806 = vld [vmem:[%s5 + $0x188] sm:$0xff]
        %v807 = vld [vmem:[%s5 + $0x190] sm:$0xff]
        %v808 = vld [vmem:[%s5 + $0x198] sm:$0xff]
        %v809 = vld [vmem:[%s5 + $0x1a0] sm:$0xff]
        %v810 = vld [vmem:[%s5 + $0x1a8] sm:$0xff]
        %v811 = vld [vmem:[%s5 + $0x1b0] sm:$0xff]
        %v812 = vld [vmem:[%s5 + $0x1b8] sm:$0xff]
        %v813 = vld [vmem:[%s5 + $0x1c0] sm:$0xff]
        %v814 = vld [vmem:[%s5 + $0x1c8] sm:$0xff]
        %v815 = vld [vmem:[%s5 + $0x1d0] sm:$0xff]
        %v816 = vld [vmem:[%s5 + $0x1d8] sm:$0xff]
        %v817 = vld [vmem:[%s5 + $0x1e0] sm:$0xff]
        %v818 = vld [vmem:[%s5 + $0x1e8] sm:$0xff]
        %v819 = vld [vmem:[%s5 + $0x1f0] sm:$0xff]
        %v820 = vld [vmem:[%s5 + $0x1f8] sm:$0xff]
        %v821 = vld [vmem:[%s5 + $0x200] sm:$0xff]
        %v822 = vld [vmem:[%s5 + $0x208] sm:$0xff]
        %v823 = vld [vmem:[%s5 + $0x210] sm:$0xff]
        %v824 = vld [vmem:[%s5 + $0x218] sm:$0xff]
        %v825 = vld [vmem:[%s5 + $0x220] sm:$0xff]
        %v826 = vld [vmem:[%s5 + $0x228] sm:$0xff]
        %v827 = vld [vmem:[%s5 + $0x230] sm:$0xff]
        %v828 = vld [vmem:[%s5 + $0x238] sm:$0xff]
        %v829 = vld [vmem:[%s5 + $0x240] sm:$0xff]
        %v830 = vld [vmem:[%s5 + $0x248] sm:$0xff]
        %v831 = vld [vmem:[%s5 + $0x250] sm:$0xff]
        %v832 = vld [vmem:[%s5 + $0x258] sm:$0xff]
        %v833 = vld [vmem:[%s5 + $0x260] sm:$0xff]
        %v834 = vld [vmem:[%s5 + $0x268] sm:$0xff]
        %v835 = vld [vmem:[%s5 + $0x270] sm:$0xff]
        %v836 = vld [vmem:[%s5 + $0x278] sm:$0xff]
        %v837 = vld [vmem:[%s5 + $0x280] sm:$0xff]
        %v838 = vld [vmem:[%s5 + $0x288] sm:$0xff]
        %v839 = vld [vmem:[%s5 + $0x290] sm:$0xff]
        %v840 = vld [vmem:[%s5 + $0x298] sm:$0xff]
        %v841 = vld [vmem:[%s5 + $0x2a0] sm:$0xff]
        %v842 = vld [vmem:[%s5 + $0x2a8] sm:$0xff]
        %v843 = vld [vmem:[%s5 + $0x2b0] sm:$0xff]
        %v844 = vld [vmem:[%s5 + $0x2b8] sm:$0xff]
        %v845 = vld [vmem:[%s5 + $0x2c0] sm:$0xff]
        %v846 = vld [vmem:[%s5 + $0x2c8] sm:$0xff]
        %v847 = vld [vmem:[%s5 + $0x2d0] sm:$0xff]
        %v848 = vld [vmem:[%s5 + $0x2d8] sm:$0xff]
        %v849 = vld [vmem:[%s5 + $0x2e0] sm:$0xff]
        %v850 = vld [vmem:[%s5 + $0x2e8] sm:$0xff]
        %v851 = vld [vmem:[%s5 + $0x2f0] sm:$0xff]
        %v852 = vld [vmem:[%s5 + $0x2f8] sm:$0xff]
        %v853 = vld [vmem:[%s6] sm:$0x1]
        %v854 = vld [vmem:[%s6 + $0x1] sm:$0x1]
        %v855 = vld [vmem:[%s6 + $0x2] sm:$0x1]
        %v856 = vld [vmem:[%s6 + $0x3] sm:$0x1]
        %v857 = vld [vmem:[%s6 + $0x4] sm:$0x1]
        %v858 = vld [vmem:[%s6 + $0x5] sm:$0x1]
        %v859 = vld [vmem:[%s6 + $0x6] sm:$0x1]
        %v860 = vld [vmem:[%s6 + $0x7] sm:$0x1]
        %v861 = vld [vmem:[%s6 + $0x8] sm:$0x1]
        %v862 = vld [vmem:[%s6 + $0x9] sm:$0x1]
        %v863 = vld [vmem:[%s6 + $0xa] sm:$0x1]
        %v864 = vld [vmem:[%s6 + $0xb] sm:$0x1]
        %v877 = vperm.slane %v853, 0
        %v878 = vperm.slane %v854, 0
        %v879 = vperm.slane %v855, 0
        %v880 = vperm.slane %v856, 0
        %v881 = vperm.slane %v857, 0
        %v882 = vperm.slane %v858, 0
        %v883 = vperm.slane %v859, 0
        %v884 = vperm.slane %v860, 0
        %v885 = vperm.slane %v861, 0
        %v886 = vperm.slane %v862, 0
        %v887 = vperm.slane %v863, 0
        %v888 = vperm.slane %v864, 0
        %v902 = vsel %vm671, %v756, 0
        %904 = vmatpush.msra.mxu0 0.0
        %905 = vmatpush.msra.mxu0 0.0
        %906 = vmatpush.msra.mxu0 0.0
        %907 = vmatpush.msra.mxu0 0.0
        %908 = vmatpush.msra.mxu0 0.0
        %909 = vmatpush.msra.mxu0 0.0
        %910 = vmatpush.msra.mxu0 0.0
        %911 = vmatpush.msra.mxu0 0.0
        %912 = vmatpush.msra.mxu0 %v764
        %913 = vmatpush.msra.mxu0 %v763
        %914 = vmatpush.msra.mxu0 %v762
        %915 = vmatpush.msra.mxu0 %v761
        %916 = vmatpush.msra.mxu0 %v760
        %917 = vmatpush.msra.mxu0 %v759
        %918 = vmatpush.msra.mxu0 %v758
        %919 = vmatpush.msra.mxu0 %v757
        %920 = vmatmul.f32.gmra.mxu0 %v902
        %v921 = vpop.f32.mrf.mxu0
        %v922 = vadd.f32 %v877, %v921
        %923 = vdwg.mxu0
        %924 = vmatpush.msra.mxu0 0.0
        %925 = vmatpush.msra.mxu0 0.0
        %926 = vmatpush.msra.mxu0 0.0
        %927 = vmatpush.msra.mxu0 0.0
        %928 = vmatpush.msra.mxu0 0.0
        %929 = vmatpush.msra.mxu0 0.0
        %930 = vmatpush.msra.mxu0 0.0
        %931 = vmatpush.msra.mxu0 0.0
        %932 = vmatpush.msra.mxu0 %v772
        %933 = vmatpush.msra.mxu0 %v771
        %934 = vmatpush.msra.mxu0 %v770
        %935 = vmatpush.msra.mxu0 %v769
        %936 = vmatpush.msra.mxu0 %v768
        %937 = vmatpush.msra.mxu0 %v767
        %938 = vmatpush.msra.mxu0 %v766
        %939 = vmatpush.msra.mxu0 %v765
        %940 = vmatmul.f32.gmra.mxu0 %v902
        %v941 = vpop.f32.mrf.mxu0
        %v942 = vadd.f32 %v878, %v941
        %943 = vdwg.mxu0
        %944 = vmatpush.msra.mxu0 0.0
        %945 = vmatpush.msra.mxu0 0.0
        %946 = vmatpush.msra.mxu0 0.0
        %947 = vmatpush.msra.mxu0 0.0
        %948 = vmatpush.msra.mxu0 0.0
        %949 = vmatpush.msra.mxu0 0.0
        %950 = vmatpush.msra.mxu0 0.0
        %951 = vmatpush.msra.mxu0 0.0
        %952 = vmatpush.msra.mxu0 %v780
        %953 = vmatpush.msra.mxu0 %v779
        %954 = vmatpush.msra.mxu0 %v778
        %955 = vmatpush.msra.mxu0 %v777
        %956 = vmatpush.msra.mxu0 %v776
        %957 = vmatpush.msra.mxu0 %v775
        %958 = vmatpush.msra.mxu0 %v774
        %959 = vmatpush.msra.mxu0 %v773
        %960 = vmatmul.f32.gmra.mxu0 %v902
        %v961 = vpop.f32.mrf.mxu0
        %v962 = vadd.f32 %v879, %v961
        %963 = vdwg.mxu0
        %964 = vmatpush.msra.mxu0 0.0
        %965 = vmatpush.msra.mxu0 0.0
        %966 = vmatpush.msra.mxu0 0.0
        %967 = vmatpush.msra.mxu0 0.0
        %968 = vmatpush.msra.mxu0 0.0
        %969 = vmatpush.msra.mxu0 0.0
        %970 = vmatpush.msra.mxu0 0.0
        %971 = vmatpush.msra.mxu0 0.0
        %972 = vmatpush.msra.mxu0 %v788
        %973 = vmatpush.msra.mxu0 %v787
        %974 = vmatpush.msra.mxu0 %v786
        %975 = vmatpush.msra.mxu0 %v785
        %976 = vmatpush.msra.mxu0 %v784
        %977 = vmatpush.msra.mxu0 %v783
        %978 = vmatpush.msra.mxu0 %v782
        %979 = vmatpush.msra.mxu0 %v781
        %980 = vmatmul.f32.gmra.mxu0 %v902
        %v981 = vpop.f32.mrf.mxu0
        %v982 = vadd.f32 %v880, %v981
        %983 = vdwg.mxu0
        %984 = vmatpush.msra.mxu0 0.0
        %985 = vmatpush.msra.mxu0 0.0
        %986 = vmatpush.msra.mxu0 0.0
        %987 = vmatpush.msra.mxu0 0.0
        %988 = vmatpush.msra.mxu0 0.0
        %989 = vmatpush.msra.mxu0 0.0
        %990 = vmatpush.msra.mxu0 0.0
        %991 = vmatpush.msra.mxu0 0.0
        %992 = vmatpush.msra.mxu0 %v796
        %993 = vmatpush.msra.mxu0 %v795
        %994 = vmatpush.msra.mxu0 %v794
        %995 = vmatpush.msra.mxu0 %v793
        %996 = vmatpush.msra.mxu0 %v792
        %997 = vmatpush.msra.mxu0 %v791
        %998 = vmatpush.msra.mxu0 %v790
        %999 = vmatpush.msra.mxu0 %v789
        %1000 = vmatmul.f32.gmra.mxu0 %v902
        %v1001 = vpop.f32.mrf.mxu0
        %v1002 = vadd.f32 %v881, %v1001
        %1003 = vdwg.mxu0
        %1004 = vmatpush.msra.mxu0 0.0
        %1005 = vmatpush.msra.mxu0 0.0
        %1006 = vmatpush.msra.mxu0 0.0
        %1007 = vmatpush.msra.mxu0 0.0
        %1008 = vmatpush.msra.mxu0 0.0
        %1009 = vmatpush.msra.mxu0 0.0
        %1010 = vmatpush.msra.mxu0 0.0
        %1011 = vmatpush.msra.mxu0 0.0
        %1012 = vmatpush.msra.mxu0 %v804
        %1013 = vmatpush.msra.mxu0 %v803
        %1014 = vmatpush.msra.mxu0 %v802
        %1015 = vmatpush.msra.mxu0 %v801
        %1016 = vmatpush.msra.mxu0 %v800
        %1017 = vmatpush.msra.mxu0 %v799
        %1018 = vmatpush.msra.mxu0 %v798
        %1019 = vmatpush.msra.mxu0 %v797
        %1020 = vmatmul.f32.gmra.mxu0 %v902
        %v1021 = vpop.f32.mrf.mxu0
        %v1022 = vadd.f32 %v882, %v1021
        %1023 = vdwg.mxu0
        %1024 = vmatpush.msra.mxu0 0.0
        %1025 = vmatpush.msra.mxu0 0.0
        %1026 = vmatpush.msra.mxu0 0.0
        %1027 = vmatpush.msra.mxu0 0.0
        %1028 = vmatpush.msra.mxu0 0.0
        %1029 = vmatpush.msra.mxu0 0.0
        %1030 = vmatpush.msra.mxu0 0.0
        %1031 = vmatpush.msra.mxu0 0.0
        %1032 = vmatpush.msra.mxu0 %v812
        %1033 = vmatpush.msra.mxu0 %v811
        %1034 = vmatpush.msra.mxu0 %v810
        %1035 = vmatpush.msra.mxu0 %v809
        %1036 = vmatpush.msra.mxu0 %v808
        %1037 = vmatpush.msra.mxu0 %v807
        %1038 = vmatpush.msra.mxu0 %v806
        %1039 = vmatpush.msra.mxu0 %v805
        %1040 = vmatmul.f32.gmra.mxu0 %v902
        %v1041 = vpop.f32.mrf.mxu0
        %v1042 = vadd.f32 %v883, %v1041
        %1043 = vdwg.mxu0
        %1044 = vmatpush.msra.mxu0 0.0
        %1045 = vmatpush.msra.mxu0 0.0
        %1046 = vmatpush.msra.mxu0 0.0
        %1047 = vmatpush.msra.mxu0 0.0
        %1048 = vmatpush.msra.mxu0 0.0
        %1049 = vmatpush.msra.mxu0 0.0
        %1050 = vmatpush.msra.mxu0 0.0
        %1051 = vmatpush.msra.mxu0 0.0
        %1052 = vmatpush.msra.mxu0 %v820
        %1053 = vmatpush.msra.mxu0 %v819
        %1054 = vmatpush.msra.mxu0 %v818
        %1055 = vmatpush.msra.mxu0 %v817
        %1056 = vmatpush.msra.mxu0 %v816
        %1057 = vmatpush.msra.mxu0 %v815
        %1058 = vmatpush.msra.mxu0 %v814
        %1059 = vmatpush.msra.mxu0 %v813
        %1060 = vmatmul.f32.gmra.mxu0 %v902
        %v1061 = vpop.f32.mrf.mxu0
        %v1062 = vadd.f32 %v884, %v1061
        %1063 = vdwg.mxu0
        %1064 = vmatpush.msra.mxu0 0.0
        %1065 = vmatpush.msra.mxu0 0.0
        %1066 = vmatpush.msra.mxu0 0.0
        %1067 = vmatpush.msra.mxu0 0.0
        %1068 = vmatpush.msra.mxu0 0.0
        %1069 = vmatpush.msra.mxu0 0.0
        %1070 = vmatpush.msra.mxu0 0.0
        %1071 = vmatpush.msra.mxu0 0.0
        %1072 = vmatpush.msra.mxu0 %v828
        %1073 = vmatpush.msra.mxu0 %v827
        %1074 = vmatpush.msra.mxu0 %v826
        %1075 = vmatpush.msra.mxu0 %v825
        %1076 = vmatpush.msra.mxu0 %v824
        %1077 = vmatpush.msra.mxu0 %v823
        %1078 = vmatpush.msra.mxu0 %v822
        %1079 = vmatpush.msra.mxu0 %v821
        %1080 = vmatmul.f32.gmra.mxu0 %v902
        %v1081 = vpop.f32.mrf.mxu0
        %v1082 = vadd.f32 %v885, %v1081
        %1083 = vdwg.mxu0
        %1084 = vmatpush.msra.mxu0 0.0
        %1085 = vmatpush.msra.mxu0 0.0
        %1086 = vmatpush.msra.mxu0 0.0
        %1087 = vmatpush.msra.mxu0 0.0
        %1088 = vmatpush.msra.mxu0 0.0
        %1089 = vmatpush.msra.mxu0 0.0
        %1090 = vmatpush.msra.mxu0 0.0
        %1091 = vmatpush.msra.mxu0 0.0
        %1092 = vmatpush.msra.mxu0 %v836
        %1093 = vmatpush.msra.mxu0 %v835
        %1094 = vmatpush.msra.mxu0 %v834
        %1095 = vmatpush.msra.mxu0 %v833
        %1096 = vmatpush.msra.mxu0 %v832
        %1097 = vmatpush.msra.mxu0 %v831
        %1098 = vmatpush.msra.mxu0 %v830
        %1099 = vmatpush.msra.mxu0 %v829
        %1100 = vmatmul.f32.gmra.mxu0 %v902
        %v1101 = vpop.f32.mrf.mxu0
        %v1102 = vadd.f32 %v886, %v1101
        %1103 = vdwg.mxu0
        %1104 = vmatpush.msra.mxu0 0.0
        %1105 = vmatpush.msra.mxu0 0.0
        %1106 = vmatpush.msra.mxu0 0.0
        %1107 = vmatpush.msra.mxu0 0.0
        %1108 = vmatpush.msra.mxu0 0.0
        %1109 = vmatpush.msra.mxu0 0.0
        %1110 = vmatpush.msra.mxu0 0.0
        %1111 = vmatpush.msra.mxu0 0.0
        %1112 = vmatpush.msra.mxu0 %v844
        %1113 = vmatpush.msra.mxu0 %v843
        %1114 = vmatpush.msra.mxu0 %v842
        %1115 = vmatpush.msra.mxu0 %v841
        %1116 = vmatpush.msra.mxu0 %v840
        %1117 = vmatpush.msra.mxu0 %v839
        %1118 = vmatpush.msra.mxu0 %v838
        %1119 = vmatpush.msra.mxu0 %v837
        %1120 = vmatmul.f32.gmra.mxu0 %v902
        %v1121 = vpop.f32.mrf.mxu0
        %v1122 = vadd.f32 %v887, %v1121
        %1123 = vdwg.mxu0
        %1124 = vmatpush.msra.mxu0 0.0
        %1125 = vmatpush.msra.mxu0 0.0
        %1126 = vmatpush.msra.mxu0 0.0
        %1127 = vmatpush.msra.mxu0 0.0
        %1128 = vmatpush.msra.mxu0 0.0
        %1129 = vmatpush.msra.mxu0 0.0
        %1130 = vmatpush.msra.mxu0 0.0
        %1131 = vmatpush.msra.mxu0 0.0
        %1132 = vmatpush.msra.mxu0 %v852
        %1133 = vmatpush.msra.mxu0 %v851
        %1134 = vmatpush.msra.mxu0 %v850
        %1135 = vmatpush.msra.mxu0 %v849
        %1136 = vmatpush.msra.mxu0 %v848
        %1137 = vmatpush.msra.mxu0 %v847
        %1138 = vmatpush.msra.mxu0 %v846
        %1139 = vmatpush.msra.mxu0 %v845
        %1140 = vmatmul.f32.gmra.mxu0 %v902
        %v1141 = vpop.f32.mrf.mxu0
        %v1142 = vadd.f32 %v888, %v1141
        %1143 = vdwg.mxu0
        %vm1144 = vcmask 130048
        %v1146 = vsel %vm1144, %v922, 0
        %v1149 = vsel %vm1144, %v1002, 0
        %1151 = vmatpush.xpose.msra.mxu0 0.0
        %1152 = vmatpush.xpose.msra.mxu0 0.0
        %1153 = vmatpush.xpose.msra.mxu0 0.0
        %1154 = vmatpush.xpose.msra.mxu0 0.0
        %1155 = vmatpush.xpose.msra.mxu0 0.0
        %1156 = vmatpush.xpose.msra.mxu0 0.0
        %1157 = vmatpush.xpose.msra.mxu0 0.0
        %1158 = vmatpush.xpose.msra.mxu0 0.0
        %1159 = vmatpush.xpose.msra.mxu0 0.0
        %1160 = vmatpush.xpose.msra.mxu0 0.0
        %1161 = vmatpush.xpose.msra.mxu0 0.0
        %1162 = vmatpush.xpose.msra.mxu0 0.0
        %1163 = vmatpush.xpose.msra.mxu0 0.0
        %1164 = vmatpush.xpose.msra.mxu0 0.0
        %1165 = vmatpush.xpose.msra.mxu0 0.0
        %1166 = vmatpush.xpose.msra.mxu0 %v1149
        %1167 = vmatmul.f32.gmra.mxu0 %v1146
        %v1168 = vpop.f32.mrf.mxu0
        %v1169 = vadd.f32 0.0, %v1168
        %1170 = vdwg.mxu0
        %v1172 = vsel %vm1144, %v942, 0
        %v1175 = vsel %vm1144, %v1022, 0
        %1177 = vmatpush.xpose.msra.mxu0 0.0
        %1178 = vmatpush.xpose.msra.mxu0 0.0
        %1179 = vmatpush.xpose.msra.mxu0 0.0
        %1180 = vmatpush.xpose.msra.mxu0 0.0
        %1181 = vmatpush.xpose.msra.mxu0 0.0
        %1182 = vmatpush.xpose.msra.mxu0 0.0
        %1183 = vmatpush.xpose.msra.mxu0 0.0
        %1184 = vmatpush.xpose.msra.mxu0 0.0
        %1185 = vmatpush.xpose.msra.mxu0 0.0
        %1186 = vmatpush.xpose.msra.mxu0 0.0
        %1187 = vmatpush.xpose.msra.mxu0 0.0
        %1188 = vmatpush.xpose.msra.mxu0 0.0
        %1189 = vmatpush.xpose.msra.mxu0 0.0
        %1190 = vmatpush.xpose.msra.mxu0 0.0
        %1191 = vmatpush.xpose.msra.mxu0 0.0
        %1192 = vmatpush.xpose.msra.mxu0 %v1175
        %1193 = vmatmul.f32.gmra.mxu0 %v1172
        %v1194 = vpop.f32.mrf.mxu0
        %v1195 = vadd.f32 0.0, %v1194
        %1196 = vdwg.mxu0
        %v1198 = vsel %vm1144, %v962, 0
        %v1201 = vsel %vm1144, %v1042, 0
        %1203 = vmatpush.xpose.msra.mxu0 0.0
        %1204 = vmatpush.xpose.msra.mxu0 0.0
        %1205 = vmatpush.xpose.msra.mxu0 0.0
        %1206 = vmatpush.xpose.msra.mxu0 0.0
        %1207 = vmatpush.xpose.msra.mxu0 0.0
        %1208 = vmatpush.xpose.msra.mxu0 0.0
        %1209 = vmatpush.xpose.msra.mxu0 0.0
        %1210 = vmatpush.xpose.msra.mxu0 0.0
        %1211 = vmatpush.xpose.msra.mxu0 0.0
        %1212 = vmatpush.xpose.msra.mxu0 0.0
        %1213 = vmatpush.xpose.msra.mxu0 0.0
        %1214 = vmatpush.xpose.msra.mxu0 0.0
        %1215 = vmatpush.xpose.msra.mxu0 0.0
        %1216 = vmatpush.xpose.msra.mxu0 0.0
        %1217 = vmatpush.xpose.msra.mxu0 0.0
        %1218 = vmatpush.xpose.msra.mxu0 %v1201
        %1219 = vmatmul.f32.gmra.mxu0 %v1198
        %v1220 = vpop.f32.mrf.mxu0
        %v1221 = vadd.f32 0.0, %v1220
        %1222 = vdwg.mxu0
        %v1224 = vsel %vm1144, %v982, 0
        %v1227 = vsel %vm1144, %v1062, 0
        %1229 = vmatpush.xpose.msra.mxu0 0.0
        %1230 = vmatpush.xpose.msra.mxu0 0.0
        %1231 = vmatpush.xpose.msra.mxu0 0.0
        %1232 = vmatpush.xpose.msra.mxu0 0.0
        %1233 = vmatpush.xpose.msra.mxu0 0.0
        %1234 = vmatpush.xpose.msra.mxu0 0.0
        %1235 = vmatpush.xpose.msra.mxu0 0.0
        %1236 = vmatpush.xpose.msra.mxu0 0.0
        %1237 = vmatpush.xpose.msra.mxu0 0.0
        %1238 = vmatpush.xpose.msra.mxu0 0.0
        %1239 = vmatpush.xpose.msra.mxu0 0.0
        %1240 = vmatpush.xpose.msra.mxu0 0.0
        %1241 = vmatpush.xpose.msra.mxu0 0.0
        %1242 = vmatpush.xpose.msra.mxu0 0.0
        %1243 = vmatpush.xpose.msra.mxu0 0.0
        %1244 = vmatpush.xpose.msra.mxu0 %v1227
        %1245 = vmatmul.f32.gmra.mxu0 %v1224
        %v1246 = vpop.f32.mrf.mxu0
        %v1247 = vadd.f32 0.0, %v1246
        %1248 = vdwg.mxu0
        %vm1249 = vcmask 36864
        %v1250 = vsel %vm1249, %v1169, -inf
        %1251 = vmax.xlane.f32.xlu0 %v1250
        %v1252 = vpop.xlane.xlu0 %1251
        %v1253 = vsel %vm1249, %v1195, -inf
        %1254 = vmax.xlane.f32.xlu0 %v1253
        %v1255 = vpop.xlane.xlu0 %1254
        %v1256 = vsel %vm1249, %v1221, -inf
        %1257 = vmax.xlane.f32.xlu0 %v1256
        %v1258 = vpop.xlane.xlu0 %1257
        %v1259 = vsel %vm1249, %v1247, -inf
        %1260 = vmax.xlane.f32.xlu0 %v1259
        %v1261 = vpop.xlane.xlu0 %1260
        %v1262 = vsub.f32 %v1169, %v1252
        %v1263 = vsub.f32 %v1195, %v1255
        %v1264 = vsub.f32 %v1221, %v1258
        %v1265 = vsub.f32 %v1247, %v1261
        %v1266 = vmul.f32 %v1262, 1.442695
        %v1267 = vpow.pop %v1266
        %v1268 = vmul.f32 %v1263, 1.442695
        %v1269 = vpow.pop %v1268
        %v1270 = vmul.f32 %v1264, 1.442695
        %v1271 = vpow.pop %v1270
        %v1272 = vmul.f32 %v1265, 1.442695
        %v1273 = vpow.pop %v1272
        %v1274 = vsel %vm1249, %v1267, 0.0
        %1275 = vadd.xlane.f32.xlu0 %v1274
        %v1276 = vpop.xlane.xlu0 %1275
        %v1277 = vsel %vm1249, %v1269, 0.0
        %1278 = vadd.xlane.f32.xlu0 %v1277
        %v1279 = vpop.xlane.xlu0 %1278
        %v1280 = vsel %vm1249, %v1271, 0.0
        %1281 = vadd.xlane.f32.xlu0 %v1280
        %v1282 = vpop.xlane.xlu0 %1281
        %v1283 = vsel %vm1249, %v1273, 0.0
        %1284 = vadd.xlane.f32.xlu0 %v1283
        %v1285 = vpop.xlane.xlu0 %1284
        %v1286 = vrcp.pop %v1276
        %v1287 = vrcp.pop %v1279
        %v1288 = vrcp.pop %v1282
        %v1289 = vrcp.pop %v1285
        %v1290 = vmul.f32 %v1267, %v1286
        %v1291 = vmul.f32 %v1269, %v1287
        %v1292 = vmul.f32 %v1271, %v1288
        %v1293 = vmul.f32 %v1273, %v1289
        %vm1294 = vcmask 39936
        %v1296 = vsel %vm1294, %v1290, 0
        %vm1298 = vcmask 1044480
        %v1300 = vsel %vm1298, %v1082, 0
        %1302 = vmatpush.msra.mxu0 0.0
        %1303 = vmatpush.msra.mxu0 0.0
        %1304 = vmatpush.msra.mxu0 0.0
        %1305 = vmatpush.msra.mxu0 0.0
        %1306 = vmatpush.msra.mxu0 0.0
        %1307 = vmatpush.msra.mxu0 0.0
        %1308 = vmatpush.msra.mxu0 0.0
        %1309 = vmatpush.msra.mxu0 0.0
        %1310 = vmatpush.msra.mxu0 0.0
        %1311 = vmatpush.msra.mxu0 0.0
        %1312 = vmatpush.msra.mxu0 0.0
        %1313 = vmatpush.msra.mxu0 0.0
        %1314 = vmatpush.msra.mxu0 0.0
        %1315 = vmatpush.msra.mxu0 0.0
        %1316 = vmatpush.msra.mxu0 0.0
        %1317 = vmatpush.msra.mxu0 %v1300
        %1318 = vmatmul.f32.gmra.mxu0 %v1296
        %v1319 = vpop.f32.mrf.mxu0
        %v1320 = vadd.f32 0.0, %v1319
        %1321 = vdwg.mxu0
        %v1323 = vsel %vm1294, %v1291, 0
        %v1326 = vsel %vm1298, %v1102, 0
        %1328 = vmatpush.msra.mxu0 0.0
        %1329 = vmatpush.msra.mxu0 0.0
        %1330 = vmatpush.msra.mxu0 0.0
        %1331 = vmatpush.msra.mxu0 0.0
        %1332 = vmatpush.msra.mxu0 0.0
        %1333 = vmatpush.msra.mxu0 0.0
        %1334 = vmatpush.msra.mxu0 0.0
        %1335 = vmatpush.msra.mxu0 0.0
        %1336 = vmatpush.msra.mxu0 0.0
        %1337 = vmatpush.msra.mxu0 0.0
        %1338 = vmatpush.msra.mxu0 0.0
        %1339 = vmatpush.msra.mxu0 0.0
        %1340 = vmatpush.msra.mxu0 0.0
        %1341 = vmatpush.msra.mxu0 0.0
        %1342 = vmatpush.msra.mxu0 0.0
        %1343 = vmatpush.msra.mxu0 %v1326
        %1344 = vmatmul.f32.gmra.mxu0 %v1323
        %v1345 = vpop.f32.mrf.mxu0
        %v1346 = vadd.f32 0.0, %v1345
        %1347 = vdwg.mxu0
        %v1349 = vsel %vm1294, %v1292, 0
        %v1352 = vsel %vm1298, %v1122, 0
        %1354 = vmatpush.msra.mxu0 0.0
        %1355 = vmatpush.msra.mxu0 0.0
        %1356 = vmatpush.msra.mxu0 0.0
        %1357 = vmatpush.msra.mxu0 0.0
        %1358 = vmatpush.msra.mxu0 0.0
        %1359 = vmatpush.msra.mxu0 0.0
        %1360 = vmatpush.msra.mxu0 0.0
        %1361 = vmatpush.msra.mxu0 0.0
        %1362 = vmatpush.msra.mxu0 0.0
        %1363 = vmatpush.msra.mxu0 0.0
        %1364 = vmatpush.msra.mxu0 0.0
        %1365 = vmatpush.msra.mxu0 0.0
        %1366 = vmatpush.msra.mxu0 0.0
        %1367 = vmatpush.msra.mxu0 0.0
        %1368 = vmatpush.msra.mxu0 0.0
        %1369 = vmatpush.msra.mxu0 %v1352
        %1370 = vmatmul.f32.gmra.mxu0 %v1349
        %v1371 = vpop.f32.mrf.mxu0
        %v1372 = vadd.f32 0.0, %v1371
        %1373 = vdwg.mxu0
        %v1375 = vsel %vm1294, %v1293, 0
        %v1378 = vsel %vm1298, %v1142, 0
        %1380 = vmatpush.msra.mxu0 0.0
        %1381 = vmatpush.msra.mxu0 0.0
        %1382 = vmatpush.msra.mxu0 0.0
        %1383 = vmatpush.msra.mxu0 0.0
        %1384 = vmatpush.msra.mxu0 0.0
        %1385 = vmatpush.msra.mxu0 0.0
        %1386 = vmatpush.msra.mxu0 0.0
        %1387 = vmatpush.msra.mxu0 0.0
        %1388 = vmatpush.msra.mxu0 0.0
        %1389 = vmatpush.msra.mxu0 0.0
        %1390 = vmatpush.msra.mxu0 0.0
        %1391 = vmatpush.msra.mxu0 0.0
        %1392 = vmatpush.msra.mxu0 0.0
        %1393 = vmatpush.msra.mxu0 0.0
        %1394 = vmatpush.msra.mxu0 0.0
        %1395 = vmatpush.msra.mxu0 %v1378
        %1396 = vmatmul.f32.gmra.mxu0 %v1375
        %v1397 = vpop.f32.mrf.mxu0
        %v1398 = vadd.f32 0.0, %v1397
        %1399 = vdwg.mxu0
        %v1400 = vld [vmem:[%s7] sm:$0xff]
        %v1401 = vld [vmem:[%s7 + $0x8] sm:$0xff]
        %v1402 = vld [vmem:[%s7 + $0x10] sm:$0xff]
        %v1403 = vld [vmem:[%s7 + $0x18] sm:$0xff]
        %v1404 = vld [vmem:[%s7 + $0x20] sm:$0xff]
        %v1405 = vld [vmem:[%s7 + $0x28] sm:$0xff]
        %v1406 = vld [vmem:[%s7 + $0x30] sm:$0xff]
        %v1407 = vld [vmem:[%s7 + $0x38] sm:$0xff]
        %v1409 = vsel %vm1144, %v1320, 0
        %1411 = vmatpush.msra.mxu0 0.0
        %1412 = vmatpush.msra.mxu0 0.0
        %1413 = vmatpush.msra.mxu0 0.0
        %1414 = vmatpush.msra.mxu0 0.0
        %1415 = vmatpush.msra.mxu0 0.0
        %1416 = vmatpush.msra.mxu0 0.0
        %1417 = vmatpush.msra.mxu0 0.0
        %1418 = vmatpush.msra.mxu0 0.0
        %1419 = vmatpush.msra.mxu0 0.0
        %1420 = vmatpush.msra.mxu0 0.0
        %1421 = vmatpush.msra.mxu0 0.0
        %1422 = vmatpush.msra.mxu0 0.0
        %1423 = vmatpush.msra.mxu0 0.0
        %1424 = vmatpush.msra.mxu0 0.0
        %1425 = vmatpush.msra.mxu0 %v1401
        %1426 = vmatpush.msra.mxu0 %v1400
        %1427 = vmatmul.f32.gmra.mxu0 %v1409
        %v1428 = vpop.f32.mrf.mxu0
        %v1429 = vadd.f32 0.0, %v1428
        %1430 = vdwg.mxu0
        %v1432 = vsel %vm1144, %v1346, 0
        %1434 = vmatpush.msra.mxu0 0.0
        %1435 = vmatpush.msra.mxu0 0.0
        %1436 = vmatpush.msra.mxu0 0.0
        %1437 = vmatpush.msra.mxu0 0.0
        %1438 = vmatpush.msra.mxu0 0.0
        %1439 = vmatpush.msra.mxu0 0.0
        %1440 = vmatpush.msra.mxu0 0.0
        %1441 = vmatpush.msra.mxu0 0.0
        %1442 = vmatpush.msra.mxu0 0.0
        %1443 = vmatpush.msra.mxu0 0.0
        %1444 = vmatpush.msra.mxu0 0.0
        %1445 = vmatpush.msra.mxu0 0.0
        %1446 = vmatpush.msra.mxu0 0.0
        %1447 = vmatpush.msra.mxu0 0.0
        %1448 = vmatpush.msra.mxu0 %v1403
        %1449 = vmatpush.msra.mxu0 %v1402
        %1450 = vmatmul.f32.gmra.mxu0 %v1432
        %v1451 = vpop.f32.mrf.mxu0
        %v1452 = vadd.f32 0.0, %v1451
        %1453 = vdwg.mxu0
        %v1455 = vsel %vm1144, %v1372, 0
        %1457 = vmatpush.msra.mxu0 0.0
        %1458 = vmatpush.msra.mxu0 0.0
        %1459 = vmatpush.msra.mxu0 0.0
        %1460 = vmatpush.msra.mxu0 0.0
        %1461 = vmatpush.msra.mxu0 0.0
        %1462 = vmatpush.msra.mxu0 0.0
        %1463 = vmatpush.msra.mxu0 0.0
        %1464 = vmatpush.msra.mxu0 0.0
        %1465 = vmatpush.msra.mxu0 0.0
        %1466 = vmatpush.msra.mxu0 0.0
        %1467 = vmatpush.msra.mxu0 0.0
        %1468 = vmatpush.msra.mxu0 0.0
        %1469 = vmatpush.msra.mxu0 0.0
        %1470 = vmatpush.msra.mxu0 0.0
        %1471 = vmatpush.msra.mxu0 %v1405
        %1472 = vmatpush.msra.mxu0 %v1404
        %1473 = vmatmul.f32.gmra.mxu0 %v1455
        %v1474 = vpop.f32.mrf.mxu0
        %v1475 = vadd.f32 0.0, %v1474
        %1476 = vdwg.mxu0
        %v1478 = vsel %vm1144, %v1398, 0
        %1480 = vmatpush.msra.mxu0 0.0
        %1481 = vmatpush.msra.mxu0 0.0
        %1482 = vmatpush.msra.mxu0 0.0
        %1483 = vmatpush.msra.mxu0 0.0
        %1484 = vmatpush.msra.mxu0 0.0
        %1485 = vmatpush.msra.mxu0 0.0
        %1486 = vmatpush.msra.mxu0 0.0
        %1487 = vmatpush.msra.mxu0 0.0
        %1488 = vmatpush.msra.mxu0 0.0
        %1489 = vmatpush.msra.mxu0 0.0
        %1490 = vmatpush.msra.mxu0 0.0
        %1491 = vmatpush.msra.mxu0 0.0
        %1492 = vmatpush.msra.mxu0 0.0
        %1493 = vmatpush.msra.mxu0 0.0
        %1494 = vmatpush.msra.mxu0 %v1407
        %1495 = vmatpush.msra.mxu0 %v1406
        %1496 = vmatmul.f32.gmra.mxu0 %v1478
        %v1497 = vpop.f32.mrf.mxu0
        %v1498 = vadd.f32 0.0, %v1497
        %1499 = vdwg.mxu0
        %v1500 = vsel %vm638, %v1429, 0.0
        %v1501 = vsel %vm638, %v1452, 0.0
        %v1502 = vadd.f32 %v1500, %v1501
        %v1503 = vsel %vm638, %v1475, 0.0
        %v1504 = vadd.f32 %v1502, %v1503
        %v1505 = vsel %vm638, %v1498, 0.0
        %v1506 = vadd.f32 %v1504, %v1505
        %v1507 = vadd.f32 %v717, %v1506
        %v1508 = vld [vmem:[%s8] sm:$0x1]
        %v1510 = vperm.slane %v1508, 0
        %v1512 = vadd.f32 %v1507, %v1510
        %v1513 = vld [vmem:[%s9] sm:$0x1]
        %v1514 = vld [vmem:[%s10] sm:$0x1]
        %v1515 = vsel %vm638, %v1512, 0.0
        %1516 = vadd.xlane.f32.xlu0 %v1515
        %v1517 = vpop.xlane.xlu0 %1516
        %v1518 = vmul.f32 %v1517, %v729
        %v1519 = vsub.f32 %v1512, %v1518
        %v1520 = vmul.f32 %v1519, %v1519
        %v1521 = vsel %vm638, %v1520, 0.0
        %1522 = vadd.xlane.f32.xlu0 %v1521
        %v1523 = vpop.xlane.xlu0 %1522
        %v1524 = vmul.f32 %v1523, %v729
        %v1525 = vadd.f32 %v1524, 1e-06
        %v1526 = vrsqrt.pop %v1525
        %v1527 = vmul.f32 %v1526, %v1525
        %v1528 = vmul.f32 %v1527, %v1526
        %v1529 = vmul.f32 0.5, %v1528
        %v1530 = vsub.f32 1.5, %v1529
        %v1531 = vmul.f32 %v1526, %v1530
        %vm1532 = vweird.f32 %v1525
        %vm1533 = vweird.f32 %v1526
        %vm1534 = vmor %vm1532, %vm1533
        %v1535 = vsel %vm1534, %v1526, %v1531
        %v1536 = vmul.f32 %v1519, %v1535
        %v1538 = vperm.slane %v1513, 0
        %v1540 = vmul.f32 %v1536, %v1538
        %v1542 = vperm.slane %v1514, 0
        %v1544 = vadd.f32 %v1540, %v1542
        %v1545 = vld [vmem:[%s11] sm:$0xff]
        %v1546 = vld [vmem:[%s11 + $0x8] sm:$0xff]
        %v1547 = vld [vmem:[%s11 + $0x10] sm:$0xff]
        %v1548 = vld [vmem:[%s11 + $0x18] sm:$0xff]
        %v1549 = vld [vmem:[%s11 + $0x20] sm:$0xff]
        %v1550 = vld [vmem:[%s11 + $0x28] sm:$0xff]
        %v1551 = vld [vmem:[%s11 + $0x30] sm:$0xff]
        %v1552 = vld [vmem:[%s11 + $0x38] sm:$0xff]
        %v1553 = vld [vmem:[%s12] sm:$0x1]
        %v1555 = vperm.slane %v1553, 0
        %v1558 = vsel %vm671, %v1544, 0
        %1560 = vmatpush.msra.mxu0 0.0
        %1561 = vmatpush.msra.mxu0 0.0
        %1562 = vmatpush.msra.mxu0 0.0
        %1563 = vmatpush.msra.mxu0 0.0
        %1564 = vmatpush.msra.mxu0 0.0
        %1565 = vmatpush.msra.mxu0 0.0
        %1566 = vmatpush.msra.mxu0 0.0
        %1567 = vmatpush.msra.mxu0 0.0
        %1568 = vmatpush.msra.mxu0 %v1552
        %1569 = vmatpush.msra.mxu0 %v1551
        %1570 = vmatpush.msra.mxu0 %v1550
        %1571 = vmatpush.msra.mxu0 %v1549
        %1572 = vmatpush.msra.mxu0 %v1548
        %1573 = vmatpush.msra.mxu0 %v1547
        %1574 = vmatpush.msra.mxu0 %v1546
        %1575 = vmatpush.msra.mxu0 %v1545
        %1576 = vmatmul.f32.gmra.mxu0 %v1558
        %v1577 = vpop.f32.mrf.mxu0
        %v1578 = vadd.f32 %v1555, %v1577
        %1579 = vdwg.mxu0
        %v1580 = vmul.f32 %v1578, %v1578
        %v1581 = vmul.f32 %v1578, %v1580
        %v1582 = vmul.f32 %v1581, 0.044715
        %v1583 = vadd.f32 %v1578, %v1582
        %v1584 = vmul.f32 %v1583, 0.7978846
        %v1585 = vtanh.pop %v1584
        %v1586 = vadd.f32 %v1585, 1.0
        %v1587 = vmul.f32 %v1586, 0.5
        %v1588 = vmul.f32 %v1578, %v1587
        %v1589 = vld [vmem:[%s13] sm:$0xff]
        %v1590 = vld [vmem:[%s13 + $0x8] sm:$0xff]
        %v1591 = vld [vmem:[%s13 + $0x10] sm:$0xff]
        %v1592 = vld [vmem:[%s13 + $0x18] sm:$0xff]
        %v1593 = vld [vmem:[%s13 + $0x20] sm:$0xff]
        %v1594 = vld [vmem:[%s13 + $0x28] sm:$0xff]
        %v1595 = vld [vmem:[%s13 + $0x30] sm:$0xff]
        %v1596 = vld [vmem:[%s13 + $0x38] sm:$0xff]
        %v1597 = vld [vmem:[%s13 + $0x40] sm:$0xff]
        %v1598 = vld [vmem:[%s13 + $0x48] sm:$0xff]
        %v1599 = vld [vmem:[%s13 + $0x50] sm:$0xff]
        %v1600 = vld [vmem:[%s13 + $0x58] sm:$0xff]
        %v1601 = vld [vmem:[%s13 + $0x60] sm:$0xff]
        %v1602 = vld [vmem:[%s13 + $0x68] sm:$0xff]
        %v1603 = vld [vmem:[%s13 + $0x70] sm:$0xff]
        %v1604 = vld [vmem:[%s13 + $0x78] sm:$0xff]
        %v1605 = vld [vmem:[%s14] sm:$0x1]
        %v1607 = vperm.slane %v1605, 0
        %1609 = vmatpush.msra.mxu0 %v1604
        %1610 = vmatpush.msra.mxu0 %v1603
        %1611 = vmatpush.msra.mxu0 %v1602
        %1612 = vmatpush.msra.mxu0 %v1601
        %1613 = vmatpush.msra.mxu0 %v1600
        %1614 = vmatpush.msra.mxu0 %v1599
        %1615 = vmatpush.msra.mxu0 %v1598
        %1616 = vmatpush.msra.mxu0 %v1597
        %1617 = vmatpush.msra.mxu0 %v1596
        %1618 = vmatpush.msra.mxu0 %v1595
        %1619 = vmatpush.msra.mxu0 %v1594
        %1620 = vmatpush.msra.mxu0 %v1593
        %1621 = vmatpush.msra.mxu0 %v1592
        %1622 = vmatpush.msra.mxu0 %v1591
        %1623 = vmatpush.msra.mxu0 %v1590
        %1624 = vmatpush.msra.mxu0 %v1589
        %1625 = vmatmul.f32.gmra.mxu0 %v1588
        %v1626 = vpop.f32.mrf.mxu0
        %v1627 = vadd.f32 %v1607, %v1626
        %1628 = vdwg.mxu0
        %v1629 = vadd.f32 %v1512, %v1627
        %s1630 = scalar_lea.vmem %s3, 1
        %v1631 = vld [vmem:[%s1630] sm:$0x1]
        %s1632 = scalar_lea.vmem %s4, 1
        %v1633 = vld [vmem:[%s1632] sm:$0x1]
        %v1634 = vsel %vm638, %v1629, 0.0
        %1635 = vadd.xlane.f32.xlu0 %v1634
        %v1636 = vpop.xlane.xlu0 %1635
        %v1637 = vmul.f32 %v1636, %v729
        %v1638 = vsub.f32 %v1629, %v1637
        %v1639 = vmul.f32 %v1638, %v1638
        %v1640 = vsel %vm638, %v1639, 0.0
        %1641 = vadd.xlane.f32.xlu0 %v1640
        %v1642 = vpop.xlane.xlu0 %1641
        %v1643 = vmul.f32 %v1642, %v729
        %v1644 = vadd.f32 %v1643, 1e-06
        %v1645 = vrsqrt.pop %v1644
        %v1646 = vmul.f32 %v1645, %v1644
        %v1647 = vmul.f32 %v1646, %v1645
        %v1648 = vmul.f32 0.5, %v1647
        %v1649 = vsub.f32 1.5, %v1648
        %v1650 = vmul.f32 %v1645, %v1649
        %vm1651 = vweird.f32 %v1644
        %vm1652 = vweird.f32 %v1645
        %vm1653 = vmor %vm1651, %vm1652
        %v1654 = vsel %vm1653, %v1645, %v1650
        %v1655 = vmul.f32 %v1638, %v1654
        %v1657 = vperm.slane %v1631, 0
        %v1659 = vmul.f32 %v1655, %v1657
        %v1661 = vperm.slane %v1633, 0
        %v1663 = vadd.f32 %v1659, %v1661
        %s1664 = scalar_lea.vmem %s5, 768
        %v1665 = vld [vmem:[%s1664] sm:$0xff]
        %v1666 = vld [vmem:[%s1664 + $0x8] sm:$0xff]
        %v1667 = vld [vmem:[%s1664 + $0x10] sm:$0xff]
        %v1668 = vld [vmem:[%s1664 + $0x18] sm:$0xff]
        %v1669 = vld [vmem:[%s1664 + $0x20] sm:$0xff]
        %v1670 = vld [vmem:[%s1664 + $0x28] sm:$0xff]
        %v1671 = vld [vmem:[%s1664 + $0x30] sm:$0xff]
        %v1672 = vld [vmem:[%s1664 + $0x38] sm:$0xff]
        %v1673 = vld [vmem:[%s1664 + $0x40] sm:$0xff]
        %v1674 = vld [vmem:[%s1664 + $0x48] sm:$0xff]
        %v1675 = vld [vmem:[%s1664 + $0x50] sm:$0xff]
        %v1676 = vld [vmem:[%s1664 + $0x58] sm:$0xff]
        %v1677 = vld [vmem:[%s1664 + $0x60] sm:$0xff]
        %v1678 = vld [vmem:[%s1664 + $0x68] sm:$0xff]
        %v1679 = vld [vmem:[%s1664 + $0x70] sm:$0xff]
        %v1680 = vld [vmem:[%s1664 + $0x78] sm:$0xff]
        %v1681 = vld [vmem:[%s1664 + $0x80] sm:$0xff]
        %v1682 = vld [vmem:[%s1664 + $0x88] sm:$0xff]
        %v1683 = vld [vmem:[%s1664 + $0x90] sm:$0xff]
        %v1684 = vld [vmem:[%s1664 + $0x98] sm:$0xff]
        %v1685 = vld [vmem:[%s1664 + $0xa0] sm:$0xff]
        %v1686 = vld [vmem:[%s1664 + $0xa8] sm:$0xff]
        %v1687 = vld [vmem:[%s1664 + $0xb0] sm:$0xff]
        %v1688 = vld [vmem:[%s1664 + $0xb8] sm:$0xff]
        %v1689 = vld [vmem:[%s1664 + $0xc0] sm:$0xff]
        %v1690 = vld [vmem:[%s1664 + $0xc8] sm:$0xff]
        %v1691 = vld [vmem:[%s1664 + $0xd0] sm:$0xff]
        %v1692 = vld [vmem:[%s1664 + $0xd8] sm:$0xff]
        %v1693 = vld [vmem:[%s1664 + $0xe0] sm:$0xff]
        %v1694 = vld [vmem:[%s1664 + $0xe8] sm:$0xff]
        %v1695 = vld [vmem:[%s1664 + $0xf0] sm:$0xff]
        %v1696 = vld [vmem:[%s1664 + $0xf8] sm:$0xff]
        %v1697 = vld [vmem:[%s1664 + $0x100] sm:$0xff]
        %v1698 = vld [vmem:[%s1664 + $0x108] sm:$0xff]
        %v1699 = vld [vmem:[%s1664 + $0x110] sm:$0xff]
        %v1700 = vld [vmem:[%s1664 + $0x118] sm:$0xff]
        %v1701 = vld [vmem:[%s1664 + $0x120] sm:$0xff]
        %v1702 = vld [vmem:[%s1664 + $0x128] sm:$0xff]
        %v1703 = vld [vmem:[%s1664 + $0x130] sm:$0xff]
        %v1704 = vld [vmem:[%s1664 + $0x138] sm:$0xff]
        %v1705 = vld [vmem:[%s1664 + $0x140] sm:$0xff]
        %v1706 = vld [vmem:[%s1664 + $0x148] sm:$0xff]
        %v1707 = vld [vmem:[%s1664 + $0x150] sm:$0xff]
        %v1708 = vld [vmem:[%s1664 + $0x158] sm:$0xff]
        %v1709 = vld [vmem:[%s1664 + $0x160] sm:$0xff]
        %v1710 = vld [vmem:[%s1664 + $0x168] sm:$0xff]
        %v1711 = vld [vmem:[%s1664 + $0x170] sm:$0xff]
        %v1712 = vld [vmem:[%s1664 + $0x178] sm:$0xff]
        %v1713 = vld [vmem:[%s1664 + $0x180] sm:$0xff]
        %v1714 = vld [vmem:[%s1664 + $0x188] sm:$0xff]
        %v1715 = vld [vmem:[%s1664 + $0x190] sm:$0xff]
        %v1716 = vld [vmem:[%s1664 + $0x198] sm:$0xff]
        %v1717 = vld [vmem:[%s1664 + $0x1a0] sm:$0xff]
        %v1718 = vld [vmem:[%s1664 + $0x1a8] sm:$0xff]
        %v1719 = vld [vmem:[%s1664 + $0x1b0] sm:$0xff]
        %v1720 = vld [vmem:[%s1664 + $0x1b8] sm:$0xff]
        %v1721 = vld [vmem:[%s1664 + $0x1c0] sm:$0xff]
        %v1722 = vld [vmem:[%s1664 + $0x1c8] sm:$0xff]
        %v1723 = vld [vmem:[%s1664 + $0x1d0] sm:$0xff]
        %v1724 = vld [vmem:[%s1664 + $0x1d8] sm:$0xff]
        %v1725 = vld [vmem:[%s1664 + $0x1e0] sm:$0xff]
        %v1726 = vld [vmem:[%s1664 + $0x1e8] sm:$0xff]
        %v1727 = vld [vmem:[%s1664 + $0x1f0] sm:$0xff]
        %v1728 = vld [vmem:[%s1664 + $0x1f8] sm:$0xff]
        %v1729 = vld [vmem:[%s1664 + $0x200] sm:$0xff]
        %v1730 = vld [vmem:[%s1664 + $0x208] sm:$0xff]
        %v1731 = vld [vmem:[%s1664 + $0x210] sm:$0xff]
        %v1732 = vld [vmem:[%s1664 + $0x218] sm:$0xff]
        %v1733 = vld [vmem:[%s1664 + $0x220] sm:$0xff]
        %v1734 = vld [vmem:[%s1664 + $0x228] sm:$0xff]
        %v1735 = vld [vmem:[%s1664 + $0x230] sm:$0xff]
        %v1736 = vld [vmem:[%s1664 + $0x238] sm:$0xff]
        %v1737 = vld [vmem:[%s1664 + $0x240] sm:$0xff]
        %v1738 = vld [vmem:[%s1664 + $0x248] sm:$0xff]
        %v1739 = vld [vmem:[%s1664 + $0x250] sm:$0xff]
        %v1740 = vld [vmem:[%s1664 + $0x258] sm:$0xff]
        %v1741 = vld [vmem:[%s1664 + $0x260] sm:$0xff]
        %v1742 = vld [vmem:[%s1664 + $0x268] sm:$0xff]
        %v1743 = vld [vmem:[%s1664 + $0x270] sm:$0xff]
        %v1744 = vld [vmem:[%s1664 + $0x278] sm:$0xff]
        %v1745 = vld [vmem:[%s1664 + $0x280] sm:$0xff]
        %v1746 = vld [vmem:[%s1664 + $0x288] sm:$0xff]
        %v1747 = vld [vmem:[%s1664 + $0x290] sm:$0xff]
        %v1748 = vld [vmem:[%s1664 + $0x298] sm:$0xff]
        %v1749 = vld [vmem:[%s1664 + $0x2a0] sm:$0xff]
        %v1750 = vld [vmem:[%s1664 + $0x2a8] sm:$0xff]
        %v1751 = vld [vmem:[%s1664 + $0x2b0] sm:$0xff]
        %v1752 = vld [vmem:[%s1664 + $0x2b8] sm:$0xff]
        %v1753 = vld [vmem:[%s1664 + $0x2c0] sm:$0xff]
        %v1754 = vld [vmem:[%s1664 + $0x2c8] sm:$0xff]
        %v1755 = vld [vmem:[%s1664 + $0x2d0] sm:$0xff]
        %v1756 = vld [vmem:[%s1664 + $0x2d8] sm:$0xff]
        %v1757 = vld [vmem:[%s1664 + $0x2e0] sm:$0xff]
        %v1758 = vld [vmem:[%s1664 + $0x2e8] sm:$0xff]
        %v1759 = vld [vmem:[%s1664 + $0x2f0] sm:$0xff]
        %v1760 = vld [vmem:[%s1664 + $0x2f8] sm:$0xff]
        %s1761 = scalar_lea.vmem %s6, 12
        %v1762 = vld [vmem:[%s1761] sm:$0x1]
        %v1763 = vld [vmem:[%s1761 + $0x1] sm:$0x1]
        %v1764 = vld [vmem:[%s1761 + $0x2] sm:$0x1]
        %v1765 = vld [vmem:[%s1761 + $0x3] sm:$0x1]
        %v1766 = vld [vmem:[%s1761 + $0x4] sm:$0x1]
        %v1767 = vld [vmem:[%s1761 + $0x5] sm:$0x1]
        %v1768 = vld [vmem:[%s1761 + $0x6] sm:$0x1]
        %v1769 = vld [vmem:[%s1761 + $0x7] sm:$0x1]
        %v1770 = vld [vmem:[%s1761 + $0x8] sm:$0x1]
        %v1771 = vld [vmem:[%s1761 + $0x9] sm:$0x1]
        %v1772 = vld [vmem:[%s1761 + $0xa] sm:$0x1]
        %v1773 = vld [vmem:[%s1761 + $0xb] sm:$0x1]
        %v1786 = vperm.slane %v1762, 0
        %v1787 = vperm.slane %v1763, 0
        %v1788 = vperm.slane %v1764, 0
        %v1789 = vperm.slane %v1765, 0
        %v1790 = vperm.slane %v1766, 0
        %v1791 = vperm.slane %v1767, 0
        %v1792 = vperm.slane %v1768, 0
        %v1793 = vperm.slane %v1769, 0
        %v1794 = vperm.slane %v1770, 0
        %v1795 = vperm.slane %v1771, 0
        %v1796 = vperm.slane %v1772, 0
        %v1797 = vperm.slane %v1773, 0
        %v1811 = vsel %vm671, %v1663, 0
        %1813 = vmatpush.msra.mxu0 0.0
        %1814 = vmatpush.msra.mxu0 0.0
        %1815 = vmatpush.msra.mxu0 0.0
        %1816 = vmatpush.msra.mxu0 0.0
        %1817 = vmatpush.msra.mxu0 0.0
        %1818 = vmatpush.msra.mxu0 0.0
        %1819 = vmatpush.msra.mxu0 0.0
        %1820 = vmatpush.msra.mxu0 0.0
        %1821 = vmatpush.msra.mxu0 %v1672
        %1822 = vmatpush.msra.mxu0 %v1671
        %1823 = vmatpush.msra.mxu0 %v1670
        %1824 = vmatpush.msra.mxu0 %v1669
        %1825 = vmatpush.msra.mxu0 %v1668
        %1826 = vmatpush.msra.mxu0 %v1667
        %1827 = vmatpush.msra.mxu0 %v1666
        %1828 = vmatpush.msra.mxu0 %v1665
        %1829 = vmatmul.f32.gmra.mxu0 %v1811
        %v1830 = vpop.f32.mrf.mxu0
        %v1831 = vadd.f32 %v1786, %v1830
        %1832 = vdwg.mxu0
        %1833 = vmatpush.msra.mxu0 0.0
        %1834 = vmatpush.msra.mxu0 0.0
        %1835 = vmatpush.msra.mxu0 0.0
        %1836 = vmatpush.msra.mxu0 0.0
        %1837 = vmatpush.msra.mxu0 0.0
        %1838 = vmatpush.msra.mxu0 0.0
        %1839 = vmatpush.msra.mxu0 0.0
        %1840 = vmatpush.msra.mxu0 0.0
        %1841 = vmatpush.msra.mxu0 %v1680
        %1842 = vmatpush.msra.mxu0 %v1679
        %1843 = vmatpush.msra.mxu0 %v1678
        %1844 = vmatpush.msra.mxu0 %v1677
        %1845 = vmatpush.msra.mxu0 %v1676
        %1846 = vmatpush.msra.mxu0 %v1675
        %1847 = vmatpush.msra.mxu0 %v1674
        %1848 = vmatpush.msra.mxu0 %v1673
        %1849 = vmatmul.f32.gmra.mxu0 %v1811
        %v1850 = vpop.f32.mrf.mxu0
        %v1851 = vadd.f32 %v1787, %v1850
        %1852 = vdwg.mxu0
        %1853 = vmatpush.msra.mxu0 0.0
        %1854 = vmatpush.msra.mxu0 0.0
        %1855 = vmatpush.msra.mxu0 0.0
        %1856 = vmatpush.msra.mxu0 0.0
        %1857 = vmatpush.msra.mxu0 0.0
        %1858 = vmatpush.msra.mxu0 0.0
        %1859 = vmatpush.msra.mxu0 0.0
        %1860 = vmatpush.msra.mxu0 0.0
        %1861 = vmatpush.msra.mxu0 %v1688
        %1862 = vmatpush.msra.mxu0 %v1687
        %1863 = vmatpush.msra.mxu0 %v1686
        %1864 = vmatpush.msra.mxu0 %v1685
        %1865 = vmatpush.msra.mxu0 %v1684
        %1866 = vmatpush.msra.mxu0 %v1683
        %1867 = vmatpush.msra.mxu0 %v1682
        %1868 = vmatpush.msra.mxu0 %v1681
        %1869 = vmatmul.f32.gmra.mxu0 %v1811
        %v1870 = vpop.f32.mrf.mxu0
        %v1871 = vadd.f32 %v1788, %v1870
        %1872 = vdwg.mxu0
        %1873 = vmatpush.msra.mxu0 0.0
        %1874 = vmatpush.msra.mxu0 0.0
        %1875 = vmatpush.msra.mxu0 0.0
        %1876 = vmatpush.msra.mxu0 0.0
        %1877 = vmatpush.msra.mxu0 0.0
        %1878 = vmatpush.msra.mxu0 0.0
        %1879 = vmatpush.msra.mxu0 0.0
        %1880 = vmatpush.msra.mxu0 0.0
        %1881 = vmatpush.msra.mxu0 %v1696
        %1882 = vmatpush.msra.mxu0 %v1695
        %1883 = vmatpush.msra.mxu0 %v1694
        %1884 = vmatpush.msra.mxu0 %v1693
        %1885 = vmatpush.msra.mxu0 %v1692
        %1886 = vmatpush.msra.mxu0 %v1691
        %1887 = vmatpush.msra.mxu0 %v1690
        %1888 = vmatpush.msra.mxu0 %v1689
        %1889 = vmatmul.f32.gmra.mxu0 %v1811
        %v1890 = vpop.f32.mrf.mxu0
        %v1891 = vadd.f32 %v1789, %v1890
        %1892 = vdwg.mxu0
        %1893 = vmatpush.msra.mxu0 0.0
        %1894 = vmatpush.msra.mxu0 0.0
        %1895 = vmatpush.msra.mxu0 0.0
        %1896 = vmatpush.msra.mxu0 0.0
        %1897 = vmatpush.msra.mxu0 0.0
        %1898 = vmatpush.msra.mxu0 0.0
        %1899 = vmatpush.msra.mxu0 0.0
        %1900 = vmatpush.msra.mxu0 0.0
        %1901 = vmatpush.msra.mxu0 %v1704
        %1902 = vmatpush.msra.mxu0 %v1703
        %1903 = vmatpush.msra.mxu0 %v1702
        %1904 = vmatpush.msra.mxu0 %v1701
        %1905 = vmatpush.msra.mxu0 %v1700
        %1906 = vmatpush.msra.mxu0 %v1699
        %1907 = vmatpush.msra.mxu0 %v1698
        %1908 = vmatpush.msra.mxu0 %v1697
        %1909 = vmatmul.f32.gmra.mxu0 %v1811
        %v1910 = vpop.f32.mrf.mxu0
        %v1911 = vadd.f32 %v1790, %v1910
        %1912 = vdwg.mxu0
        %1913 = vmatpush.msra.mxu0 0.0
        %1914 = vmatpush.msra.mxu0 0.0
        %1915 = vmatpush.msra.mxu0 0.0
        %1916 = vmatpush.msra.mxu0 0.0
        %1917 = vmatpush.msra.mxu0 0.0
        %1918 = vmatpush.msra.mxu0 0.0
        %1919 = vmatpush.msra.mxu0 0.0
        %1920 = vmatpush.msra.mxu0 0.0
        %1921 = vmatpush.msra.mxu0 %v1712
        %1922 = vmatpush.msra.mxu0 %v1711
        %1923 = vmatpush.msra.mxu0 %v1710
        %1924 = vmatpush.msra.mxu0 %v1709
        %1925 = vmatpush.msra.mxu0 %v1708
        %1926 = vmatpush.msra.mxu0 %v1707
        %1927 = vmatpush.msra.mxu0 %v1706
        %1928 = vmatpush.msra.mxu0 %v1705
        %1929 = vmatmul.f32.gmra.mxu0 %v1811
        %v1930 = vpop.f32.mrf.mxu0
        %v1931 = vadd.f32 %v1791, %v1930
        %1932 = vdwg.mxu0
        %1933 = vmatpush.msra.mxu0 0.0
        %1934 = vmatpush.msra.mxu0 0.0
        %1935 = vmatpush.msra.mxu0 0.0
        %1936 = vmatpush.msra.mxu0 0.0
        %1937 = vmatpush.msra.mxu0 0.0
        %1938 = vmatpush.msra.mxu0 0.0
        %1939 = vmatpush.msra.mxu0 0.0
        %1940 = vmatpush.msra.mxu0 0.0
        %1941 = vmatpush.msra.mxu0 %v1720
        %1942 = vmatpush.msra.mxu0 %v1719
        %1943 = vmatpush.msra.mxu0 %v1718
        %1944 = vmatpush.msra.mxu0 %v1717
        %1945 = vmatpush.msra.mxu0 %v1716
        %1946 = vmatpush.msra.mxu0 %v1715
        %1947 = vmatpush.msra.mxu0 %v1714
        %1948 = vmatpush.msra.mxu0 %v1713
        %1949 = vmatmul.f32.gmra.mxu0 %v1811
        %v1950 = vpop.f32.mrf.mxu0
        %v1951 = vadd.f32 %v1792, %v1950
        %1952 = vdwg.mxu0
        %1953 = vmatpush.msra.mxu0 0.0
        %1954 = vmatpush.msra.mxu0 0.0
        %1955 = vmatpush.msra.mxu0 0.0
        %1956 = vmatpush.msra.mxu0 0.0
        %1957 = vmatpush.msra.mxu0 0.0
        %1958 = vmatpush.msra.mxu0 0.0
        %1959 = vmatpush.msra.mxu0 0.0
        %1960 = vmatpush.msra.mxu0 0.0
        %1961 = vmatpush.msra.mxu0 %v1728
        %1962 = vmatpush.msra.mxu0 %v1727
        %1963 = vmatpush.msra.mxu0 %v1726
        %1964 = vmatpush.msra.mxu0 %v1725
        %1965 = vmatpush.msra.mxu0 %v1724
        %1966 = vmatpush.msra.mxu0 %v1723
        %1967 = vmatpush.msra.mxu0 %v1722
        %1968 = vmatpush.msra.mxu0 %v1721
        %1969 = vmatmul.f32.gmra.mxu0 %v1811
        %v1970 = vpop.f32.mrf.mxu0
        %v1971 = vadd.f32 %v1793, %v1970
        %1972 = vdwg.mxu0
        %1973 = vmatpush.msra.mxu0 0.0
        %1974 = vmatpush.msra.mxu0 0.0
        %1975 = vmatpush.msra.mxu0 0.0
        %1976 = vmatpush.msra.mxu0 0.0
        %1977 = vmatpush.msra.mxu0 0.0
        %1978 = vmatpush.msra.mxu0 0.0
        %1979 = vmatpush.msra.mxu0 0.0
        %1980 = vmatpush.msra.mxu0 0.0
        %1981 = vmatpush.msra.mxu0 %v1736
        %1982 = vmatpush.msra.mxu0 %v1735
        %1983 = vmatpush.msra.mxu0 %v1734
        %1984 = vmatpush.msra.mxu0 %v1733
        %1985 = vmatpush.msra.mxu0 %v1732
        %1986 = vmatpush.msra.mxu0 %v1731
        %1987 = vmatpush.msra.mxu0 %v1730
        %1988 = vmatpush.msra.mxu0 %v1729
        %1989 = vmatmul.f32.gmra.mxu0 %v1811
        %v1990 = vpop.f32.mrf.mxu0
        %v1991 = vadd.f32 %v1794, %v1990
        %1992 = vdwg.mxu0
        %1993 = vmatpush.msra.mxu0 0.0
        %1994 = vmatpush.msra.mxu0 0.0
        %1995 = vmatpush.msra.mxu0 0.0
        %1996 = vmatpush.msra.mxu0 0.0
        %1997 = vmatpush.msra.mxu0 0.0
        %1998 = vmatpush.msra.mxu0 0.0
        %1999 = vmatpush.msra.mxu0 0.0
        %2000 = vmatpush.msra.mxu0 0.0
        %2001 = vmatpush.msra.mxu0 %v1744
        %2002 = vmatpush.msra.mxu0 %v1743
        %2003 = vmatpush.msra.mxu0 %v1742
        %2004 = vmatpush.msra.mxu0 %v1741
        %2005 = vmatpush.msra.mxu0 %v1740
        %2006 = vmatpush.msra.mxu0 %v1739
        %2007 = vmatpush.msra.mxu0 %v1738
        %2008 = vmatpush.msra.mxu0 %v1737
        %2009 = vmatmul.f32.gmra.mxu0 %v1811
        %v2010 = vpop.f32.mrf.mxu0
        %v2011 = vadd.f32 %v1795, %v2010
        %2012 = vdwg.mxu0
        %2013 = vmatpush.msra.mxu0 0.0
        %2014 = vmatpush.msra.mxu0 0.0
        %2015 = vmatpush.msra.mxu0 0.0
        %2016 = vmatpush.msra.mxu0 0.0
        %2017 = vmatpush.msra.mxu0 0.0
        %2018 = vmatpush.msra.mxu0 0.0
        %2019 = vmatpush.msra.mxu0 0.0
        %2020 = vmatpush.msra.mxu0 0.0
        %2021 = vmatpush.msra.mxu0 %v1752
        %2022 = vmatpush.msra.mxu0 %v1751
        %2023 = vmatpush.msra.mxu0 %v1750
        %2024 = vmatpush.msra.mxu0 %v1749
        %2025 = vmatpush.msra.mxu0 %v1748
        %2026 = vmatpush.msra.mxu0 %v1747
        %2027 = vmatpush.msra.mxu0 %v1746
        %2028 = vmatpush.msra.mxu0 %v1745
        %2029 = vmatmul.f32.gmra.mxu0 %v1811
        %v2030 = vpop.f32.mrf.mxu0
        %v2031 = vadd.f32 %v1796, %v2030
        %2032 = vdwg.mxu0
        %2033 = vmatpush.msra.mxu0 0.0
        %2034 = vmatpush.msra.mxu0 0.0
        %2035 = vmatpush.msra.mxu0 0.0
        %2036 = vmatpush.msra.mxu0 0.0
        %2037 = vmatpush.msra.mxu0 0.0
        %2038 = vmatpush.msra.mxu0 0.0
        %2039 = vmatpush.msra.mxu0 0.0
        %2040 = vmatpush.msra.mxu0 0.0
        %2041 = vmatpush.msra.mxu0 %v1760
        %2042 = vmatpush.msra.mxu0 %v1759
        %2043 = vmatpush.msra.mxu0 %v1758
        %2044 = vmatpush.msra.mxu0 %v1757
        %2045 = vmatpush.msra.mxu0 %v1756
        %2046 = vmatpush.msra.mxu0 %v1755
        %2047 = vmatpush.msra.mxu0 %v1754
        %2048 = vmatpush.msra.mxu0 %v1753
        %2049 = vmatmul.f32.gmra.mxu0 %v1811
        %v2050 = vpop.f32.mrf.mxu0
        %v2051 = vadd.f32 %v1797, %v2050
        %2052 = vdwg.mxu0
        %v2054 = vsel %vm1144, %v1831, 0
        %v2057 = vsel %vm1144, %v1911, 0
        %2059 = vmatpush.xpose.msra.mxu0 0.0
        %2060 = vmatpush.xpose.msra.mxu0 0.0
        %2061 = vmatpush.xpose.msra.mxu0 0.0
        %2062 = vmatpush.xpose.msra.mxu0 0.0
        %2063 = vmatpush.xpose.msra.mxu0 0.0
        %2064 = vmatpush.xpose.msra.mxu0 0.0
        %2065 = vmatpush.xpose.msra.mxu0 0.0
        %2066 = vmatpush.xpose.msra.mxu0 0.0
        %2067 = vmatpush.xpose.msra.mxu0 0.0
        %2068 = vmatpush.xpose.msra.mxu0 0.0
        %2069 = vmatpush.xpose.msra.mxu0 0.0
        %2070 = vmatpush.xpose.msra.mxu0 0.0
        %2071 = vmatpush.xpose.msra.mxu0 0.0
        %2072 = vmatpush.xpose.msra.mxu0 0.0
        %2073 = vmatpush.xpose.msra.mxu0 0.0
        %2074 = vmatpush.xpose.msra.mxu0 %v2057
        %2075 = vmatmul.f32.gmra.mxu0 %v2054
        %v2076 = vpop.f32.mrf.mxu0
        %v2077 = vadd.f32 0.0, %v2076
        %2078 = vdwg.mxu0
        %v2080 = vsel %vm1144, %v1851, 0
        %v2083 = vsel %vm1144, %v1931, 0
        %2085 = vmatpush.xpose.msra.mxu0 0.0
        %2086 = vmatpush.xpose.msra.mxu0 0.0
        %2087 = vmatpush.xpose.msra.mxu0 0.0
        %2088 = vmatpush.xpose.msra.mxu0 0.0
        %2089 = vmatpush.xpose.msra.mxu0 0.0
        %2090 = vmatpush.xpose.msra.mxu0 0.0
        %2091 = vmatpush.xpose.msra.mxu0 0.0
        %2092 = vmatpush.xpose.msra.mxu0 0.0
        %2093 = vmatpush.xpose.msra.mxu0 0.0
        %2094 = vmatpush.xpose.msra.mxu0 0.0
        %2095 = vmatpush.xpose.msra.mxu0 0.0
        %2096 = vmatpush.xpose.msra.mxu0 0.0
        %2097 = vmatpush.xpose.msra.mxu0 0.0
        %2098 = vmatpush.xpose.msra.mxu0 0.0
        %2099 = vmatpush.xpose.msra.mxu0 0.0
        %2100 = vmatpush.xpose.msra.mxu0 %v2083
        %2101 = vmatmul.f32.gmra.mxu0 %v2080
        %v2102 = vpop.f32.mrf.mxu0
        %v2103 = vadd.f32 0.0, %v2102
        %2104 = vdwg.mxu0
        %v2106 = vsel %vm1144, %v1871, 0
        %v2109 = vsel %vm1144, %v1951, 0
        %2111 = vmatpush.xpose.msra.mxu0 0.0
        %2112 = vmatpush.xpose.msra.mxu0 0.0
        %2113 = vmatpush.xpose.msra.mxu0 0.0
        %2114 = vmatpush.xpose.msra.mxu0 0.0
        %2115 = vmatpush.xpose.msra.mxu0 0.0
        %2116 = vmatpush.xpose.msra.mxu0 0.0
        %2117 = vmatpush.xpose.msra.mxu0 0.0
        %2118 = vmatpush.xpose.msra.mxu0 0.0
        %2119 = vmatpush.xpose.msra.mxu0 0.0
        %2120 = vmatpush.xpose.msra.mxu0 0.0
        %2121 = vmatpush.xpose.msra.mxu0 0.0
        %2122 = vmatpush.xpose.msra.mxu0 0.0
        %2123 = vmatpush.xpose.msra.mxu0 0.0
        %2124 = vmatpush.xpose.msra.mxu0 0.0
        %2125 = vmatpush.xpose.msra.mxu0 0.0
        %2126 = vmatpush.xpose.msra.mxu0 %v2109
        %2127 = vmatmul.f32.gmra.mxu0 %v2106
        %v2128 = vpop.f32.mrf.mxu0
        %v2129 = vadd.f32 0.0, %v2128
        %2130 = vdwg.mxu0
        %v2132 = vsel %vm1144, %v1891, 0
        %v2135 = vsel %vm1144, %v1971, 0
        %2137 = vmatpush.xpose.msra.mxu0 0.0
        %2138 = vmatpush.xpose.msra.mxu0 0.0
        %2139 = vmatpush.xpose.msra.mxu0 0.0
        %2140 = vmatpush.xpose.msra.mxu0 0.0
        %2141 = vmatpush.xpose.msra.mxu0 0.0
        %2142 = vmatpush.xpose.msra.mxu0 0.0
        %2143 = vmatpush.xpose.msra.mxu0 0.0
        %2144 = vmatpush.xpose.msra.mxu0 0.0
        %2145 = vmatpush.xpose.msra.mxu0 0.0
        %2146 = vmatpush.xpose.msra.mxu0 0.0
        %2147 = vmatpush.xpose.msra.mxu0 0.0
        %2148 = vmatpush.xpose.msra.mxu0 0.0
        %2149 = vmatpush.xpose.msra.mxu0 0.0
        %2150 = vmatpush.xpose.msra.mxu0 0.0
        %2151 = vmatpush.xpose.msra.mxu0 0.0
        %2152 = vmatpush.xpose.msra.mxu0 %v2135
        %2153 = vmatmul.f32.gmra.mxu0 %v2132
        %v2154 = vpop.f32.mrf.mxu0
        %v2155 = vadd.f32 0.0, %v2154
        %2156 = vdwg.mxu0
        %v2157 = vsel %vm1249, %v2077, -inf
        %2158 = vmax.xlane.f32.xlu0 %v2157
        %v2159 = vpop.xlane.xlu0 %2158
        %v2160 = vsel %vm1249, %v2103, -inf
        %2161 = vmax.xlane.f32.xlu0 %v2160
        %v2162 = vpop.xlane.xlu0 %2161
        %v2163 = vsel %vm1249, %v2129, -inf
        %2164 = vmax.xlane.f32.xlu0 %v2163
        %v2165 = vpop.xlane.xlu0 %2164
        %v2166 = vsel %vm1249, %v2155, -inf
        %2167 = vmax.xlane.f32.xlu0 %v2166
        %v2168 = vpop.xlane.xlu0 %2167
        %v2169 = vsub.f32 %v2077, %v2159
        %v2170 = vsub.f32 %v2103, %v2162
        %v2171 = vsub.f32 %v2129, %v2165
        %v2172 = vsub.f32 %v2155, %v2168
        %v2173 = vmul.f32 %v2169, 1.442695
        %v2174 = vpow.pop %v2173
        %v2175 = vmul.f32 %v2170, 1.442695
        %v2176 = vpow.pop %v2175
        %v2177 = vmul.f32 %v2171, 1.442695
        %v2178 = vpow.pop %v2177
        %v2179 = vmul.f32 %v2172, 1.442695
        %v2180 = vpow.pop %v2179
        %v2181 = vsel %vm1249, %v2174, 0.0
        %2182 = vadd.xlane.f32.xlu0 %v2181
        %v2183 = vpop.xlane.xlu0 %2182
        %v2184 = vsel %vm1249, %v2176, 0.0
        %2185 = vadd.xlane.f32.xlu0 %v2184
        %v2186 = vpop.xlane.xlu0 %2185
        %v2187 = vsel %vm1249, %v2178, 0.0
        %2188 = vadd.xlane.f32.xlu0 %v2187
        %v2189 = vpop.xlane.xlu0 %2188
        %v2190 = vsel %vm1249, %v2180, 0.0
        %2191 = vadd.xlane.f32.xlu0 %v2190
        %v2192 = vpop.xlane.xlu0 %2191
        %v2193 = vrcp.pop %v2183
        %v2194 = vrcp.pop %v2186
        %v2195 = vrcp.pop %v2189
        %v2196 = vrcp.pop %v2192
        %v2197 = vmul.f32 %v2174, %v2193
        %v2198 = vmul.f32 %v2176, %v2194
        %v2199 = vmul.f32 %v2178, %v2195
        %v2200 = vmul.f32 %v2180, %v2196
        %v2202 = vsel %vm1294, %v2197, 0
        %v2205 = vsel %vm1298, %v1991, 0
        %2207 = vmatpush.msra.mxu0 0.0
        %2208 = vmatpush.msra.mxu0 0.0
        %2209 = vmatpush.msra.mxu0 0.0
        %2210 = vmatpush.msra.mxu0 0.0
        %2211 = vmatpush.msra.mxu0 0.0
        %2212 = vmatpush.msra.mxu0 0.0
        %2213 = vmatpush.msra.mxu0 0.0
        %2214 = vmatpush.msra.mxu0 0.0
        %2215 = vmatpush.msra.mxu0 0.0
        %2216 = vmatpush.msra.mxu0 0.0
        %2217 = vmatpush.msra.mxu0 0.0
        %2218 = vmatpush.msra.mxu0 0.0
        %2219 = vmatpush.msra.mxu0 0.0
        %2220 = vmatpush.msra.mxu0 0.0
        %2221 = vmatpush.msra.mxu0 0.0
        %2222 = vmatpush.msra.mxu0 %v2205
        %2223 = vmatmul.f32.gmra.mxu0 %v2202
        %v2224 = vpop.f32.mrf.mxu0
        %v2225 = vadd.f32 0.0, %v2224
        %2226 = vdwg.mxu0
        %v2228 = vsel %vm1294, %v2198, 0
        %v2231 = vsel %vm1298, %v2011, 0
        %2233 = vmatpush.msra.mxu0 0.0
        %2234 = vmatpush.msra.mxu0 0.0
        %2235 = vmatpush.msra.mxu0 0.0
        %2236 = vmatpush.msra.mxu0 0.0
        %2237 = vmatpush.msra.mxu0 0.0
        %2238 = vmatpush.msra.mxu0 0.0
        %2239 = vmatpush.msra.mxu0 0.0
        %2240 = vmatpush.msra.mxu0 0.0
        %2241 = vmatpush.msra.mxu0 0.0
        %2242 = vmatpush.msra.mxu0 0.0
        %2243 = vmatpush.msra.mxu0 0.0
        %2244 = vmatpush.msra.mxu0 0.0
        %2245 = vmatpush.msra.mxu0 0.0
        %2246 = vmatpush.msra.mxu0 0.0
        %2247 = vmatpush.msra.mxu0 0.0
        %2248 = vmatpush.msra.mxu0 %v2231
        %2249 = vmatmul.f32.gmra.mxu0 %v2228
        %v2250 = vpop.f32.mrf.mxu0
        %v2251 = vadd.f32 0.0, %v2250
        %2252 = vdwg.mxu0
        %v2254 = vsel %vm1294, %v2199, 0
        %v2257 = vsel %vm1298, %v2031, 0
        %2259 = vmatpush.msra.mxu0 0.0
        %2260 = vmatpush.msra.mxu0 0.0
        %2261 = vmatpush.msra.mxu0 0.0
        %2262 = vmatpush.msra.mxu0 0.0
        %2263 = vmatpush.msra.mxu0 0.0
        %2264 = vmatpush.msra.mxu0 0.0
        %2265 = vmatpush.msra.mxu0 0.0
        %2266 = vmatpush.msra.mxu0 0.0
        %2267 = vmatpush.msra.mxu0 0.0
        %2268 = vmatpush.msra.mxu0 0.0
        %2269 = vmatpush.msra.mxu0 0.0
        %2270 = vmatpush.msra.mxu0 0.0
        %2271 = vmatpush.msra.mxu0 0.0
        %2272 = vmatpush.msra.mxu0 0.0
        %2273 = vmatpush.msra.mxu0 0.0
        %2274 = vmatpush.msra.mxu0 %v2257
        %2275 = vmatmul.f32.gmra.mxu0 %v2254
        %v2276 = vpop.f32.mrf.mxu0
        %v2277 = vadd.f32 0.0, %v2276
        %2278 = vdwg.mxu0
        %v2280 = vsel %vm1294, %v2200, 0
        %v2283 = vsel %vm1298, %v2051, 0
        %2285 = vmatpush.msra.mxu0 0.0
        %2286 = vmatpush.msra.mxu0 0.0
        %2287 = vmatpush.msra.mxu0 0.0
        %2288 = vmatpush.msra.mxu0 0.0
        %2289 = vmatpush.msra.mxu0 0.0
        %2290 = vmatpush.msra.mxu0 0.0
        %2291 = vmatpush.msra.mxu0 0.0
        %2292 = vmatpush.msra.mxu0 0.0
        %2293 = vmatpush.msra.mxu0 0.0
        %2294 = vmatpush.msra.mxu0 0.0
        %2295 = vmatpush.msra.mxu0 0.0
        %2296 = vmatpush.msra.mxu0 0.0
        %2297 = vmatpush.msra.mxu0 0.0
        %2298 = vmatpush.msra.mxu0 0.0
        %2299 = vmatpush.msra.mxu0 0.0
        %2300 = vmatpush.msra.mxu0 %v2283
        %2301 = vmatmul.f32.gmra.mxu0 %v2280
        %v2302 = vpop.f32.mrf.mxu0
        %v2303 = vadd.f32 0.0, %v2302
        %2304 = vdwg.mxu0
        %s2305 = scalar_lea.vmem %s7, 64
        %v2306 = vld [vmem:[%s2305] sm:$0xff]
        %v2307 = vld [vmem:[%s2305 + $0x8] sm:$0xff]
        %v2308 = vld [vmem:[%s2305 + $0x10] sm:$0xff]
        %v2309 = vld [vmem:[%s2305 + $0x18] sm:$0xff]
        %v2310 = vld [vmem:[%s2305 + $0x20] sm:$0xff]
        %v2311 = vld [vmem:[%s2305 + $0x28] sm:$0xff]
        %v2312 = vld [vmem:[%s2305 + $0x30] sm:$0xff]
        %v2313 = vld [vmem:[%s2305 + $0x38] sm:$0xff]
        %v2315 = vsel %vm1144, %v2225, 0
        %2317 = vmatpush.msra.mxu0 0.0
        %2318 = vmatpush.msra.mxu0 0.0
        %2319 = vmatpush.msra.mxu0 0.0
        %2320 = vmatpush.msra.mxu0 0.0
        %2321 = vmatpush.msra.mxu0 0.0
        %2322 = vmatpush.msra.mxu0 0.0
        %2323 = vmatpush.msra.mxu0 0.0
        %2324 = vmatpush.msra.mxu0 0.0
        %2325 = vmatpush.msra.mxu0 0.0
        %2326 = vmatpush.msra.mxu0 0.0
        %2327 = vmatpush.msra.mxu0 0.0
        %2328 = vmatpush.msra.mxu0 0.0
        %2329 = vmatpush.msra.mxu0 0.0
        %2330 = vmatpush.msra.mxu0 0.0
        %2331 = vmatpush.msra.mxu0 %v2307
        %2332 = vmatpush.msra.mxu0 %v2306
        %2333 = vmatmul.f32.gmra.mxu0 %v2315
        %v2334 = vpop.f32.mrf.mxu0
        %v2335 = vadd.f32 0.0, %v2334
        %2336 = vdwg.mxu0
        %v2338 = vsel %vm1144, %v2251, 0
        %2340 = vmatpush.msra.mxu0 0.0
        %2341 = vmatpush.msra.mxu0 0.0
        %2342 = vmatpush.msra.mxu0 0.0
        %2343 = vmatpush.msra.mxu0 0.0
        %2344 = vmatpush.msra.mxu0 0.0
        %2345 = vmatpush.msra.mxu0 0.0
        %2346 = vmatpush.msra.mxu0 0.0
        %2347 = vmatpush.msra.mxu0 0.0
        %2348 = vmatpush.msra.mxu0 0.0
        %2349 = vmatpush.msra.mxu0 0.0
        %2350 = vmatpush.msra.mxu0 0.0
        %2351 = vmatpush.msra.mxu0 0.0
        %2352 = vmatpush.msra.mxu0 0.0
        %2353 = vmatpush.msra.mxu0 0.0
        %2354 = vmatpush.msra.mxu0 %v2309
        %2355 = vmatpush.msra.mxu0 %v2308
        %2356 = vmatmul.f32.gmra.mxu0 %v2338
        %v2357 = vpop.f32.mrf.mxu0
        %v2358 = vadd.f32 0.0, %v2357
        %2359 = vdwg.mxu0
        %v2361 = vsel %vm1144, %v2277, 0
        %2363 = vmatpush.msra.mxu0 0.0
        %2364 = vmatpush.msra.mxu0 0.0
        %2365 = vmatpush.msra.mxu0 0.0
        %2366 = vmatpush.msra.mxu0 0.0
        %2367 = vmatpush.msra.mxu0 0.0
        %2368 = vmatpush.msra.mxu0 0.0
        %2369 = vmatpush.msra.mxu0 0.0
        %2370 = vmatpush.msra.mxu0 0.0
        %2371 = vmatpush.msra.mxu0 0.0
        %2372 = vmatpush.msra.mxu0 0.0
        %2373 = vmatpush.msra.mxu0 0.0
        %2374 = vmatpush.msra.mxu0 0.0
        %2375 = vmatpush.msra.mxu0 0.0
        %2376 = vmatpush.msra.mxu0 0.0
        %2377 = vmatpush.msra.mxu0 %v2311
        %2378 = vmatpush.msra.mxu0 %v2310
        %2379 = vmatmul.f32.gmra.mxu0 %v2361
        %v2380 = vpop.f32.mrf.mxu0
        %v2381 = vadd.f32 0.0, %v2380
        %2382 = vdwg.mxu0
        %v2384 = vsel %vm1144, %v2303, 0
        %2386 = vmatpush.msra.mxu0 0.0
        %2387 = vmatpush.msra.mxu0 0.0
        %2388 = vmatpush.msra.mxu0 0.0
        %2389 = vmatpush.msra.mxu0 0.0
        %2390 = vmatpush.msra.mxu0 0.0
        %2391 = vmatpush.msra.mxu0 0.0
        %2392 = vmatpush.msra.mxu0 0.0
        %2393 = vmatpush.msra.mxu0 0.0
        %2394 = vmatpush.msra.mxu0 0.0
        %2395 = vmatpush.msra.mxu0 0.0
        %2396 = vmatpush.msra.mxu0 0.0
        %2397 = vmatpush.msra.mxu0 0.0
        %2398 = vmatpush.msra.mxu0 0.0
        %2399 = vmatpush.msra.mxu0 0.0
        %2400 = vmatpush.msra.mxu0 %v2313
        %2401 = vmatpush.msra.mxu0 %v2312
        %2402 = vmatmul.f32.gmra.mxu0 %v2384
        %v2403 = vpop.f32.mrf.mxu0
        %v2404 = vadd.f32 0.0, %v2403
        %2405 = vdwg.mxu0
        %v2406 = vsel %vm638, %v2335, 0.0
        %v2407 = vsel %vm638, %v2358, 0.0
        %v2408 = vadd.f32 %v2406, %v2407
        %v2409 = vsel %vm638, %v2381, 0.0
        %v2410 = vadd.f32 %v2408, %v2409
        %v2411 = vsel %vm638, %v2404, 0.0
        %v2412 = vadd.f32 %v2410, %v2411
        %v2413 = vadd.f32 %v1629, %v2412
        %s2414 = scalar_lea.vmem %s8, 1
        %v2415 = vld [vmem:[%s2414] sm:$0x1]
        %v2417 = vperm.slane %v2415, 0
        %v2419 = vadd.f32 %v2413, %v2417
        %s2420 = scalar_lea.vmem %s9, 1
        %v2421 = vld [vmem:[%s2420] sm:$0x1]
        %s2422 = scalar_lea.vmem %s10, 1
        %v2423 = vld [vmem:[%s2422] sm:$0x1]
        %v2424 = vsel %vm638, %v2419, 0.0
        %2425 = vadd.xlane.f32.xlu0 %v2424
        %v2426 = vpop.xlane.xlu0 %2425
        %v2427 = vmul.f32 %v2426, %v729
        %v2428 = vsub.f32 %v2419, %v2427
        %v2429 = vmul.f32 %v2428, %v2428
        %v2430 = vsel %vm638, %v2429, 0.0
        %2431 = vadd.xlane.f32.xlu0 %v2430
        %v2432 = vpop.xlane.xlu0 %2431
        %v2433 = vmul.f32 %v2432, %v729
        %v2434 = vadd.f32 %v2433, 1e-06
        %v2435 = vrsqrt.pop %v2434
        %v2436 = vmul.f32 %v2435, %v2434
        %v2437 = vmul.f32 %v2436, %v2435
        %v2438 = vmul.f32 0.5, %v2437
        %v2439 = vsub.f32 1.5, %v2438
        %v2440 = vmul.f32 %v2435, %v2439
        %vm2441 = vweird.f32 %v2434
        %vm2442 = vweird.f32 %v2435
        %vm2443 = vmor %vm2441, %vm2442
        %v2444 = vsel %vm2443, %v2435, %v2440
        %v2445 = vmul.f32 %v2428, %v2444
        %v2447 = vperm.slane %v2421, 0
        %v2449 = vmul.f32 %v2445, %v2447
        %v2451 = vperm.slane %v2423, 0
        %v2453 = vadd.f32 %v2449, %v2451
        %s2454 = scalar_lea.vmem %s11, 64
        %v2455 = vld [vmem:[%s2454] sm:$0xff]
        %v2456 = vld [vmem:[%s2454 + $0x8] sm:$0xff]
        %v2457 = vld [vmem:[%s2454 + $0x10] sm:$0xff]
        %v2458 = vld [vmem:[%s2454 + $0x18] sm:$0xff]
        %v2459 = vld [vmem:[%s2454 + $0x20] sm:$0xff]
        %v2460 = vld [vmem:[%s2454 + $0x28] sm:$0xff]
        %v2461 = vld [vmem:[%s2454 + $0x30] sm:$0xff]
        %v2462 = vld [vmem:[%s2454 + $0x38] sm:$0xff]
        %s2463 = scalar_lea.vmem %s12, 1
        %v2464 = vld [vmem:[%s2463] sm:$0x1]
        %v2466 = vperm.slane %v2464, 0
        %v2469 = vsel %vm671, %v2453, 0
        %2471 = vmatpush.msra.mxu0 0.0
        %2472 = vmatpush.msra.mxu0 0.0
        %2473 = vmatpush.msra.mxu0 0.0
        %2474 = vmatpush.msra.mxu0 0.0
        %2475 = vmatpush.msra.mxu0 0.0
        %2476 = vmatpush.msra.mxu0 0.0
        %2477 = vmatpush.msra.mxu0 0.0
        %2478 = vmatpush.msra.mxu0 0.0
        %2479 = vmatpush.msra.mxu0 %v2462
        %2480 = vmatpush.msra.mxu0 %v2461
        %2481 = vmatpush.msra.mxu0 %v2460
        %2482 = vmatpush.msra.mxu0 %v2459
        %2483 = vmatpush.msra.mxu0 %v2458
        %2484 = vmatpush.msra.mxu0 %v2457
        %2485 = vmatpush.msra.mxu0 %v2456
        %2486 = vmatpush.msra.mxu0 %v2455
        %2487 = vmatmul.f32.gmra.mxu0 %v2469
        %v2488 = vpop.f32.mrf.mxu0
        %v2489 = vadd.f32 %v2466, %v2488
        %2490 = vdwg.mxu0
        %v2491 = vmul.f32 %v2489, %v2489
        %v2492 = vmul.f32 %v2489, %v2491
        %v2493 = vmul.f32 %v2492, 0.044715
        %v2494 = vadd.f32 %v2489, %v2493
        %v2495 = vmul.f32 %v2494, 0.7978846
        %v2496 = vtanh.pop %v2495
        %v2497 = vadd.f32 %v2496, 1.0
        %v2498 = vmul.f32 %v2497, 0.5
        %v2499 = vmul.f32 %v2489, %v2498
        %s2500 = scalar_lea.vmem %s13, 128
        %v2501 = vld [vmem:[%s2500] sm:$0xff]
        %v2502 = vld [vmem:[%s2500 + $0x8] sm:$0xff]
        %v2503 = vld [vmem:[%s2500 + $0x10] sm:$0xff]
        %v2504 = vld [vmem:[%s2500 + $0x18] sm:$0xff]
        %v2505 = vld [vmem:[%s2500 + $0x20] sm:$0xff]
        %v2506 = vld [vmem:[%s2500 + $0x28] sm:$0xff]
        %v2507 = vld [vmem:[%s2500 + $0x30] sm:$0xff]
        %v2508 = vld [vmem:[%s2500 + $0x38] sm:$0xff]
        %v2509 = vld [vmem:[%s2500 + $0x40] sm:$0xff]
        %v2510 = vld [vmem:[%s2500 + $0x48] sm:$0xff]
        %v2511 = vld [vmem:[%s2500 + $0x50] sm:$0xff]
        %v2512 = vld [vmem:[%s2500 + $0x58] sm:$0xff]
        %v2513 = vld [vmem:[%s2500 + $0x60] sm:$0xff]
        %v2514 = vld [vmem:[%s2500 + $0x68] sm:$0xff]
        %v2515 = vld [vmem:[%s2500 + $0x70] sm:$0xff]
        %v2516 = vld [vmem:[%s2500 + $0x78] sm:$0xff]
        %s2517 = scalar_lea.vmem %s14, 1
        %v2518 = vld [vmem:[%s2517] sm:$0x1]
        %v2520 = vperm.slane %v2518, 0
        %2522 = vmatpush.msra.mxu0 %v2516
        %2523 = vmatpush.msra.mxu0 %v2515
        %2524 = vmatpush.msra.mxu0 %v2514
        %2525 = vmatpush.msra.mxu0 %v2513
        %2526 = vmatpush.msra.mxu0 %v2512
        %2527 = vmatpush.msra.mxu0 %v2511
        %2528 = vmatpush.msra.mxu0 %v2510
        %2529 = vmatpush.msra.mxu0 %v2509
        %2530 = vmatpush.msra.mxu0 %v2508
        %2531 = vmatpush.msra.mxu0 %v2507
        %2532 = vmatpush.msra.mxu0 %v2506
        %2533 = vmatpush.msra.mxu0 %v2505
        %2534 = vmatpush.msra.mxu0 %v2504
        %2535 = vmatpush.msra.mxu0 %v2503
        %2536 = vmatpush.msra.mxu0 %v2502
        %2537 = vmatpush.msra.mxu0 %v2501
        %2538 = vmatmul.f32.gmra.mxu0 %v2499
        %v2539 = vpop.f32.mrf.mxu0
        %v2540 = vadd.f32 %v2520, %v2539
        %2541 = vdwg.mxu0
        %v2542 = vadd.f32 %v2419, %v2540
        %v2543 = vld [vmem:[%s15] sm:$0x1]
        %v2544 = vld [vmem:[%s16] sm:$0x1]
        %vm2545 = vcmask 516096
        %v2546 = vsel %vm2545, %v2542, 0.0
        %2547 = vadd.xlane.f32.xlu0 %v2546
        %v2548 = vpop.xlane.xlu0 %2547
        %v2549 = vmul.f32 %v2548, %v729
        %v2550 = vsub.f32 %v2542, %v2549
        %v2551 = vmul.f32 %v2550, %v2550
        %v2552 = vsel %vm2545, %v2551, 0.0
        %2553 = vadd.xlane.f32.xlu0 %v2552
        %v2554 = vpop.xlane.xlu0 %2553
        %v2555 = vmul.f32 %v2554, %v729
        %v2556 = vadd.f32 %v2555, 1e-06
        %v2557 = vrsqrt.pop %v2556
        %v2558 = vmul.f32 %v2557, %v2556
        %v2559 = vmul.f32 %v2558, %v2557
        %v2560 = vmul.f32 0.5, %v2559
        %v2561 = vsub.f32 1.5, %v2560
        %v2562 = vmul.f32 %v2557, %v2561
        %vm2563 = vweird.f32 %v2556
        %vm2564 = vweird.f32 %v2557
        %vm2565 = vmor %vm2563, %vm2564
        %v2566 = vsel %vm2565, %v2557, %v2562
        %v2567 = vmul.f32 %v2550, %v2566
        %v2568 = vmul.f32 %v2567, %v2543
        %v2569 = vadd.f32 %v2568, %v2544
        %2570 = vst.msk [vmem:[%s631] sm:$0x1] %vm2545, %v2569
        %v2571 = vld [vmem:[%s17] sm:$0xff]
        %v2572 = vld [vmem:[%s17 + $0x8] sm:$0xff]
        %v2573 = vld [vmem:[%s17 + $0x10] sm:$0xff]
        %v2574 = vld [vmem:[%s17 + $0x18] sm:$0xff]
        %v2575 = vld [vmem:[%s17 + $0x20] sm:$0xff]
        %v2576 = vld [vmem:[%s17 + $0x28] sm:$0xff]
        %v2577 = vld [vmem:[%s17 + $0x30] sm:$0xff]
        %v2578 = vld [vmem:[%s17 + $0x38] sm:$0xff]
        %v2579 = vld [vmem:[%s18] sm:$0x1]
        %v2581 = vsel %vm671, %v2569, 0
        %2583 = vmatpush.msra.mxu0 0.0
        %2584 = vmatpush.msra.mxu0 0.0
        %2585 = vmatpush.msra.mxu0 0.0
        %2586 = vmatpush.msra.mxu0 0.0
        %2587 = vmatpush.msra.mxu0 0.0
        %2588 = vmatpush.msra.mxu0 0.0
        %2589 = vmatpush.msra.mxu0 0.0
        %2590 = vmatpush.msra.mxu0 0.0
        %2591 = vmatpush.msra.mxu0 %v2578
        %2592 = vmatpush.msra.mxu0 %v2577
        %2593 = vmatpush.msra.mxu0 %v2576
        %2594 = vmatpush.msra.mxu0 %v2575
        %2595 = vmatpush.msra.mxu0 %v2574
        %2596 = vmatpush.msra.mxu0 %v2573
        %2597 = vmatpush.msra.mxu0 %v2572
        %2598 = vmatpush.msra.mxu0 %v2571
        %2599 = vmatmul.f32.gmra.mxu0 %v2581
        %v2600 = vpop.f32.mrf.mxu0
        %v2601 = vadd.f32 %v2579, %v2600
        %2602 = vdwg.mxu0
        %vm2603 = vcmask 1040384
        %v2604 = vsel %vm2603, %v2601, -inf
        %2605 = vmax.xlane.f32.xlu0 %v2604
        %v2606 = vpop.xlane.xlu0 %2605
        %v2607 = vsub.f32 %v2601, %v2606
        %v2608 = vmul.f32 %v2607, 1.442695
        %v2609 = vpow.pop %v2608
        %v2610 = vsel %vm2603, %v2609, 0.0
        %2611 = vadd.xlane.f32.xlu0 %v2610
        %v2612 = vpop.xlane.xlu0 %2611
        %v2613 = vrcp.pop %v2612
        %v2614 = vmul.f32 %v2612, %v2613
        %v2615 = vsub.f32 1.0, %v2614
        %v2616 = vmul.f32 %v2613, %v2615
        %v2617 = vadd.f32 %v2613, %v2616
        %vm2618 = vweird.f32 %v2612
        %vm2619 = vweird.f32 %v2613
        %vm2620 = vmor %vm2618, %vm2619
        %v2621 = vsel %vm2620, %v2613, %v2617
        %v2622 = vand.u32 2147483647, %v2612
        %vm2623 = vcmp.eq.f32.partialorder %v2622, 8.507059e+37
        %v2624 = vand.u32 %v2612, 2147483648
        %v2625 = vor.u32 1.1754944e-38, %v2624
        %v2626 = vsel %vm2623, %v2625, %v2621
        %v2627 = vmul.f32 %v2609, %v2626
        %2628 = vst [vmem:[%s625] sm:$0x1] %v2627
        %s2629 = sand.u32 %s450, 1
        %s2630 = scalar_lea.sflag [#allocation4], %s2629
        %s2631 = sand.u32 %s450, 1
        %s2632 = scalar_lea.vmem [#allocation3], %s2631
        %s2633 = sand.u32 %s476, 1
        %s2634 = scalar_lea.sflag [#allocation6], %s2633
        %s2635 = sand.u32 %s476, 1
        %s2636 = scalar_lea.vmem [#allocation5], %s2635
        // Predicated region
        $region97: #{vit_embeddings_forward.1} parent=95 // pred_check
          %p2637 = pneg %p460
        $region98: #{vit_embeddings_forward.1} parent=95 // pred_check_branch
          %2639 = sbr.rel (%p2637) target = $region100
        $region99: #{vit_embeddings_forward.1} parent=95 // pred_region
          %2641 = vsyncadd %s2630, 0
          %s2642 = scalar_lea.hbm %s19, %s38
          %s2644 = sshll.u32 %s2632, 4
          %s2645 = int_to_ptr.vmem [resolvable:$true] %s2644
          %s2646 = sshll.u32 %s2642, 4
          %s2647 = int_to_ptr.hbm [resolvable:$true] %s2646
          %2649 = dma.vmem_to_hbm [thread:$0]  %s2645, 16, %s2647, %s2630
        $region100: #{vit_embeddings_forward.1} parent=95 // pred_fallthru
          _
        // Predicated region
        $region101: #{vit_embeddings_forward.1} parent=95 // pred_check
          %p2650 = pneg %p486
        $region102: #{vit_embeddings_forward.1} parent=95 // pred_check_branch
          %2652 = sbr.rel (%p2650) target = $region104
        $region103: #{vit_embeddings_forward.1} parent=95 // pred_region
          %2654 = vsyncadd %s2634, 0
          %s2655 = scalar_lea.hbm %s20, %s38
          %s2657 = sshll.u32 %s2636, 4
          %s2658 = int_to_ptr.vmem [resolvable:$true] %s2657
          %s2659 = sshll.u32 %s2655, 4
          %s2660 = int_to_ptr.hbm [resolvable:$true] %s2659
          %2662 = dma.vmem_to_hbm [thread:$0]  %s2658, 16, %s2660, %s2634
        $region104: #{vit_embeddings_forward.1} parent=95 // pred_fallthru
          _
      $region96: #{vit_embeddings_forward.1} parent=5 // pred_fallthru
        _
      %p2663 = scmp.le.s32.totalorder 2, %s33
      // Predicated region
      $region105: #{vit_embeddings_forward.1} parent=5 // pred_check
        %p2664 = pneg %p2663
      $region106: #{vit_embeddings_forward.1} parent=5 // pred_check_branch
        %2666 = sbr.rel (%p2664) target = $region108
      $region107: #{vit_embeddings_forward.1} parent=5 // pred_region
        %s2667 = ssub.s32 %s33, 2
        // Predicated region
        $region109: #{vit_embeddings_forward.1} parent=107 // pred_check
          %p2668 = pneg %p466
        $region110: #{vit_embeddings_forward.1} parent=107 // pred_check_branch
          %2670 = sbr.rel (%p2668) target = $region112
        $region111: #{vit_embeddings_forward.1} parent=107 // pred_region
          %s2671 = sand.u32 %s451, 1
          %s2672 = scalar_lea.sflag [#allocation4], %s2671
          %s2673 = sand.u32 %s451, 1
          %s2674 = scalar_lea.vmem [#allocation3], %s2673
          %2676 = dma.done %s2672, 16
        $region112: #{vit_embeddings_forward.1} parent=107 // pred_fallthru
          _
        // Predicated region
        $region113: #{vit_embeddings_forward.1} parent=107 // pred_check
          %p2677 = pneg %p492
        $region114: #{vit_embeddings_forward.1} parent=107 // pred_check_branch
          %2679 = sbr.rel (%p2677) target = $region116
        $region115: #{vit_embeddings_forward.1} parent=107 // pred_region
          %s2680 = sand.u32 %s477, 1
          %s2681 = scalar_lea.sflag [#allocation6], %s2680
          %s2682 = sand.u32 %s477, 1
          %s2683 = scalar_lea.vmem [#allocation5], %s2682
          %2685 = dma.done %s2681, 16
        $region116: #{vit_embeddings_forward.1} parent=107 // pred_fallthru
          _
      $region108: #{vit_embeddings_forward.1} parent=5 // pred_fallthru
        _
    $region6: #{vit_embeddings_forward.1} parent=1 // loop_footer
      %s37 = sadd.s32 1, %s33
    $region7: #{vit_embeddings_forward.1} parent=1 // loop_footer_branch
      %32 = sbr.rel target = $region3
    $region8: #{vit_embeddings_forward.1} parent=1 // loop_exit
      _
    %2686 = vsyncpa [#allocation4], 1
    %s2687 = scalar_lea.sflag [#allocation4], 1
    %2688 = vsyncpa %s2687, 1
    %2689 = vsyncpa [#allocation6], 1
    %s2690 = scalar_lea.sflag [#allocation6], 1
    %2691 = vsyncpa %s2690, 1

</llo_original>
